<compile_context>
chip_gen: v5e
topology: v5e:2x2
jax: 0.10.0
libtpu: 0.0.40
codegen_flags: <defaults>
</compile_context>

<pallas_src>
import functools

import jax
import jax.numpy as jnp
from jax.experimental import pallas as pl
from jax.experimental.pallas import tpu as pltpu


NCH = 10   # real conv channel count (module's num_channels)
CP = 16    # channel padding used inside the kernel (sublane alignment)


# ---------------------------------------------------------------------------
# Static layout dimensions (all Python ints, derived from the input shape)
# ---------------------------------------------------------------------------
def _dims(H, W):
    Wg = W + 2                                  # row stride of the flat padded grid
    H2 = (H - 3) // 2 + 1                       # conv2 output height
    W2 = (W - 3) // 2 + 1                       # conv2 output width
    L2 = (((H2 - 1) * Wg + W2) + 7) // 8 * 8    # conv2/conv3 flat-grid extent
    LE = L2 + Wg + 1                            # conv1 per-parity output extent
    Lin = max(LE + Wg + 1, ((H + 2) * (W + 2) + 1) // 2)   # per-parity input extent
    PADL = Wg + 1                               # zero margin for conv3 'same' padding
    return dict(Wg=Wg, H2=H2, W2=W2, L2=L2, LE=LE, Lin=Lin, PADL=PADL)


# ---------------------------------------------------------------------------
# The fused kernel: one grid step == one image
# ---------------------------------------------------------------------------
def _cnn2_kernel(dims, xe_ref, xo_ref, w1_ref, b1_ref, w2_ref, b2_ref,
                 w3_ref, b3_ref, wfc1_ref, bfc1_ref, wfc2_ref, bfc2_ref,
                 mask2_ref, out_ref, e1_ref, o1_ref, a2_ref):
    Wg, L2, LE, PADL = dims["Wg"], dims["L2"], dims["LE"], dims["PADL"]
    taps = [(di, dj) for di in range(3) for dj in range(3)]

    # ---- conv1 + folded BN + ReLU: Cin=1 -> pure VPU broadcast-FMAs ----------
    # Output kept parity-split (even / odd flat-grid positions) so conv2's
    # stride-2 reads become contiguous slices.
    e1 = jnp.zeros((CP, LE), jnp.float32)
    o1 = jnp.zeros((CP, LE), jnp.float32)
    for t, (di, dj) in enumerate(taps):
        off = di * Wg + dj
        m, parity = off // 2, off % 2
        w = w1_ref[t]                                            # (CP, 1)
        if parity == 0:
            e1 = e1 + w * xe_ref[:, pl.ds(m, LE)]
            o1 = o1 + w * xo_ref[:, pl.ds(m, LE)]
        else:
            e1 = e1 + w * xo_ref[:, pl.ds(m, LE)]
            o1 = o1 + w * xe_ref[:, pl.ds(m + 1, LE)]
    e1_ref[...] = jnp.maximum(e1 + b1_ref[...], 0.0)
    o1_ref[...] = jnp.maximum(o1 + b1_ref[...], 0.0)

    # ---- conv2 (3x3, stride 2, valid) + folded BN + ReLU: 9 MXU matmuls ------
    z2 = jnp.zeros((CP, L2), jnp.float32)
    for t, (di, dj) in enumerate(taps):
        off = di * Wg + dj
        m, parity = off // 2, off % 2
        src = e1_ref if parity == 0 else o1_ref
        z2 = z2 + jnp.dot(w2_ref[t], src[:, pl.ds(m, L2)],
                          preferred_element_type=jnp.float32)
    a2 = jnp.maximum(z2 + b2_ref[...], 0.0) * mask2_ref[...]      # zero garbage cols

    # Park conv2's output inside a zero margin so conv3's 'same' padding reads 0.
    a2_ref[...] = jnp.zeros_like(a2_ref)
    a2_ref[:, pl.ds(PADL, L2)] = a2

    # ---- conv3 (3x3, stride 1, 'same') + folded BN + ReLU: 9 MXU matmuls -----
    z3 = jnp.zeros((CP, L2), jnp.float32)
    for t, (di, dj) in enumerate(taps):
        off = (di - 1) * Wg + (dj - 1)                            # in [-(Wg+1), Wg+1]
        z3 = z3 + jnp.dot(w3_ref[t], a2_ref[:, pl.ds(PADL + off, L2)],
                          preferred_element_type=jnp.float32)
    a3 = jnp.maximum(z3 + b3_ref[...], 0.0)                       # (CP, L2)

    # ---- fc1 (NCHW flatten folded into per-channel weight slabs) -> fc2 ------
    acc = jnp.zeros((1, wfc1_ref.shape[2]), jnp.float32)
    for c in range(NCH):
        acc = acc + jnp.dot(a3[c:c + 1, :], wfc1_ref[c],
                            preferred_element_type=jnp.float32)
    h = acc + bfc1_ref[...]                                       # (1, 128)
    y = jnp.dot(h, wfc2_ref[...], preferred_element_type=jnp.float32) + bfc2_ref[...]
    out_ref[...] = jax.nn.sigmoid(y).astype(out_ref.dtype)        # (1, 32)


# ---------------------------------------------------------------------------
# Forward wrapper (single pallas_call)
# ---------------------------------------------------------------------------
def cnn2_forward(params, behav):
    B, H, W = behav.shape
    d = _dims(H, W)
    Lin, LE, L2, PADL = d["Lin"], d["LE"], d["L2"], d["PADL"]

    # Flatten the zero-padded image onto the (H+2, W+2) grid and split by parity.
    x = behav.astype(jnp.float32)
    xp = jnp.pad(x, ((0, 0), (1, 1), (1, 1)))                     # (B, H+2, W+2)
    flat = xp.reshape(B, (H + 2) * (W + 2))
    flat = jnp.pad(flat, ((0, 0), (0, 2 * Lin - flat.shape[1])))
    xe = flat[:, 0::2].reshape(B, 1, Lin)
    xo = flat[:, 1::2].reshape(B, 1, Lin)

    nfc2 = params["wfc2"].shape[1]

    def full(arr):
        nd = arr.ndim
        return pl.BlockSpec(arr.shape, lambda b, _nd=nd: (0,) * _nd)

    out = pl.pallas_call(
        functools.partial(_cnn2_kernel, d),
        out_shape=jax.ShapeDtypeStruct((B, 1, nfc2), jnp.float32),
        grid_spec=pltpu.PrefetchScalarGridSpec(
            num_scalar_prefetch=0,
            grid=(B,),
            in_specs=[
                pl.BlockSpec((None, 1, Lin), lambda b: (b, 0, 0)),   # xe
                pl.BlockSpec((None, 1, Lin), lambda b: (b, 0, 0)),   # xo
                full(params["w1"]), full(params["b1"]),
                full(params["w2"]), full(params["b2"]),
                full(params["w3"]), full(params["b3"]),
                full(params["wfc1"]), full(params["bfc1"]),
                full(params["wfc2"]), full(params["bfc2"]),
                full(params["mask2"]),
            ],
            out_specs=pl.BlockSpec((None, 1, nfc2), lambda b: (b, 0, 0)),
            scratch_shapes=[
                pltpu.VMEM((CP, LE), jnp.float32),                   # conv1 even
                pltpu.VMEM((CP, LE), jnp.float32),                   # conv1 odd
                pltpu.VMEM((CP, L2 + 2 * PADL), jnp.float32),        # conv2 (padded)
            ],
        ),
        compiler_params=pltpu.CompilerParams(
            dimension_semantics=("parallel",)),
    )(xe, xo,
      params["w1"], params["b1"], params["w2"], params["b2"],
      params["w3"], params["b3"], params["wfc1"], params["bfc1"],
      params["wfc2"], params["bfc2"], params["mask2"])
    return out.reshape(B, nfc2)


# ---------------------------------------------------------------------------
# Parameter preparation (done ONCE, outside the jitted forward)
# ---------------------------------------------------------------------------
def _fold_bn(w, b, bn, eps=1e-5):
    s = bn["gamma"] / jnp.sqrt(bn["var"] + eps)
    return w * s[:, None, None, None], (b - bn["mean"]) * s + bn["beta"]


def _conv_taps(w, b):
    # (Cout, Cin, 3, 3) -> per-tap lhs matrices (9, CP, Cin_pad) + (CP, 1) bias.
    Cout, Cin, kh, kw = w.shape
    taps = jnp.transpose(w, (2, 3, 0, 1)).reshape(kh * kw, Cout, Cin)
    cin_pad = (0, CP - Cin) if Cin > 1 else (0, 0)
    taps = jnp.pad(taps, ((0, 0), (0, CP - Cout), cin_pad))
    bias = jnp.pad(b, (0, CP - Cout)).reshape(CP, 1)
    return taps, bias


def prepare_params(raw, H, W):
    d = _dims(H, W)
    Wg, L2, H2, W2 = d["Wg"], d["L2"], d["H2"], d["W2"]

    p = {}
    for i in (1, 2, 3):
        wf, bf = _fold_bn(raw[f"conv{i}_w"], raw[f"conv{i}_b"], raw[f"bn{i}"])
        p[f"w{i}"], p[f"b{i}"] = _conv_taps(wf, bf)

    # Validity / flatten bookkeeping on the stride-Wg flat grid used by the kernel.
    g = jnp.arange(L2)
    i3, j3 = g // Wg, g % Wg
    valid = (i3 < H2) & (j3 < W2)
    feat = jnp.where(valid, i3 * W2 + j3, 0)

    # fc1: PyTorch NCHW flatten (c*H2*W2 + h*W2 + w) folded into per-channel slabs
    # laid out on the kernel's flat grid (zeros at garbage grid positions).
    w1t = raw["fc1_w"].T.reshape(NCH, H2 * W2, -1)                 # (10, 60, 128)
    wfc1 = w1t[:, feat, :]                                         # (10, L2, 128)
    p["wfc1"] = jnp.where(valid[None, :, None], wfc1, 0.0)
    p["bfc1"] = raw["fc1_b"].reshape(1, -1)
    p["wfc2"] = raw["fc2_w"].T                                     # (128, 32)
    p["bfc2"] = raw["fc2_b"].reshape(1, -1)
    p["mask2"] = valid.astype(jnp.float32).reshape(1, L2)
    return p


# ---------------------------------------------------------------------------
# Pure-JAX reference mirroring the PyTorch module (correctness check)
# ---------------------------------------------------------------------------
def torch_reference(raw, behav, eps=1e-5):
    B, H, W = behav.shape
    x = behav.astype(jnp.float32).reshape(B, 1, H, W)

    def conv(x, w, b, stride, padding):
        y = jax.lax.conv_general_dilated(
            x, w, window_strides=(stride, stride), padding=padding,
            dimension_numbers=("NCHW", "OIHW", "NCHW"))
        return y + b[None, :, None, None]

    def bn(x, p):
        s = p["gamma"] / jnp.sqrt(p["var"] + eps)
        return ((x - p["mean"][None, :, None, None]) * s[None, :, None, None]
                + p["beta"][None, :, None, None])

    x = jax.nn.relu(bn(conv(x, raw["conv1_w"], raw["conv1_b"], 1, "SAME"), raw["bn1"]))
    x = jax.nn.relu(bn(conv(x, raw["conv2_w"], raw["conv2_b"], 2, "VALID"), raw["bn2"]))
    x = jax.nn.relu(bn(conv(x, raw["conv3_w"], raw["conv3_b"], 1, "SAME"), raw["bn3"]))
    x = x.reshape(B, -1)
    x = x @ raw["fc1_w"].T + raw["fc1_b"]
    x = x @ raw["fc2_w"].T + raw["fc2_b"]
    return jax.nn.sigmoid(x)


# ---------------------------------------------------------------------------
# Synthetic parameters (shapes follow the PyTorch __init__)
# ---------------------------------------------------------------------------
def init_raw_params(key):
    ks = iter(jax.random.split(key, 32))

    def nrm(shape, scale=0.1):
        return scale * jax.random.normal(next(ks), shape, jnp.float32)

    def bn(c):
        return {"gamma": 1.0 + 0.1 * jax.random.normal(next(ks), (c,), jnp.float32),
                "beta": 0.05 * jax.random.normal(next(ks), (c,), jnp.float32),
                "mean": 0.1 * jax.random.normal(next(ks), (c,), jnp.float32),
                "var": 1.0 + 0.1 * jnp.abs(
                    jax.random.normal(next(ks), (c,), jnp.float32))}

    C = NCH
    return {
        "conv1_w": nrm((C, 1, 3, 3)), "conv1_b": nrm((C,), 0.01), "bn1": bn(C),
        "conv2_w": nrm((C, C, 3, 3)), "conv2_b": nrm((C,), 0.01), "bn2": bn(C),
        "conv3_w": nrm((C, C, 3, 3)), "conv3_b": nrm((C,), 0.01), "bn3": bn(C),
        "fc1_w": nrm((128, 600)), "fc1_b": nrm((128,), 0.01),
        "fc2_w": nrm((32, 128)), "fc2_b": nrm((32,), 0.01),
    }


if __name__ == "__main__":
    B, H, W = 2, 21, 13          # (21-3)//2+1 = 10, (13-3)//2+1 = 6 -> 600 features
    key = jax.random.PRNGKey(0)
    kparam, kbehav = jax.random.split(key, 2)

    raw = init_raw_params(kparam)
    params = prepare_params(raw, H, W)       # BN-fold / tap-split / flatten-fold ONCE
    behav = jax.random.normal(kbehav, (B, H, W), jnp.float32)

    fwd = jax.jit(cnn2_forward)
    out = fwd(params, behav)
    jax.block_until_ready(out)

    ref = torch_reference(raw, behav)
    err = float(jnp.max(jnp.abs(out - ref)))
    if err > 1e-3:
        raise AssertionError(f"Pallas CNN_2 mismatch vs reference: max |err| = {err}")
    print("KERNEL_OK")
</pallas_src>

<mosaic_0001>
module attributes {stable_mosaic.version = 11 : i64} {
  func.func @_cnn2_kernel(%arg0: i32, %arg1: memref<1x1x176xf32, #tpu.memory_space<vmem>>, %arg2: memref<1x1x176xf32, #tpu.memory_space<vmem>>, %arg3: memref<9x16x1xf32, #tpu.memory_space<vmem>>, %arg4: memref<16x1xf32, #tpu.memory_space<vmem>>, %arg5: memref<9x16x16xf32, #tpu.memory_space<vmem>>, %arg6: memref<16x1xf32, #tpu.memory_space<vmem>>, %arg7: memref<9x16x16xf32, #tpu.memory_space<vmem>>, %arg8: memref<16x1xf32, #tpu.memory_space<vmem>>, %arg9: memref<10x144x128xf32, #tpu.memory_space<vmem>>, %arg10: memref<1x128xf32, #tpu.memory_space<vmem>>, %arg11: memref<128x32xf32, #tpu.memory_space<vmem>>, %arg12: memref<1x32xf32, #tpu.memory_space<vmem>>, %arg13: memref<1x144xf32, #tpu.memory_space<vmem>>, %arg14: memref<1x1x32xf32, #tpu.memory_space<vmem>>, %arg15: memref<16x160xf32, #tpu.memory_space<vmem>>, %arg16: memref<16x160xf32, #tpu.memory_space<vmem>>, %arg17: memref<16x176xf32, #tpu.memory_space<vmem>>) attributes {dimension_semantics = [#tpu.dimension_semantics<parallel>], iteration_bounds = array<i64: 2>, scalar_prefetch = 0 : i64, scratch_operands = 3 : i64, tpu.core_type = #tpu.core_type<tc>, window_params = [{transform_indices = @transform_0, window_bounds = array<i64: 1, 1, 176>}, {transform_indices = @transform_1, window_bounds = array<i64: 1, 1, 176>}, {pipeline_mode = #tpu.pipeline_mode<synchronous>, transform_indices = @transform_2, window_bounds = array<i64: 9, 16, 1>}, {pipeline_mode = #tpu.pipeline_mode<synchronous>, transform_indices = @transform_3, window_bounds = array<i64: 16, 1>}, {pipeline_mode = #tpu.pipeline_mode<synchronous>, transform_indices = @transform_4, window_bounds = array<i64: 9, 16, 16>}, {pipeline_mode = #tpu.pipeline_mode<synchronous>, transform_indices = @transform_5, window_bounds = array<i64: 16, 1>}, {pipeline_mode = #tpu.pipeline_mode<synchronous>, transform_indices = @transform_6, window_bounds = array<i64: 9, 16, 16>}, {pipeline_mode = #tpu.pipeline_mode<synchronous>, transform_indices = @transform_7, window_bounds = array<i64: 16, 1>}, {pipeline_mode = #tpu.pipeline_mode<synchronous>, transform_indices = @transform_8, window_bounds = array<i64: 10, 144, 128>}, {pipeline_mode = #tpu.pipeline_mode<synchronous>, transform_indices = @transform_9, window_bounds = array<i64: 1, 128>}, {pipeline_mode = #tpu.pipeline_mode<synchronous>, transform_indices = @transform_10, window_bounds = array<i64: 128, 32>}, {pipeline_mode = #tpu.pipeline_mode<synchronous>, transform_indices = @transform_11, window_bounds = array<i64: 1, 32>}, {pipeline_mode = #tpu.pipeline_mode<synchronous>, transform_indices = @transform_12, window_bounds = array<i64: 1, 144>}, {transform_indices = @transform_13, window_bounds = array<i64: 1, 1, 32>}]} {
    %cst = arith.constant 0.000000e+00 : f32
    %0 = vector.broadcast %cst : f32 to vector<16x160xf32>
    %cst_0 = arith.constant 0.000000e+00 : f32
    %1 = vector.broadcast %cst_0 : f32 to vector<16x160xf32>
    %c0 = arith.constant 0 : index
    %c0_1 = arith.constant 0 : index
    %c0_2 = arith.constant 0 : index
    %2 = vector.load %arg3[%c0, %c0_1, %c0_2] : memref<9x16x1xf32, #tpu.memory_space<vmem>>, vector<1x16x1xf32>
    %3 = vector.shape_cast %2 : vector<1x16x1xf32> to vector<16x1xf32>
    %c0_3 = arith.constant 0 : index
    %c0_4 = arith.constant 0 : index
    %c0_5 = arith.constant 0 : index
    %4 = vector.load %arg1[%c0_3, %c0_4, %c0_5] : memref<1x1x176xf32, #tpu.memory_space<vmem>>, vector<1x1x160xf32>
    %5 = vector.shape_cast %4 : vector<1x1x160xf32> to vector<1x160xf32>
    %6 = vector.broadcast %3 : vector<16x1xf32> to vector<16x160xf32>
    %7 = vector.broadcast %5 : vector<1x160xf32> to vector<16x160xf32>
    %8 = arith.mulf %6, %7 : vector<16x160xf32>
    %9 = arith.addf %0, %8 : vector<16x160xf32>
    %c0_6 = arith.constant 0 : index
    %c0_7 = arith.constant 0 : index
    %c0_8 = arith.constant 0 : index
    %10 = vector.load %arg2[%c0_6, %c0_7, %c0_8] : memref<1x1x176xf32, #tpu.memory_space<vmem>>, vector<1x1x160xf32>
    %11 = vector.shape_cast %10 : vector<1x1x160xf32> to vector<1x160xf32>
    %12 = vector.broadcast %3 : vector<16x1xf32> to vector<16x160xf32>
    %13 = vector.broadcast %11 : vector<1x160xf32> to vector<16x160xf32>
    %14 = arith.mulf %12, %13 : vector<16x160xf32>
    %15 = arith.addf %1, %14 : vector<16x160xf32>
    %c1 = arith.constant 1 : index
    %c0_9 = arith.constant 0 : index
    %c0_10 = arith.constant 0 : index
    %16 = vector.load %arg3[%c1, %c0_9, %c0_10] : memref<9x16x1xf32, #tpu.memory_space<vmem>>, vector<1x16x1xf32>
    %17 = vector.shape_cast %16 : vector<1x16x1xf32> to vector<16x1xf32>
    %c0_11 = arith.constant 0 : index
    %c0_12 = arith.constant 0 : index
    %c0_13 = arith.constant 0 : index
    %18 = vector.load %arg2[%c0_11, %c0_12, %c0_13] : memref<1x1x176xf32, #tpu.memory_space<vmem>>, vector<1x1x160xf32>
    %19 = vector.shape_cast %18 : vector<1x1x160xf32> to vector<1x160xf32>
    %20 = vector.broadcast %17 : vector<16x1xf32> to vector<16x160xf32>
    %21 = vector.broadcast %19 : vector<1x160xf32> to vector<16x160xf32>
    %22 = arith.mulf %20, %21 : vector<16x160xf32>
    %23 = arith.addf %9, %22 : vector<16x160xf32>
    %c0_14 = arith.constant 0 : index
    %c0_15 = arith.constant 0 : index
    %c1_16 = arith.constant 1 : index
    %24 = vector.load %arg1[%c0_14, %c0_15, %c1_16] : memref<1x1x176xf32, #tpu.memory_space<vmem>>, vector<1x1x160xf32>
    %25 = vector.shape_cast %24 : vector<1x1x160xf32> to vector<1x160xf32>
    %26 = vector.broadcast %17 : vector<16x1xf32> to vector<16x160xf32>
    %27 = vector.broadcast %25 : vector<1x160xf32> to vector<16x160xf32>
    %28 = arith.mulf %26, %27 : vector<16x160xf32>
    %29 = arith.addf %15, %28 : vector<16x160xf32>
    %c2 = arith.constant 2 : index
    %c0_17 = arith.constant 0 : index
    %c0_18 = arith.constant 0 : index
    %30 = vector.load %arg3[%c2, %c0_17, %c0_18] : memref<9x16x1xf32, #tpu.memory_space<vmem>>, vector<1x16x1xf32>
    %31 = vector.shape_cast %30 : vector<1x16x1xf32> to vector<16x1xf32>
    %c0_19 = arith.constant 0 : index
    %c0_20 = arith.constant 0 : index
    %c1_21 = arith.constant 1 : index
    %32 = vector.load %arg1[%c0_19, %c0_20, %c1_21] : memref<1x1x176xf32, #tpu.memory_space<vmem>>, vector<1x1x160xf32>
    %33 = vector.shape_cast %32 : vector<1x1x160xf32> to vector<1x160xf32>
    %34 = vector.broadcast %31 : vector<16x1xf32> to vector<16x160xf32>
    %35 = vector.broadcast %33 : vector<1x160xf32> to vector<16x160xf32>
    %36 = arith.mulf %34, %35 : vector<16x160xf32>
    %37 = arith.addf %23, %36 : vector<16x160xf32>
    %c0_22 = arith.constant 0 : index
    %c0_23 = arith.constant 0 : index
    %c1_24 = arith.constant 1 : index
    %38 = vector.load %arg2[%c0_22, %c0_23, %c1_24] : memref<1x1x176xf32, #tpu.memory_space<vmem>>, vector<1x1x160xf32>
    %39 = vector.shape_cast %38 : vector<1x1x160xf32> to vector<1x160xf32>
    %40 = vector.broadcast %31 : vector<16x1xf32> to vector<16x160xf32>
    %41 = vector.broadcast %39 : vector<1x160xf32> to vector<16x160xf32>
    %42 = arith.mulf %40, %41 : vector<16x160xf32>
    %43 = arith.addf %29, %42 : vector<16x160xf32>
    %c3 = arith.constant 3 : index
    %c0_25 = arith.constant 0 : index
    %c0_26 = arith.constant 0 : index
    %44 = vector.load %arg3[%c3, %c0_25, %c0_26] : memref<9x16x1xf32, #tpu.memory_space<vmem>>, vector<1x16x1xf32>
    %45 = vector.shape_cast %44 : vector<1x16x1xf32> to vector<16x1xf32>
    %c0_27 = arith.constant 0 : index
    %c0_28 = arith.constant 0 : index
    %c7 = arith.constant 7 : index
    %46 = vector.load %arg2[%c0_27, %c0_28, %c7] : memref<1x1x176xf32, #tpu.memory_space<vmem>>, vector<1x1x160xf32>
    %47 = vector.shape_cast %46 : vector<1x1x160xf32> to vector<1x160xf32>
    %48 = vector.broadcast %45 : vector<16x1xf32> to vector<16x160xf32>
    %49 = vector.broadcast %47 : vector<1x160xf32> to vector<16x160xf32>
    %50 = arith.mulf %48, %49 : vector<16x160xf32>
    %51 = arith.addf %37, %50 : vector<16x160xf32>
    %c0_29 = arith.constant 0 : index
    %c0_30 = arith.constant 0 : index
    %c8 = arith.constant 8 : index
    %52 = vector.load %arg1[%c0_29, %c0_30, %c8] : memref<1x1x176xf32, #tpu.memory_space<vmem>>, vector<1x1x160xf32>
    %53 = vector.shape_cast %52 : vector<1x1x160xf32> to vector<1x160xf32>
    %54 = vector.broadcast %45 : vector<16x1xf32> to vector<16x160xf32>
    %55 = vector.broadcast %53 : vector<1x160xf32> to vector<16x160xf32>
    %56 = arith.mulf %54, %55 : vector<16x160xf32>
    %57 = arith.addf %43, %56 : vector<16x160xf32>
    %c4 = arith.constant 4 : index
    %c0_31 = arith.constant 0 : index
    %c0_32 = arith.constant 0 : index
    %58 = vector.load %arg3[%c4, %c0_31, %c0_32] : memref<9x16x1xf32, #tpu.memory_space<vmem>>, vector<1x16x1xf32>
    %59 = vector.shape_cast %58 : vector<1x16x1xf32> to vector<16x1xf32>
    %c0_33 = arith.constant 0 : index
    %c0_34 = arith.constant 0 : index
    %c8_35 = arith.constant 8 : index
    %60 = vector.load %arg1[%c0_33, %c0_34, %c8_35] : memref<1x1x176xf32, #tpu.memory_space<vmem>>, vector<1x1x160xf32>
    %61 = vector.shape_cast %60 : vector<1x1x160xf32> to vector<1x160xf32>
    %62 = vector.broadcast %59 : vector<16x1xf32> to vector<16x160xf32>
    %63 = vector.broadcast %61 : vector<1x160xf32> to vector<16x160xf32>
    %64 = arith.mulf %62, %63 : vector<16x160xf32>
    %65 = arith.addf %51, %64 : vector<16x160xf32>
    %c0_36 = arith.constant 0 : index
    %c0_37 = arith.constant 0 : index
    %c8_38 = arith.constant 8 : index
    %66 = vector.load %arg2[%c0_36, %c0_37, %c8_38] : memref<1x1x176xf32, #tpu.memory_space<vmem>>, vector<1x1x160xf32>
    %67 = vector.shape_cast %66 : vector<1x1x160xf32> to vector<1x160xf32>
    %68 = vector.broadcast %59 : vector<16x1xf32> to vector<16x160xf32>
    %69 = vector.broadcast %67 : vector<1x160xf32> to vector<16x160xf32>
    %70 = arith.mulf %68, %69 : vector<16x160xf32>
    %71 = arith.addf %57, %70 : vector<16x160xf32>
    %c5 = arith.constant 5 : index
    %c0_39 = arith.constant 0 : index
    %c0_40 = arith.constant 0 : index
    %72 = vector.load %arg3[%c5, %c0_39, %c0_40] : memref<9x16x1xf32, #tpu.memory_space<vmem>>, vector<1x16x1xf32>
    %73 = vector.shape_cast %72 : vector<1x16x1xf32> to vector<16x1xf32>
    %c0_41 = arith.constant 0 : index
    %c0_42 = arith.constant 0 : index
    %c8_43 = arith.constant 8 : index
    %74 = vector.load %arg2[%c0_41, %c0_42, %c8_43] : memref<1x1x176xf32, #tpu.memory_space<vmem>>, vector<1x1x160xf32>
    %75 = vector.shape_cast %74 : vector<1x1x160xf32> to vector<1x160xf32>
    %76 = vector.broadcast %73 : vector<16x1xf32> to vector<16x160xf32>
    %77 = vector.broadcast %75 : vector<1x160xf32> to vector<16x160xf32>
    %78 = arith.mulf %76, %77 : vector<16x160xf32>
    %79 = arith.addf %65, %78 : vector<16x160xf32>
    %c0_44 = arith.constant 0 : index
    %c0_45 = arith.constant 0 : index
    %c9 = arith.constant 9 : index
    %80 = vector.load %arg1[%c0_44, %c0_45, %c9] : memref<1x1x176xf32, #tpu.memory_space<vmem>>, vector<1x1x160xf32>
    %81 = vector.shape_cast %80 : vector<1x1x160xf32> to vector<1x160xf32>
    %82 = vector.broadcast %73 : vector<16x1xf32> to vector<16x160xf32>
    %83 = vector.broadcast %81 : vector<1x160xf32> to vector<16x160xf32>
    %84 = arith.mulf %82, %83 : vector<16x160xf32>
    %85 = arith.addf %71, %84 : vector<16x160xf32>
    %c6 = arith.constant 6 : index
    %c0_46 = arith.constant 0 : index
    %c0_47 = arith.constant 0 : index
    %86 = vector.load %arg3[%c6, %c0_46, %c0_47] : memref<9x16x1xf32, #tpu.memory_space<vmem>>, vector<1x16x1xf32>
    %87 = vector.shape_cast %86 : vector<1x16x1xf32> to vector<16x1xf32>
    %c0_48 = arith.constant 0 : index
    %c0_49 = arith.constant 0 : index
    %c15 = arith.constant 15 : index
    %88 = vector.load %arg1[%c0_48, %c0_49, %c15] : memref<1x1x176xf32, #tpu.memory_space<vmem>>, vector<1x1x160xf32>
    %89 = vector.shape_cast %88 : vector<1x1x160xf32> to vector<1x160xf32>
    %90 = vector.broadcast %87 : vector<16x1xf32> to vector<16x160xf32>
    %91 = vector.broadcast %89 : vector<1x160xf32> to vector<16x160xf32>
    %92 = arith.mulf %90, %91 : vector<16x160xf32>
    %93 = arith.addf %79, %92 : vector<16x160xf32>
    %c0_50 = arith.constant 0 : index
    %c0_51 = arith.constant 0 : index
    %c15_52 = arith.constant 15 : index
    %94 = vector.load %arg2[%c0_50, %c0_51, %c15_52] : memref<1x1x176xf32, #tpu.memory_space<vmem>>, vector<1x1x160xf32>
    %95 = vector.shape_cast %94 : vector<1x1x160xf32> to vector<1x160xf32>
    %96 = vector.broadcast %87 : vector<16x1xf32> to vector<16x160xf32>
    %97 = vector.broadcast %95 : vector<1x160xf32> to vector<16x160xf32>
    %98 = arith.mulf %96, %97 : vector<16x160xf32>
    %99 = arith.addf %85, %98 : vector<16x160xf32>
    %c7_53 = arith.constant 7 : index
    %c0_54 = arith.constant 0 : index
    %c0_55 = arith.constant 0 : index
    %100 = vector.load %arg3[%c7_53, %c0_54, %c0_55] : memref<9x16x1xf32, #tpu.memory_space<vmem>>, vector<1x16x1xf32>
    %101 = vector.shape_cast %100 : vector<1x16x1xf32> to vector<16x1xf32>
    %c0_56 = arith.constant 0 : index
    %c0_57 = arith.constant 0 : index
    %c15_58 = arith.constant 15 : index
    %102 = vector.load %arg2[%c0_56, %c0_57, %c15_58] : memref<1x1x176xf32, #tpu.memory_space<vmem>>, vector<1x1x160xf32>
    %103 = vector.shape_cast %102 : vector<1x1x160xf32> to vector<1x160xf32>
    %104 = vector.broadcast %101 : vector<16x1xf32> to vector<16x160xf32>
    %105 = vector.broadcast %103 : vector<1x160xf32> to vector<16x160xf32>
    %106 = arith.mulf %104, %105 : vector<16x160xf32>
    %107 = arith.addf %93, %106 : vector<16x160xf32>
    %c0_59 = arith.constant 0 : index
    %c0_60 = arith.constant 0 : index
    %c16 = arith.constant 16 : index
    %108 = vector.load %arg1[%c0_59, %c0_60, %c16] : memref<1x1x176xf32, #tpu.memory_space<vmem>>, vector<1x1x160xf32>
    %109 = vector.shape_cast %108 : vector<1x1x160xf32> to vector<1x160xf32>
    %110 = vector.broadcast %101 : vector<16x1xf32> to vector<16x160xf32>
    %111 = vector.broadcast %109 : vector<1x160xf32> to vector<16x160xf32>
    %112 = arith.mulf %110, %111 : vector<16x160xf32>
    %113 = arith.addf %99, %112 : vector<16x160xf32>
    %c8_61 = arith.constant 8 : index
    %c0_62 = arith.constant 0 : index
    %c0_63 = arith.constant 0 : index
    %114 = vector.load %arg3[%c8_61, %c0_62, %c0_63] : memref<9x16x1xf32, #tpu.memory_space<vmem>>, vector<1x16x1xf32>
    %115 = vector.shape_cast %114 : vector<1x16x1xf32> to vector<16x1xf32>
    %c0_64 = arith.constant 0 : index
    %c0_65 = arith.constant 0 : index
    %c16_66 = arith.constant 16 : index
    %116 = vector.load %arg1[%c0_64, %c0_65, %c16_66] : memref<1x1x176xf32, #tpu.memory_space<vmem>>, vector<1x1x160xf32>
    %117 = vector.shape_cast %116 : vector<1x1x160xf32> to vector<1x160xf32>
    %118 = vector.broadcast %115 : vector<16x1xf32> to vector<16x160xf32>
    %119 = vector.broadcast %117 : vector<1x160xf32> to vector<16x160xf32>
    %120 = arith.mulf %118, %119 : vector<16x160xf32>
    %121 = arith.addf %107, %120 : vector<16x160xf32>
    %c0_67 = arith.constant 0 : index
    %c0_68 = arith.constant 0 : index
    %c16_69 = arith.constant 16 : index
    %122 = vector.load %arg2[%c0_67, %c0_68, %c16_69] : memref<1x1x176xf32, #tpu.memory_space<vmem>>, vector<1x1x160xf32>
    %123 = vector.shape_cast %122 : vector<1x1x160xf32> to vector<1x160xf32>
    %124 = vector.broadcast %115 : vector<16x1xf32> to vector<16x160xf32>
    %125 = vector.broadcast %123 : vector<1x160xf32> to vector<16x160xf32>
    %126 = arith.mulf %124, %125 : vector<16x160xf32>
    %127 = arith.addf %113, %126 : vector<16x160xf32>
    %c0_70 = arith.constant 0 : index
    %c0_71 = arith.constant 0 : index
    %128 = vector.load %arg4[%c0_70, %c0_71] : memref<16x1xf32, #tpu.memory_space<vmem>>, vector<16x1xf32>
    %129 = vector.broadcast %128 : vector<16x1xf32> to vector<16x160xf32>
    %130 = arith.addf %121, %129 : vector<16x160xf32>
    %cst_72 = arith.constant 0.000000e+00 : f32
    %131 = vector.broadcast %cst_72 : f32 to vector<16x160xf32>
    %132 = arith.maximumf %130, %131 : vector<16x160xf32>
    %c0_73 = arith.constant 0 : index
    %c0_74 = arith.constant 0 : index
    %133 = vector.load %arg15[%c0_73, %c0_74] : memref<16x160xf32, #tpu.memory_space<vmem>>, vector<16x160xf32>
    tpu.vector_store %arg15[%c0_73, %c0_74], %132 {strides = array<i32>} : memref<16x160xf32, #tpu.memory_space<vmem>>, vector<16x160xf32>,
    %c0_75 = arith.constant 0 : index
    %c0_76 = arith.constant 0 : index
    %134 = vector.load %arg4[%c0_75, %c0_76] : memref<16x1xf32, #tpu.memory_space<vmem>>, vector<16x1xf32>
    %135 = vector.broadcast %134 : vector<16x1xf32> to vector<16x160xf32>
    %136 = arith.addf %127, %135 : vector<16x160xf32>
    %cst_77 = arith.constant 0.000000e+00 : f32
    %137 = vector.broadcast %cst_77 : f32 to vector<16x160xf32>
    %138 = arith.maximumf %136, %137 : vector<16x160xf32>
    %c0_78 = arith.constant 0 : index
    %c0_79 = arith.constant 0 : index
    %139 = vector.load %arg16[%c0_78, %c0_79] : memref<16x160xf32, #tpu.memory_space<vmem>>, vector<16x160xf32>
    tpu.vector_store %arg16[%c0_78, %c0_79], %138 {strides = array<i32>} : memref<16x160xf32, #tpu.memory_space<vmem>>, vector<16x160xf32>,
    %cst_80 = arith.constant 0.000000e+00 : f32
    %140 = vector.broadcast %cst_80 : f32 to vector<16x144xf32>
    %c0_81 = arith.constant 0 : index
    %c0_82 = arith.constant 0 : index
    %c0_83 = arith.constant 0 : index
    %141 = vector.load %arg5[%c0_81, %c0_82, %c0_83] : memref<9x16x16xf32, #tpu.memory_space<vmem>>, vector<1x16x16xf32>
    %142 = vector.shape_cast %141 : vector<1x16x16xf32> to vector<16x16xf32>
    %c0_84 = arith.constant 0 : index
    %c0_85 = arith.constant 0 : index
    %143 = vector.load %arg15[%c0_84, %c0_85] : memref<16x160xf32, #tpu.memory_space<vmem>>, vector<16x144xf32>
    %cst_86 = arith.constant dense<0.000000e+00> : vector<16x144xf32>
    %144 = tpu.matmul %142, %143, %cst_86 {dimension_numbers = #tpu.dot_dimension_numbers<[1], [0], [0], [1], [0, 0, 1, 1], [], []>} : vector<16x16xf32>, vector<16x144xf32>, vector<16x144xf32> -> vector<16x144xf32>
    %145 = arith.addf %140, %144 : vector<16x144xf32>
    %c1_87 = arith.constant 1 : index
    %c0_88 = arith.constant 0 : index
    %c0_89 = arith.constant 0 : index
    %146 = vector.load %arg5[%c1_87, %c0_88, %c0_89] : memref<9x16x16xf32, #tpu.memory_space<vmem>>, vector<1x16x16xf32>
    %147 = vector.shape_cast %146 : vector<1x16x16xf32> to vector<16x16xf32>
    %c0_90 = arith.constant 0 : index
    %c0_91 = arith.constant 0 : index
    %148 = vector.load %arg16[%c0_90, %c0_91] : memref<16x160xf32, #tpu.memory_space<vmem>>, vector<16x144xf32>
    %cst_92 = arith.constant dense<0.000000e+00> : vector<16x144xf32>
    %149 = tpu.matmul %147, %148, %cst_92 {dimension_numbers = #tpu.dot_dimension_numbers<[1], [0], [0], [1], [0, 0, 1, 1], [], []>} : vector<16x16xf32>, vector<16x144xf32>, vector<16x144xf32> -> vector<16x144xf32>
    %150 = arith.addf %145, %149 : vector<16x144xf32>
    %c2_93 = arith.constant 2 : index
    %c0_94 = arith.constant 0 : index
    %c0_95 = arith.constant 0 : index
    %151 = vector.load %arg5[%c2_93, %c0_94, %c0_95] : memref<9x16x16xf32, #tpu.memory_space<vmem>>, vector<1x16x16xf32>
    %152 = vector.shape_cast %151 : vector<1x16x16xf32> to vector<16x16xf32>
    %c0_96 = arith.constant 0 : index
    %c1_97 = arith.constant 1 : index
    %153 = vector.load %arg15[%c0_96, %c1_97] : memref<16x160xf32, #tpu.memory_space<vmem>>, vector<16x144xf32>
    %cst_98 = arith.constant dense<0.000000e+00> : vector<16x144xf32>
    %154 = tpu.matmul %152, %153, %cst_98 {dimension_numbers = #tpu.dot_dimension_numbers<[1], [0], [0], [1], [0, 0, 1, 1], [], []>} : vector<16x16xf32>, vector<16x144xf32>, vector<16x144xf32> -> vector<16x144xf32>
    %155 = arith.addf %150, %154 : vector<16x144xf32>
    %c3_99 = arith.constant 3 : index
    %c0_100 = arith.constant 0 : index
    %c0_101 = arith.constant 0 : index
    %156 = vector.load %arg5[%c3_99, %c0_100, %c0_101] : memref<9x16x16xf32, #tpu.memory_space<vmem>>, vector<1x16x16xf32>
    %157 = vector.shape_cast %156 : vector<1x16x16xf32> to vector<16x16xf32>
    %c0_102 = arith.constant 0 : index
    %c7_103 = arith.constant 7 : index
    %158 = vector.load %arg16[%c0_102, %c7_103] : memref<16x160xf32, #tpu.memory_space<vmem>>, vector<16x144xf32>
    %cst_104 = arith.constant dense<0.000000e+00> : vector<16x144xf32>
    %159 = tpu.matmul %157, %158, %cst_104 {dimension_numbers = #tpu.dot_dimension_numbers<[1], [0], [0], [1], [0, 0, 1, 1], [], []>} : vector<16x16xf32>, vector<16x144xf32>, vector<16x144xf32> -> vector<16x144xf32>
    %160 = arith.addf %155, %159 : vector<16x144xf32>
    %c4_105 = arith.constant 4 : index
    %c0_106 = arith.constant 0 : index
    %c0_107 = arith.constant 0 : index
    %161 = vector.load %arg5[%c4_105, %c0_106, %c0_107] : memref<9x16x16xf32, #tpu.memory_space<vmem>>, vector<1x16x16xf32>
    %162 = vector.shape_cast %161 : vector<1x16x16xf32> to vector<16x16xf32>
    %c0_108 = arith.constant 0 : index
    %c8_109 = arith.constant 8 : index
    %163 = vector.load %arg15[%c0_108, %c8_109] : memref<16x160xf32, #tpu.memory_space<vmem>>, vector<16x144xf32>
    %cst_110 = arith.constant dense<0.000000e+00> : vector<16x144xf32>
    %164 = tpu.matmul %162, %163, %cst_110 {dimension_numbers = #tpu.dot_dimension_numbers<[1], [0], [0], [1], [0, 0, 1, 1], [], []>} : vector<16x16xf32>, vector<16x144xf32>, vector<16x144xf32> -> vector<16x144xf32>
    %165 = arith.addf %160, %164 : vector<16x144xf32>
    %c5_111 = arith.constant 5 : index
    %c0_112 = arith.constant 0 : index
    %c0_113 = arith.constant 0 : index
    %166 = vector.load %arg5[%c5_111, %c0_112, %c0_113] : memref<9x16x16xf32, #tpu.memory_space<vmem>>, vector<1x16x16xf32>
    %167 = vector.shape_cast %166 : vector<1x16x16xf32> to vector<16x16xf32>
    %c0_114 = arith.constant 0 : index
    %c8_115 = arith.constant 8 : index
    %168 = vector.load %arg16[%c0_114, %c8_115] : memref<16x160xf32, #tpu.memory_space<vmem>>, vector<16x144xf32>
    %cst_116 = arith.constant dense<0.000000e+00> : vector<16x144xf32>
    %169 = tpu.matmul %167, %168, %cst_116 {dimension_numbers = #tpu.dot_dimension_numbers<[1], [0], [0], [1], [0, 0, 1, 1], [], []>} : vector<16x16xf32>, vector<16x144xf32>, vector<16x144xf32> -> vector<16x144xf32>
    %170 = arith.addf %165, %169 : vector<16x144xf32>
    %c6_117 = arith.constant 6 : index
    %c0_118 = arith.constant 0 : index
    %c0_119 = arith.constant 0 : index
    %171 = vector.load %arg5[%c6_117, %c0_118, %c0_119] : memref<9x16x16xf32, #tpu.memory_space<vmem>>, vector<1x16x16xf32>
    %172 = vector.shape_cast %171 : vector<1x16x16xf32> to vector<16x16xf32>
    %c0_120 = arith.constant 0 : index
    %c15_121 = arith.constant 15 : index
    %173 = vector.load %arg15[%c0_120, %c15_121] : memref<16x160xf32, #tpu.memory_space<vmem>>, vector<16x144xf32>
    %cst_122 = arith.constant dense<0.000000e+00> : vector<16x144xf32>
    %174 = tpu.matmul %172, %173, %cst_122 {dimension_numbers = #tpu.dot_dimension_numbers<[1], [0], [0], [1], [0, 0, 1, 1], [], []>} : vector<16x16xf32>, vector<16x144xf32>, vector<16x144xf32> -> vector<16x144xf32>
    %175 = arith.addf %170, %174 : vector<16x144xf32>
    %c7_123 = arith.constant 7 : index
    %c0_124 = arith.constant 0 : index
    %c0_125 = arith.constant 0 : index
    %176 = vector.load %arg5[%c7_123, %c0_124, %c0_125] : memref<9x16x16xf32, #tpu.memory_space<vmem>>, vector<1x16x16xf32>
    %177 = vector.shape_cast %176 : vector<1x16x16xf32> to vector<16x16xf32>
    %c0_126 = arith.constant 0 : index
    %c15_127 = arith.constant 15 : index
    %178 = vector.load %arg16[%c0_126, %c15_127] : memref<16x160xf32, #tpu.memory_space<vmem>>, vector<16x144xf32>
    %cst_128 = arith.constant dense<0.000000e+00> : vector<16x144xf32>
    %179 = tpu.matmul %177, %178, %cst_128 {dimension_numbers = #tpu.dot_dimension_numbers<[1], [0], [0], [1], [0, 0, 1, 1], [], []>} : vector<16x16xf32>, vector<16x144xf32>, vector<16x144xf32> -> vector<16x144xf32>
    %180 = arith.addf %175, %179 : vector<16x144xf32>
    %c8_129 = arith.constant 8 : index
    %c0_130 = arith.constant 0 : index
    %c0_131 = arith.constant 0 : index
    %181 = vector.load %arg5[%c8_129, %c0_130, %c0_131] : memref<9x16x16xf32, #tpu.memory_space<vmem>>, vector<1x16x16xf32>
    %182 = vector.shape_cast %181 : vector<1x16x16xf32> to vector<16x16xf32>
    %c0_132 = arith.constant 0 : index
    %c16_133 = arith.constant 16 : index
    %183 = vector.load %arg15[%c0_132, %c16_133] : memref<16x160xf32, #tpu.memory_space<vmem>>, vector<16x144xf32>
    %cst_134 = arith.constant dense<0.000000e+00> : vector<16x144xf32>
    %184 = tpu.matmul %182, %183, %cst_134 {dimension_numbers = #tpu.dot_dimension_numbers<[1], [0], [0], [1], [0, 0, 1, 1], [], []>} : vector<16x16xf32>, vector<16x144xf32>, vector<16x144xf32> -> vector<16x144xf32>
    %185 = arith.addf %180, %184 : vector<16x144xf32>
    %c0_135 = arith.constant 0 : index
    %c0_136 = arith.constant 0 : index
    %186 = vector.load %arg6[%c0_135, %c0_136] : memref<16x1xf32, #tpu.memory_space<vmem>>, vector<16x1xf32>
    %187 = vector.broadcast %186 : vector<16x1xf32> to vector<16x144xf32>
    %188 = arith.addf %185, %187 : vector<16x144xf32>
    %cst_137 = arith.constant 0.000000e+00 : f32
    %189 = vector.broadcast %cst_137 : f32 to vector<16x144xf32>
    %190 = arith.maximumf %188, %189 : vector<16x144xf32>
    %c0_138 = arith.constant 0 : index
    %c0_139 = arith.constant 0 : index
    %191 = vector.load %arg13[%c0_138, %c0_139] : memref<1x144xf32, #tpu.memory_space<vmem>>, vector<1x144xf32>
    %192 = vector.broadcast %191 : vector<1x144xf32> to vector<16x144xf32>
    %193 = arith.mulf %190, %192 : vector<16x144xf32>
    %cst_140 = arith.constant 0.000000e+00 : f32
    %194 = vector.broadcast %cst_140 : f32 to vector<16x176xf32>
    %c0_141 = arith.constant 0 : index
    %c0_142 = arith.constant 0 : index
    %195 = vector.load %arg17[%c0_141, %c0_142] : memref<16x176xf32, #tpu.memory_space<vmem>>, vector<16x176xf32>
    tpu.vector_store %arg17[%c0_141, %c0_142], %194 {strides = array<i32>} : memref<16x176xf32, #tpu.memory_space<vmem>>, vector<16x176xf32>,
    %c0_143 = arith.constant 0 : index
    %c16_144 = arith.constant 16 : index
    %196 = vector.load %arg17[%c0_143, %c16_144] : memref<16x176xf32, #tpu.memory_space<vmem>>, vector<16x144xf32>
    tpu.vector_store %arg17[%c0_143, %c16_144], %193 {strides = array<i32>} : memref<16x176xf32, #tpu.memory_space<vmem>>, vector<16x144xf32>,
    %cst_145 = arith.constant 0.000000e+00 : f32
    %197 = vector.broadcast %cst_145 : f32 to vector<16x144xf32>
    %c0_146 = arith.constant 0 : index
    %c0_147 = arith.constant 0 : index
    %c0_148 = arith.constant 0 : index
    %198 = vector.load %arg7[%c0_146, %c0_147, %c0_148] : memref<9x16x16xf32, #tpu.memory_space<vmem>>, vector<1x16x16xf32>
    %199 = vector.shape_cast %198 : vector<1x16x16xf32> to vector<16x16xf32>
    %c0_149 = arith.constant 0 : index
    %c0_150 = arith.constant 0 : index
    %200 = vector.load %arg17[%c0_149, %c0_150] : memref<16x176xf32, #tpu.memory_space<vmem>>, vector<16x144xf32>
    %cst_151 = arith.constant dense<0.000000e+00> : vector<16x144xf32>
    %201 = tpu.matmul %199, %200, %cst_151 {dimension_numbers = #tpu.dot_dimension_numbers<[1], [0], [0], [1], [0, 0, 1, 1], [], []>} : vector<16x16xf32>, vector<16x144xf32>, vector<16x144xf32> -> vector<16x144xf32>
    %202 = arith.addf %197, %201 : vector<16x144xf32>
    %c1_152 = arith.constant 1 : index
    %c0_153 = arith.constant 0 : index
    %c0_154 = arith.constant 0 : index
    %203 = vector.load %arg7[%c1_152, %c0_153, %c0_154] : memref<9x16x16xf32, #tpu.memory_space<vmem>>, vector<1x16x16xf32>
    %204 = vector.shape_cast %203 : vector<1x16x16xf32> to vector<16x16xf32>
    %c0_155 = arith.constant 0 : index
    %c1_156 = arith.constant 1 : index
    %205 = vector.load %arg17[%c0_155, %c1_156] : memref<16x176xf32, #tpu.memory_space<vmem>>, vector<16x144xf32>
    %cst_157 = arith.constant dense<0.000000e+00> : vector<16x144xf32>
    %206 = tpu.matmul %204, %205, %cst_157 {dimension_numbers = #tpu.dot_dimension_numbers<[1], [0], [0], [1], [0, 0, 1, 1], [], []>} : vector<16x16xf32>, vector<16x144xf32>, vector<16x144xf32> -> vector<16x144xf32>
    %207 = arith.addf %202, %206 : vector<16x144xf32>
    %c2_158 = arith.constant 2 : index
    %c0_159 = arith.constant 0 : index
    %c0_160 = arith.constant 0 : index
    %208 = vector.load %arg7[%c2_158, %c0_159, %c0_160] : memref<9x16x16xf32, #tpu.memory_space<vmem>>, vector<1x16x16xf32>
    %209 = vector.shape_cast %208 : vector<1x16x16xf32> to vector<16x16xf32>
    %c0_161 = arith.constant 0 : index
    %c2_162 = arith.constant 2 : index
    %210 = vector.load %arg17[%c0_161, %c2_162] : memref<16x176xf32, #tpu.memory_space<vmem>>, vector<16x144xf32>
    %cst_163 = arith.constant dense<0.000000e+00> : vector<16x144xf32>
    %211 = tpu.matmul %209, %210, %cst_163 {dimension_numbers = #tpu.dot_dimension_numbers<[1], [0], [0], [1], [0, 0, 1, 1], [], []>} : vector<16x16xf32>, vector<16x144xf32>, vector<16x144xf32> -> vector<16x144xf32>
    %212 = arith.addf %207, %211 : vector<16x144xf32>
    %c3_164 = arith.constant 3 : index
    %c0_165 = arith.constant 0 : index
    %c0_166 = arith.constant 0 : index
    %213 = vector.load %arg7[%c3_164, %c0_165, %c0_166] : memref<9x16x16xf32, #tpu.memory_space<vmem>>, vector<1x16x16xf32>
    %214 = vector.shape_cast %213 : vector<1x16x16xf32> to vector<16x16xf32>
    %c0_167 = arith.constant 0 : index
    %c15_168 = arith.constant 15 : index
    %215 = vector.load %arg17[%c0_167, %c15_168] : memref<16x176xf32, #tpu.memory_space<vmem>>, vector<16x144xf32>
    %cst_169 = arith.constant dense<0.000000e+00> : vector<16x144xf32>
    %216 = tpu.matmul %214, %215, %cst_169 {dimension_numbers = #tpu.dot_dimension_numbers<[1], [0], [0], [1], [0, 0, 1, 1], [], []>} : vector<16x16xf32>, vector<16x144xf32>, vector<16x144xf32> -> vector<16x144xf32>
    %217 = arith.addf %212, %216 : vector<16x144xf32>
    %c4_170 = arith.constant 4 : index
    %c0_171 = arith.constant 0 : index
    %c0_172 = arith.constant 0 : index
    %218 = vector.load %arg7[%c4_170, %c0_171, %c0_172] : memref<9x16x16xf32, #tpu.memory_space<vmem>>, vector<1x16x16xf32>
    %219 = vector.shape_cast %218 : vector<1x16x16xf32> to vector<16x16xf32>
    %c0_173 = arith.constant 0 : index
    %c16_174 = arith.constant 16 : index
    %220 = vector.load %arg17[%c0_173, %c16_174] : memref<16x176xf32, #tpu.memory_space<vmem>>, vector<16x144xf32>
    %cst_175 = arith.constant dense<0.000000e+00> : vector<16x144xf32>
    %221 = tpu.matmul %219, %220, %cst_175 {dimension_numbers = #tpu.dot_dimension_numbers<[1], [0], [0], [1], [0, 0, 1, 1], [], []>} : vector<16x16xf32>, vector<16x144xf32>, vector<16x144xf32> -> vector<16x144xf32>
    %222 = arith.addf %217, %221 : vector<16x144xf32>
    %c5_176 = arith.constant 5 : index
    %c0_177 = arith.constant 0 : index
    %c0_178 = arith.constant 0 : index
    %223 = vector.load %arg7[%c5_176, %c0_177, %c0_178] : memref<9x16x16xf32, #tpu.memory_space<vmem>>, vector<1x16x16xf32>
    %224 = vector.shape_cast %223 : vector<1x16x16xf32> to vector<16x16xf32>
    %c0_179 = arith.constant 0 : index
    %c17 = arith.constant 17 : index
    %225 = vector.load %arg17[%c0_179, %c17] : memref<16x176xf32, #tpu.memory_space<vmem>>, vector<16x144xf32>
    %cst_180 = arith.constant dense<0.000000e+00> : vector<16x144xf32>
    %226 = tpu.matmul %224, %225, %cst_180 {dimension_numbers = #tpu.dot_dimension_numbers<[1], [0], [0], [1], [0, 0, 1, 1], [], []>} : vector<16x16xf32>, vector<16x144xf32>, vector<16x144xf32> -> vector<16x144xf32>
    %227 = arith.addf %222, %226 : vector<16x144xf32>
    %c6_181 = arith.constant 6 : index
    %c0_182 = arith.constant 0 : index
    %c0_183 = arith.constant 0 : index
    %228 = vector.load %arg7[%c6_181, %c0_182, %c0_183] : memref<9x16x16xf32, #tpu.memory_space<vmem>>, vector<1x16x16xf32>
    %229 = vector.shape_cast %228 : vector<1x16x16xf32> to vector<16x16xf32>
    %c0_184 = arith.constant 0 : index
    %c30 = arith.constant 30 : index
    %230 = vector.load %arg17[%c0_184, %c30] : memref<16x176xf32, #tpu.memory_space<vmem>>, vector<16x144xf32>
    %cst_185 = arith.constant dense<0.000000e+00> : vector<16x144xf32>
    %231 = tpu.matmul %229, %230, %cst_185 {dimension_numbers = #tpu.dot_dimension_numbers<[1], [0], [0], [1], [0, 0, 1, 1], [], []>} : vector<16x16xf32>, vector<16x144xf32>, vector<16x144xf32> -> vector<16x144xf32>
    %232 = arith.addf %227, %231 : vector<16x144xf32>
    %c7_186 = arith.constant 7 : index
    %c0_187 = arith.constant 0 : index
    %c0_188 = arith.constant 0 : index
    %233 = vector.load %arg7[%c7_186, %c0_187, %c0_188] : memref<9x16x16xf32, #tpu.memory_space<vmem>>, vector<1x16x16xf32>
    %234 = vector.shape_cast %233 : vector<1x16x16xf32> to vector<16x16xf32>
    %c0_189 = arith.constant 0 : index
    %c31 = arith.constant 31 : index
    %235 = vector.load %arg17[%c0_189, %c31] : memref<16x176xf32, #tpu.memory_space<vmem>>, vector<16x144xf32>
    %cst_190 = arith.constant dense<0.000000e+00> : vector<16x144xf32>
    %236 = tpu.matmul %234, %235, %cst_190 {dimension_numbers = #tpu.dot_dimension_numbers<[1], [0], [0], [1], [0, 0, 1, 1], [], []>} : vector<16x16xf32>, vector<16x144xf32>, vector<16x144xf32> -> vector<16x144xf32>
    %237 = arith.addf %232, %236 : vector<16x144xf32>
    %c8_191 = arith.constant 8 : index
    %c0_192 = arith.constant 0 : index
    %c0_193 = arith.constant 0 : index
    %238 = vector.load %arg7[%c8_191, %c0_192, %c0_193] : memref<9x16x16xf32, #tpu.memory_space<vmem>>, vector<1x16x16xf32>
    %239 = vector.shape_cast %238 : vector<1x16x16xf32> to vector<16x16xf32>
    %c0_194 = arith.constant 0 : index
    %c32 = arith.constant 32 : index
    %240 = vector.load %arg17[%c0_194, %c32] : memref<16x176xf32, #tpu.memory_space<vmem>>, vector<16x144xf32>
    %cst_195 = arith.constant dense<0.000000e+00> : vector<16x144xf32>
    %241 = tpu.matmul %239, %240, %cst_195 {dimension_numbers = #tpu.dot_dimension_numbers<[1], [0], [0], [1], [0, 0, 1, 1], [], []>} : vector<16x16xf32>, vector<16x144xf32>, vector<16x144xf32> -> vector<16x144xf32>
    %242 = arith.addf %237, %241 : vector<16x144xf32>
    %c0_196 = arith.constant 0 : index
    %c0_197 = arith.constant 0 : index
    %243 = vector.load %arg8[%c0_196, %c0_197] : memref<16x1xf32, #tpu.memory_space<vmem>>, vector<16x1xf32>
    %244 = vector.broadcast %243 : vector<16x1xf32> to vector<16x144xf32>
    %245 = arith.addf %242, %244 : vector<16x144xf32>
    %cst_198 = arith.constant 0.000000e+00 : f32
    %246 = vector.broadcast %cst_198 : f32 to vector<16x144xf32>
    %247 = arith.maximumf %245, %246 : vector<16x144xf32>
    %cst_199 = arith.constant 0.000000e+00 : f32
    %248 = vector.broadcast %cst_199 : f32 to vector<1x128xf32>
    %249 = vector.extract_strided_slice %247 {offsets = [0, 0], sizes = [1, 144], strides = [1, 1]} : vector<16x144xf32> to vector<1x144xf32>
    %c0_200 = arith.constant 0 : index
    %c0_201 = arith.constant 0 : index
    %c0_202 = arith.constant 0 : index
    %250 = vector.load %arg9[%c0_200, %c0_201, %c0_202] : memref<10x144x128xf32, #tpu.memory_space<vmem>>, vector<1x144x128xf32>
    %251 = vector.shape_cast %250 : vector<1x144x128xf32> to vector<144x128xf32>
    %cst_203 = arith.constant dense<0.000000e+00> : vector<1x128xf32>
    %252 = tpu.matmul %249, %251, %cst_203 {dimension_numbers = #tpu.dot_dimension_numbers<[1], [0], [0], [1], [0, 0, 1, 1], [], []>} : vector<1x144xf32>, vector<144x128xf32>, vector<1x128xf32> -> vector<1x128xf32>
    %253 = arith.addf %248, %252 : vector<1x128xf32>
    %254 = vector.extract_strided_slice %247 {offsets = [1, 0], sizes = [1, 144], strides = [1, 1]} : vector<16x144xf32> to vector<1x144xf32>
    %c1_204 = arith.constant 1 : index
    %c0_205 = arith.constant 0 : index
    %c0_206 = arith.constant 0 : index
    %255 = vector.load %arg9[%c1_204, %c0_205, %c0_206] : memref<10x144x128xf32, #tpu.memory_space<vmem>>, vector<1x144x128xf32>
    %256 = vector.shape_cast %255 : vector<1x144x128xf32> to vector<144x128xf32>
    %cst_207 = arith.constant dense<0.000000e+00> : vector<1x128xf32>
    %257 = tpu.matmul %254, %256, %cst_207 {dimension_numbers = #tpu.dot_dimension_numbers<[1], [0], [0], [1], [0, 0, 1, 1], [], []>} : vector<1x144xf32>, vector<144x128xf32>, vector<1x128xf32> -> vector<1x128xf32>
    %258 = arith.addf %253, %257 : vector<1x128xf32>
    %259 = vector.extract_strided_slice %247 {offsets = [2, 0], sizes = [1, 144], strides = [1, 1]} : vector<16x144xf32> to vector<1x144xf32>
    %c2_208 = arith.constant 2 : index
    %c0_209 = arith.constant 0 : index
    %c0_210 = arith.constant 0 : index
    %260 = vector.load %arg9[%c2_208, %c0_209, %c0_210] : memref<10x144x128xf32, #tpu.memory_space<vmem>>, vector<1x144x128xf32>
    %261 = vector.shape_cast %260 : vector<1x144x128xf32> to vector<144x128xf32>
    %cst_211 = arith.constant dense<0.000000e+00> : vector<1x128xf32>
    %262 = tpu.matmul %259, %261, %cst_211 {dimension_numbers = #tpu.dot_dimension_numbers<[1], [0], [0], [1], [0, 0, 1, 1], [], []>} : vector<1x144xf32>, vector<144x128xf32>, vector<1x128xf32> -> vector<1x128xf32>
    %263 = arith.addf %258, %262 : vector<1x128xf32>
    %264 = vector.extract_strided_slice %247 {offsets = [3, 0], sizes = [1, 144], strides = [1, 1]} : vector<16x144xf32> to vector<1x144xf32>
    %c3_212 = arith.constant 3 : index
    %c0_213 = arith.constant 0 : index
    %c0_214 = arith.constant 0 : index
    %265 = vector.load %arg9[%c3_212, %c0_213, %c0_214] : memref<10x144x128xf32, #tpu.memory_space<vmem>>, vector<1x144x128xf32>
    %266 = vector.shape_cast %265 : vector<1x144x128xf32> to vector<144x128xf32>
    %cst_215 = arith.constant dense<0.000000e+00> : vector<1x128xf32>
    %267 = tpu.matmul %264, %266, %cst_215 {dimension_numbers = #tpu.dot_dimension_numbers<[1], [0], [0], [1], [0, 0, 1, 1], [], []>} : vector<1x144xf32>, vector<144x128xf32>, vector<1x128xf32> -> vector<1x128xf32>
    %268 = arith.addf %263, %267 : vector<1x128xf32>
    %269 = vector.extract_strided_slice %247 {offsets = [4, 0], sizes = [1, 144], strides = [1, 1]} : vector<16x144xf32> to vector<1x144xf32>
    %c4_216 = arith.constant 4 : index
    %c0_217 = arith.constant 0 : index
    %c0_218 = arith.constant 0 : index
    %270 = vector.load %arg9[%c4_216, %c0_217, %c0_218] : memref<10x144x128xf32, #tpu.memory_space<vmem>>, vector<1x144x128xf32>
    %271 = vector.shape_cast %270 : vector<1x144x128xf32> to vector<144x128xf32>
    %cst_219 = arith.constant dense<0.000000e+00> : vector<1x128xf32>
    %272 = tpu.matmul %269, %271, %cst_219 {dimension_numbers = #tpu.dot_dimension_numbers<[1], [0], [0], [1], [0, 0, 1, 1], [], []>} : vector<1x144xf32>, vector<144x128xf32>, vector<1x128xf32> -> vector<1x128xf32>
    %273 = arith.addf %268, %272 : vector<1x128xf32>
    %274 = vector.extract_strided_slice %247 {offsets = [5, 0], sizes = [1, 144], strides = [1, 1]} : vector<16x144xf32> to vector<1x144xf32>
    %c5_220 = arith.constant 5 : index
    %c0_221 = arith.constant 0 : index
    %c0_222 = arith.constant 0 : index
    %275 = vector.load %arg9[%c5_220, %c0_221, %c0_222] : memref<10x144x128xf32, #tpu.memory_space<vmem>>, vector<1x144x128xf32>
    %276 = vector.shape_cast %275 : vector<1x144x128xf32> to vector<144x128xf32>
    %cst_223 = arith.constant dense<0.000000e+00> : vector<1x128xf32>
    %277 = tpu.matmul %274, %276, %cst_223 {dimension_numbers = #tpu.dot_dimension_numbers<[1], [0], [0], [1], [0, 0, 1, 1], [], []>} : vector<1x144xf32>, vector<144x128xf32>, vector<1x128xf32> -> vector<1x128xf32>
    %278 = arith.addf %273, %277 : vector<1x128xf32>
    %279 = vector.extract_strided_slice %247 {offsets = [6, 0], sizes = [1, 144], strides = [1, 1]} : vector<16x144xf32> to vector<1x144xf32>
    %c6_224 = arith.constant 6 : index
    %c0_225 = arith.constant 0 : index
    %c0_226 = arith.constant 0 : index
    %280 = vector.load %arg9[%c6_224, %c0_225, %c0_226] : memref<10x144x128xf32, #tpu.memory_space<vmem>>, vector<1x144x128xf32>
    %281 = vector.shape_cast %280 : vector<1x144x128xf32> to vector<144x128xf32>
    %cst_227 = arith.constant dense<0.000000e+00> : vector<1x128xf32>
    %282 = tpu.matmul %279, %281, %cst_227 {dimension_numbers = #tpu.dot_dimension_numbers<[1], [0], [0], [1], [0, 0, 1, 1], [], []>} : vector<1x144xf32>, vector<144x128xf32>, vector<1x128xf32> -> vector<1x128xf32>
    %283 = arith.addf %278, %282 : vector<1x128xf32>
    %284 = vector.extract_strided_slice %247 {offsets = [7, 0], sizes = [1, 144], strides = [1, 1]} : vector<16x144xf32> to vector<1x144xf32>
    %c7_228 = arith.constant 7 : index
    %c0_229 = arith.constant 0 : index
    %c0_230 = arith.constant 0 : index
    %285 = vector.load %arg9[%c7_228, %c0_229, %c0_230] : memref<10x144x128xf32, #tpu.memory_space<vmem>>, vector<1x144x128xf32>
    %286 = vector.shape_cast %285 : vector<1x144x128xf32> to vector<144x128xf32>
    %cst_231 = arith.constant dense<0.000000e+00> : vector<1x128xf32>
    %287 = tpu.matmul %284, %286, %cst_231 {dimension_numbers = #tpu.dot_dimension_numbers<[1], [0], [0], [1], [0, 0, 1, 1], [], []>} : vector<1x144xf32>, vector<144x128xf32>, vector<1x128xf32> -> vector<1x128xf32>
    %288 = arith.addf %283, %287 : vector<1x128xf32>
    %289 = vector.extract_strided_slice %247 {offsets = [8, 0], sizes = [1, 144], strides = [1, 1]} : vector<16x144xf32> to vector<1x144xf32>
    %c8_232 = arith.constant 8 : index
    %c0_233 = arith.constant 0 : index
    %c0_234 = arith.constant 0 : index
    %290 = vector.load %arg9[%c8_232, %c0_233, %c0_234] : memref<10x144x128xf32, #tpu.memory_space<vmem>>, vector<1x144x128xf32>
    %291 = vector.shape_cast %290 : vector<1x144x128xf32> to vector<144x128xf32>
    %cst_235 = arith.constant dense<0.000000e+00> : vector<1x128xf32>
    %292 = tpu.matmul %289, %291, %cst_235 {dimension_numbers = #tpu.dot_dimension_numbers<[1], [0], [0], [1], [0, 0, 1, 1], [], []>} : vector<1x144xf32>, vector<144x128xf32>, vector<1x128xf32> -> vector<1x128xf32>
    %293 = arith.addf %288, %292 : vector<1x128xf32>
    %294 = vector.extract_strided_slice %247 {offsets = [9, 0], sizes = [1, 144], strides = [1, 1]} : vector<16x144xf32> to vector<1x144xf32>
    %c9_236 = arith.constant 9 : index
    %c0_237 = arith.constant 0 : index
    %c0_238 = arith.constant 0 : index
    %295 = vector.load %arg9[%c9_236, %c0_237, %c0_238] : memref<10x144x128xf32, #tpu.memory_space<vmem>>, vector<1x144x128xf32>
    %296 = vector.shape_cast %295 : vector<1x144x128xf32> to vector<144x128xf32>
    %cst_239 = arith.constant dense<0.000000e+00> : vector<1x128xf32>
    %297 = tpu.matmul %294, %296, %cst_239 {dimension_numbers = #tpu.dot_dimension_numbers<[1], [0], [0], [1], [0, 0, 1, 1], [], []>} : vector<1x144xf32>, vector<144x128xf32>, vector<1x128xf32> -> vector<1x128xf32>
    %298 = arith.addf %293, %297 : vector<1x128xf32>
    %c0_240 = arith.constant 0 : index
    %c0_241 = arith.constant 0 : index
    %299 = vector.load %arg10[%c0_240, %c0_241] : memref<1x128xf32, #tpu.memory_space<vmem>>, vector<1x128xf32>
    %300 = arith.addf %298, %299 : vector<1x128xf32>
    %c0_242 = arith.constant 0 : index
    %c0_243 = arith.constant 0 : index
    %301 = vector.load %arg11[%c0_242, %c0_243] : memref<128x32xf32, #tpu.memory_space<vmem>>, vector<128x32xf32>
    %cst_244 = arith.constant dense<0.000000e+00> : vector<1x32xf32>
    %302 = tpu.matmul %300, %301, %cst_244 {dimension_numbers = #tpu.dot_dimension_numbers<[1], [0], [0], [1], [0, 0, 1, 1], [], []>} : vector<1x128xf32>, vector<128x32xf32>, vector<1x32xf32> -> vector<1x32xf32>
    %c0_245 = arith.constant 0 : index
    %c0_246 = arith.constant 0 : index
    %303 = vector.load %arg12[%c0_245, %c0_246] : memref<1x32xf32, #tpu.memory_space<vmem>>, vector<1x32xf32>
    %304 = arith.addf %302, %303 : vector<1x32xf32>
    %305 = arith.negf %304 : vector<1x32xf32>
    %306 = math.exp %305 : vector<1x32xf32>
    %cst_247 = arith.constant 1.000000e+00 : f32
    %307 = vector.broadcast %cst_247 : f32 to vector<1x32xf32>
    %308 = arith.addf %307, %306 : vector<1x32xf32>
    %309 = arith.divf %307, %308 : vector<1x32xf32>
    %c0_248 = arith.constant 0 : index
    %c0_249 = arith.constant 0 : index
    %c0_250 = arith.constant 0 : index
    %310 = vector.load %arg14[%c0_248, %c0_249, %c0_250] : memref<1x1x32xf32, #tpu.memory_space<vmem>>, vector<1x1x32xf32>
    %311 = vector.shape_cast %310 : vector<1x1x32xf32> to vector<1x32xf32>
    %312 = vector.shape_cast %309 : vector<1x32xf32> to vector<1x1x32xf32>
    tpu.vector_store %arg14[%c0_248, %c0_249, %c0_250], %312 {strides = array<i32>} : memref<1x1x32xf32, #tpu.memory_space<vmem>>, vector<1x1x32xf32>,
    return
  }
  func.func @transform_0(%arg0: i32) -> (i32, i32, i32) {
    %c0_i32 = arith.constant 0 : i32
    %c0_i32_0 = arith.constant 0 : i32
    %c0_i32_1 = arith.constant 0 : i32
    return %arg0, %c0_i32, %c0_i32_0 : i32, i32, i32
  }
  func.func @transform_1(%arg0: i32) -> (i32, i32, i32) {
    %c0_i32 = arith.constant 0 : i32
    %c0_i32_0 = arith.constant 0 : i32
    %c0_i32_1 = arith.constant 0 : i32
    return %arg0, %c0_i32, %c0_i32_0 : i32, i32, i32
  }
  func.func @transform_2(%arg0: i32) -> (i32, i32, i32) {
    %c0_i32 = arith.constant 0 : i32
    %c0_i32_0 = arith.constant 0 : i32
    %c0_i32_1 = arith.constant 0 : i32
    %c0_i32_2 = arith.constant 0 : i32
    return %c0_i32, %c0_i32_0, %c0_i32_1 : i32, i32, i32
  }
  func.func @transform_3(%arg0: i32) -> (i32, i32) {
    %c0_i32 = arith.constant 0 : i32
    %c0_i32_0 = arith.constant 0 : i32
    %c0_i32_1 = arith.constant 0 : i32
    return %c0_i32, %c0_i32_0 : i32, i32
  }
  func.func @transform_4(%arg0: i32) -> (i32, i32, i32) {
    %c0_i32 = arith.constant 0 : i32
    %c0_i32_0 = arith.constant 0 : i32
    %c0_i32_1 = arith.constant 0 : i32
    %c0_i32_2 = arith.constant 0 : i32
    return %c0_i32, %c0_i32_0, %c0_i32_1 : i32, i32, i32
  }
  func.func @transform_5(%arg0: i32) -> (i32, i32) {
    %c0_i32 = arith.constant 0 : i32
    %c0_i32_0 = arith.constant 0 : i32
    %c0_i32_1 = arith.constant 0 : i32
    return %c0_i32, %c0_i32_0 : i32, i32
  }
  func.func @transform_6(%arg0: i32) -> (i32, i32, i32) {
    %c0_i32 = arith.constant 0 : i32
    %c0_i32_0 = arith.constant 0 : i32
    %c0_i32_1 = arith.constant 0 : i32
    %c0_i32_2 = arith.constant 0 : i32
    return %c0_i32, %c0_i32_0, %c0_i32_1 : i32, i32, i32
  }
  func.func @transform_7(%arg0: i32) -> (i32, i32) {
    %c0_i32 = arith.constant 0 : i32
    %c0_i32_0 = arith.constant 0 : i32
    %c0_i32_1 = arith.constant 0 : i32
    return %c0_i32, %c0_i32_0 : i32, i32
  }
  func.func @transform_8(%arg0: i32) -> (i32, i32, i32) {
    %c0_i32 = arith.constant 0 : i32
    %c0_i32_0 = arith.constant 0 : i32
    %c0_i32_1 = arith.constant 0 : i32
    %c0_i32_2 = arith.constant 0 : i32
    return %c0_i32, %c0_i32_0, %c0_i32_1 : i32, i32, i32
  }
  func.func @transform_9(%arg0: i32) -> (i32, i32) {
    %c0_i32 = arith.constant 0 : i32
    %c0_i32_0 = arith.constant 0 : i32
    %c0_i32_1 = arith.constant 0 : i32
    return %c0_i32, %c0_i32_0 : i32, i32
  }
  func.func @transform_10(%arg0: i32) -> (i32, i32) {
    %c0_i32 = arith.constant 0 : i32
    %c0_i32_0 = arith.constant 0 : i32
    %c0_i32_1 = arith.constant 0 : i32
    return %c0_i32, %c0_i32_0 : i32, i32
  }
  func.func @transform_11(%arg0: i32) -> (i32, i32) {
    %c0_i32 = arith.constant 0 : i32
    %c0_i32_0 = arith.constant 0 : i32
    %c0_i32_1 = arith.constant 0 : i32
    return %c0_i32, %c0_i32_0 : i32, i32
  }
  func.func @transform_12(%arg0: i32) -> (i32, i32) {
    %c0_i32 = arith.constant 0 : i32
    %c0_i32_0 = arith.constant 0 : i32
    %c0_i32_1 = arith.constant 0 : i32
    return %c0_i32, %c0_i32_0 : i32, i32
  }
  func.func @transform_13(%arg0: i32) -> (i32, i32, i32) {
    %c0_i32 = arith.constant 0 : i32
    %c0_i32_0 = arith.constant 0 : i32
    %c0_i32_1 = arith.constant 0 : i32
    return %arg0, %c0_i32, %c0_i32_0 : i32, i32, i32
  }
}

</mosaic_0001>

<llo_original>
// kernel: cnn2_forward.1
$region0: #{cnn2_forward.1}
  #allocation0 [shape = 'u32[]', space=smem, size = 0x4, offset = 0x4, fixed_abs, tag = 'smem constant byte address 0x4 - core index']
  #allocation1 [shape = 'u32[72,128]{1,0:T(1,128)}', space=vmem, size = 0x9000, scoped, tag = 'internal scratch']
  #allocation2 [shape = 'f32[16,160]{1,0:T(8,128)}', space=vmem, size = 0x4000, scoped, tag = 'scratch operand']
  #allocation3 [shape = 'f32[16,160]{1,0:T(8,128)}', space=vmem, size = 0x4000, scoped, tag = 'scratch operand']
  #allocation4 [shape = 'f32[16,176]{1,0:T(8,128)}', space=vmem, size = 0x4000, scoped, tag = 'scratch operand']
  %s0 = inlined_call_operand.vmem [shape: f32[2,1,176], index: 0, kind: input, shape index: {}]
  %s1 = inlined_call_operand.vmem [shape: f32[2,1,176], index: 1, kind: input, shape index: {}]
  %s2 = inlined_call_operand.vmem [shape: f32[9,16,1], index: 2, kind: input, shape index: {}]
  %s3 = inlined_call_operand.vmem [shape: f32[16,1], index: 3, kind: input, shape index: {}]
  %s4 = inlined_call_operand.vmem [shape: f32[9,16,16], index: 4, kind: input, shape index: {}]
  %s5 = inlined_call_operand.vmem [shape: f32[16,1], index: 5, kind: input, shape index: {}]
  %s6 = inlined_call_operand.vmem [shape: f32[9,16,16], index: 6, kind: input, shape index: {}]
  %s7 = inlined_call_operand.vmem [shape: f32[16,1], index: 7, kind: input, shape index: {}]
  %s8 = inlined_call_operand.hbm [shape: f32[10,144,128], index: 8, kind: input, shape index: {}]
  %s9 = inlined_call_operand.vmem [shape: f32[1,128], index: 9, kind: input, shape index: {}]
  %s10 = inlined_call_operand.vmem [shape: f32[128,32], index: 10, kind: input, shape index: {}]
  %s11 = inlined_call_operand.vmem [shape: f32[1,32], index: 11, kind: input, shape index: {}]
  %s12 = inlined_call_operand.vmem [shape: f32[1,144], index: 12, kind: input, shape index: {}]
  %s13 = inlined_call_operand.hbm [shape: f32[2,1,32], index: 13, kind: output, shape index: {}]
  %s14 = sld [smem:[#allocation0]]
  $region89: #{cnn2_forward.1} parent=0
    _
  %s16 = ssub.s32 1, %s14
  %s17 = scalar_select 0, %s16, %s14
  $region1: #{cnn2_forward.1} parent=0
    #allocation5 [shape = 'u8[737280]{0}', space=vmem, size = 0xb4000, scoped, tag = 'input window, operand 8, single buffered']
    #allocation6 [shape = 's32[2]{0}', space=sflag, size = 0x8, scoped, tag = 'scoped memory for cnn2_forward.1']
    #allocation7 [shape = 's32[2]{0}', space=sflag, size = 0x8, scoped, tag = 'scoped memory for cnn2_forward.1']
    #allocation8 [shape = 'u8[1024]{0}', space=vmem, size = 0x400, scoped, tag = 'output window, operand 0']
    %18 = vsyncpa [#allocation6], 0
    %19 = vsyncpa [#allocation7], 0
    %s20 = scalar_lea.sflag [#allocation7], 1
    %21 = vsyncpa %s20, 0
    loop: start=0, step=1, limit=4
    $region2: #{cnn2_forward.1} parent=1 // loop_pre_header
      _
    $region3: #{cnn2_forward.1} parent=1 // loop_header
      %s23 = sphi 0, %s27
      %p24 = scmp.ge.s32.totalorder %s23, 4
      %s33 = sphi 0, %s35
      %s36 = sphi 0, %s33
      %s37 = sphi 0, %s36
      %s53 = sphi 0, %s37
      %s59 = sphi 0, %s61
      %s62 = sphi 0, %s59
      %s63 = sphi 0, %s62
      %s79 = sphi 0, %s63
      %s83 = sphi 0, %s83
      %s85 = sphi 0, %s83
      %s86 = sphi 0, %s85
      %s100 = sphi 0, %s86
      %s104 = sphi 0, %s104
      %s106 = sphi 0, %s104
      %s107 = sphi 0, %s106
      %s121 = sphi 0, %s107
      %s125 = sphi 0, %s125
      %s127 = sphi 0, %s125
      %s128 = sphi 0, %s127
      %s142 = sphi 0, %s128
      %s146 = sphi 0, %s146
      %s148 = sphi 0, %s146
      %s149 = sphi 0, %s148
      %s163 = sphi 0, %s149
      %s167 = sphi 0, %s167
      %s169 = sphi 0, %s167
      %s170 = sphi 0, %s169
      %s184 = sphi 0, %s170
      %s188 = sphi 0, %s188
      %s190 = sphi 0, %s188
      %s191 = sphi 0, %s190
      %s205 = sphi 0, %s191
      %s209 = sphi 0, %s209
      %s211 = sphi 0, %s209
      %s212 = sphi 0, %s211
      %s226 = sphi 0, %s212
      %s230 = sphi 0, %s230
      %s232 = sphi 0, %s230
      %s233 = sphi 0, %s232
      %s247 = sphi 0, %s233
      %s251 = sphi 0, %s251
      %s253 = sphi 0, %s251
      %s254 = sphi 0, %s253
      %s268 = sphi 0, %s254
      %s272 = sphi 0, %s272
      %s274 = sphi 0, %s272
      %s275 = sphi 0, %s274
      %s289 = sphi 0, %s275
      %s293 = sphi 0, %s293
      %s295 = sphi 0, %s293
      %s296 = sphi 0, %s295
      %s310 = sphi 0, %s296
      %s316 = sphi 0, %s318
      %s319 = sphi 0, %s316
      %s320 = sphi 0, %s319
      %s336 = sphi 0, %s320
    $region4: #{cnn2_forward.1} parent=1 // loop_header_branch
      %26 = sbr.rel (%p24) target = $region8
    $region5: #{cnn2_forward.1} parent=1 // loop_body
      %s28 = ssub.s32 %s23, 1
      %s29 = ssub.s32 %s23, 2
      %s30 = sadd.s32 %s23, 1
      %s31 = ssub.s32 %s23, %s30
      %p32 = scmp.eq.s32.totalorder %s31, 0
      %s34 = sadd.s32 %s33, 1
      %s35 = scalar_select %p32, %s33, %s34
      %p38 = pneg %p32
      %p39 = scmp.eq.s32.totalorder %s23, 1
      %p40 = por %p38, %p39
      %p41 = scmp.ne.s32.totalorder %s33, %s36
      %p42 = scmp.eq.s32.totalorder %s23, 0
      %p43 = por %p41, %p42
      %p44 = scmp.ne.s32.totalorder %s33, %s36
      %p45 = scmp.eq.s32.totalorder %s28, 1
      %p46 = por %p44, %p45
      %p47 = scmp.ne.s32.totalorder %s36, %s37
      %p48 = scmp.eq.s32.totalorder %s28, 0
      %p49 = por %p47, %p48
      %p50 = scmp.ne.s32.totalorder %s36, %s37
      %p51 = scmp.eq.s32.totalorder %s29, 1
      %p52 = por %p50, %p51
      %p54 = scmp.ne.s32.totalorder %s37, %s53
      %p55 = scmp.eq.s32.totalorder %s29, 0
      %p56 = por %p54, %p55
      %s57 = ssub.s32 %s23, %s30
      %p58 = scmp.eq.s32.totalorder %s57, 0
      %s60 = sadd.s32 %s59, 1
      %s61 = scalar_select %p58, %s59, %s60
      %p64 = pneg %p58
      %p65 = scmp.eq.s32.totalorder %s23, 1
      %p66 = por %p64, %p65
      %p67 = scmp.ne.s32.totalorder %s59, %s62
      %p68 = scmp.eq.s32.totalorder %s23, 0
      %p69 = por %p67, %p68
      %p70 = scmp.ne.s32.totalorder %s59, %s62
      %p71 = scmp.eq.s32.totalorder %s28, 1
      %p72 = por %p70, %p71
      %p73 = scmp.ne.s32.totalorder %s62, %s63
      %p74 = scmp.eq.s32.totalorder %s28, 0
      %p75 = por %p73, %p74
      %p76 = scmp.ne.s32.totalorder %s62, %s63
      %p77 = scmp.eq.s32.totalorder %s29, 1
      %p78 = por %p76, %p77
      %p80 = scmp.ne.s32.totalorder %s63, %s79
      %p81 = scmp.eq.s32.totalorder %s29, 0
      %p82 = por %p80, %p81
      %s84 = sadd.s32 %s83, 1
      %p87 = scmp.eq.s32.totalorder %s23, 1
      %p88 = scmp.ne.s32.totalorder %s83, %s85
      %p89 = scmp.eq.s32.totalorder %s23, 0
      %p90 = por %p88, %p89
      %p91 = scmp.ne.s32.totalorder %s83, %s85
      %p92 = scmp.eq.s32.totalorder %s28, 1
      %p93 = por %p91, %p92
      %p94 = scmp.ne.s32.totalorder %s85, %s86
      %p95 = scmp.eq.s32.totalorder %s28, 0
      %p96 = por %p94, %p95
      %p97 = scmp.ne.s32.totalorder %s85, %s86
      %p98 = scmp.eq.s32.totalorder %s29, 1
      %p99 = por %p97, %p98
      %p101 = scmp.ne.s32.totalorder %s86, %s100
      %p102 = scmp.eq.s32.totalorder %s29, 0
      %p103 = por %p101, %p102
      %s105 = sadd.s32 %s104, 1
      %p108 = scmp.eq.s32.totalorder %s23, 1
      %p109 = scmp.ne.s32.totalorder %s104, %s106
      %p110 = scmp.eq.s32.totalorder %s23, 0
      %p111 = por %p109, %p110
      %p112 = scmp.ne.s32.totalorder %s104, %s106
      %p113 = scmp.eq.s32.totalorder %s28, 1
      %p114 = por %p112, %p113
      %p115 = scmp.ne.s32.totalorder %s106, %s107
      %p116 = scmp.eq.s32.totalorder %s28, 0
      %p117 = por %p115, %p116
      %p118 = scmp.ne.s32.totalorder %s106, %s107
      %p119 = scmp.eq.s32.totalorder %s29, 1
      %p120 = por %p118, %p119
      %p122 = scmp.ne.s32.totalorder %s107, %s121
      %p123 = scmp.eq.s32.totalorder %s29, 0
      %p124 = por %p122, %p123
      %s126 = sadd.s32 %s125, 1
      %p129 = scmp.eq.s32.totalorder %s23, 1
      %p130 = scmp.ne.s32.totalorder %s125, %s127
      %p131 = scmp.eq.s32.totalorder %s23, 0
      %p132 = por %p130, %p131
      %p133 = scmp.ne.s32.totalorder %s125, %s127
      %p134 = scmp.eq.s32.totalorder %s28, 1
      %p135 = por %p133, %p134
      %p136 = scmp.ne.s32.totalorder %s127, %s128
      %p137 = scmp.eq.s32.totalorder %s28, 0
      %p138 = por %p136, %p137
      %p139 = scmp.ne.s32.totalorder %s127, %s128
      %p140 = scmp.eq.s32.totalorder %s29, 1
      %p141 = por %p139, %p140
      %p143 = scmp.ne.s32.totalorder %s128, %s142
      %p144 = scmp.eq.s32.totalorder %s29, 0
      %p145 = por %p143, %p144
      %s147 = sadd.s32 %s146, 1
      %p150 = scmp.eq.s32.totalorder %s23, 1
      %p151 = scmp.ne.s32.totalorder %s146, %s148
      %p152 = scmp.eq.s32.totalorder %s23, 0
      %p153 = por %p151, %p152
      %p154 = scmp.ne.s32.totalorder %s146, %s148
      %p155 = scmp.eq.s32.totalorder %s28, 1
      %p156 = por %p154, %p155
      %p157 = scmp.ne.s32.totalorder %s148, %s149
      %p158 = scmp.eq.s32.totalorder %s28, 0
      %p159 = por %p157, %p158
      %p160 = scmp.ne.s32.totalorder %s148, %s149
      %p161 = scmp.eq.s32.totalorder %s29, 1
      %p162 = por %p160, %p161
      %p164 = scmp.ne.s32.totalorder %s149, %s163
      %p165 = scmp.eq.s32.totalorder %s29, 0
      %p166 = por %p164, %p165
      %s168 = sadd.s32 %s167, 1
      %p171 = scmp.eq.s32.totalorder %s23, 1
      %p172 = scmp.ne.s32.totalorder %s167, %s169
      %p173 = scmp.eq.s32.totalorder %s23, 0
      %p174 = por %p172, %p173
      %p175 = scmp.ne.s32.totalorder %s167, %s169
      %p176 = scmp.eq.s32.totalorder %s28, 1
      %p177 = por %p175, %p176
      %p178 = scmp.ne.s32.totalorder %s169, %s170
      %p179 = scmp.eq.s32.totalorder %s28, 0
      %p180 = por %p178, %p179
      %p181 = scmp.ne.s32.totalorder %s169, %s170
      %p182 = scmp.eq.s32.totalorder %s29, 1
      %p183 = por %p181, %p182
      %p185 = scmp.ne.s32.totalorder %s170, %s184
      %p186 = scmp.eq.s32.totalorder %s29, 0
      %p187 = por %p185, %p186
      %s189 = sadd.s32 %s188, 1
      %p192 = scmp.eq.s32.totalorder %s23, 1
      %p193 = scmp.ne.s32.totalorder %s188, %s190
      %p194 = scmp.eq.s32.totalorder %s23, 0
      %p195 = por %p193, %p194
      %p196 = scmp.ne.s32.totalorder %s188, %s190
      %p197 = scmp.eq.s32.totalorder %s28, 1
      %p198 = por %p196, %p197
      %p199 = scmp.ne.s32.totalorder %s190, %s191
      %p200 = scmp.eq.s32.totalorder %s28, 0
      %p201 = por %p199, %p200
      %p202 = scmp.ne.s32.totalorder %s190, %s191
      %p203 = scmp.eq.s32.totalorder %s29, 1
      %p204 = por %p202, %p203
      %p206 = scmp.ne.s32.totalorder %s191, %s205
      %p207 = scmp.eq.s32.totalorder %s29, 0
      %p208 = por %p206, %p207
      %s210 = sadd.s32 %s209, 1
      %p213 = scmp.eq.s32.totalorder %s23, 1
      %p214 = scmp.ne.s32.totalorder %s209, %s211
      %p215 = scmp.eq.s32.totalorder %s23, 0
      %p216 = por %p214, %p215
      %p217 = scmp.ne.s32.totalorder %s209, %s211
      %p218 = scmp.eq.s32.totalorder %s28, 1
      %p219 = por %p217, %p218
      %p220 = scmp.ne.s32.totalorder %s211, %s212
      %p221 = scmp.eq.s32.totalorder %s28, 0
      %p222 = por %p220, %p221
      %p223 = scmp.ne.s32.totalorder %s211, %s212
      %p224 = scmp.eq.s32.totalorder %s29, 1
      %p225 = por %p223, %p224
      %p227 = scmp.ne.s32.totalorder %s212, %s226
      %p228 = scmp.eq.s32.totalorder %s29, 0
      %p229 = por %p227, %p228
      %s231 = sadd.s32 %s230, 1
      %p234 = scmp.eq.s32.totalorder %s23, 1
      %p235 = scmp.ne.s32.totalorder %s230, %s232
      %p236 = scmp.eq.s32.totalorder %s23, 0
      %p237 = por %p235, %p236
      %p238 = scmp.ne.s32.totalorder %s230, %s232
      %p239 = scmp.eq.s32.totalorder %s28, 1
      %p240 = por %p238, %p239
      %p241 = scmp.ne.s32.totalorder %s232, %s233
      %p242 = scmp.eq.s32.totalorder %s28, 0
      %p243 = por %p241, %p242
      %p244 = scmp.ne.s32.totalorder %s232, %s233
      %p245 = scmp.eq.s32.totalorder %s29, 1
      %p246 = por %p244, %p245
      %p248 = scmp.ne.s32.totalorder %s233, %s247
      %p249 = scmp.eq.s32.totalorder %s29, 0
      %p250 = por %p248, %p249
      %s252 = sadd.s32 %s251, 1
      %p255 = scmp.eq.s32.totalorder %s23, 1
      %p256 = scmp.ne.s32.totalorder %s251, %s253
      %p257 = scmp.eq.s32.totalorder %s23, 0
      %p258 = por %p256, %p257
      %p259 = scmp.ne.s32.totalorder %s251, %s253
      %p260 = scmp.eq.s32.totalorder %s28, 1
      %p261 = por %p259, %p260
      %p262 = scmp.ne.s32.totalorder %s253, %s254
      %p263 = scmp.eq.s32.totalorder %s28, 0
      %p264 = por %p262, %p263
      %p265 = scmp.ne.s32.totalorder %s253, %s254
      %p266 = scmp.eq.s32.totalorder %s29, 1
      %p267 = por %p265, %p266
      %p269 = scmp.ne.s32.totalorder %s254, %s268
      %p270 = scmp.eq.s32.totalorder %s29, 0
      %p271 = por %p269, %p270
      %s273 = sadd.s32 %s272, 1
      %p276 = scmp.eq.s32.totalorder %s23, 1
      %p277 = scmp.ne.s32.totalorder %s272, %s274
      %p278 = scmp.eq.s32.totalorder %s23, 0
      %p279 = por %p277, %p278
      %p280 = scmp.ne.s32.totalorder %s272, %s274
      %p281 = scmp.eq.s32.totalorder %s28, 1
      %p282 = por %p280, %p281
      %p283 = scmp.ne.s32.totalorder %s274, %s275
      %p284 = scmp.eq.s32.totalorder %s28, 0
      %p285 = por %p283, %p284
      %p286 = scmp.ne.s32.totalorder %s274, %s275
      %p287 = scmp.eq.s32.totalorder %s29, 1
      %p288 = por %p286, %p287
      %p290 = scmp.ne.s32.totalorder %s275, %s289
      %p291 = scmp.eq.s32.totalorder %s29, 0
      %p292 = por %p290, %p291
      %s294 = sadd.s32 %s293, 1
      %p297 = scmp.eq.s32.totalorder %s23, 1
      %p298 = scmp.ne.s32.totalorder %s293, %s295
      %p299 = scmp.eq.s32.totalorder %s23, 0
      %p300 = por %p298, %p299
      %p301 = scmp.ne.s32.totalorder %s293, %s295
      %p302 = scmp.eq.s32.totalorder %s28, 1
      %p303 = por %p301, %p302
      %p304 = scmp.ne.s32.totalorder %s295, %s296
      %p305 = scmp.eq.s32.totalorder %s28, 0
      %p306 = por %p304, %p305
      %p307 = scmp.ne.s32.totalorder %s295, %s296
      %p308 = scmp.eq.s32.totalorder %s29, 1
      %p309 = por %p307, %p308
      %p311 = scmp.ne.s32.totalorder %s296, %s310
      %p312 = scmp.eq.s32.totalorder %s29, 0
      %p313 = por %p311, %p312
      %s314 = ssub.s32 %s23, %s30
      %p315 = scmp.eq.s32.totalorder %s314, 0
      %s317 = sadd.s32 %s316, 1
      %s318 = scalar_select %p315, %s316, %s317
      %p321 = pneg %p315
      %p322 = scmp.eq.s32.totalorder %s23, 1
      %p323 = por %p321, %p322
      %p324 = scmp.ne.s32.totalorder %s316, %s319
      %p325 = scmp.eq.s32.totalorder %s23, 0
      %p326 = por %p324, %p325
      %p327 = scmp.ne.s32.totalorder %s316, %s319
      %p328 = scmp.eq.s32.totalorder %s28, 1
      %p329 = por %p327, %p328
      %p330 = scmp.ne.s32.totalorder %s319, %s320
      %p331 = scmp.eq.s32.totalorder %s28, 0
      %p332 = por %p330, %p331
      %p333 = scmp.ne.s32.totalorder %s319, %s320
      %p334 = scmp.eq.s32.totalorder %s29, 1
      %p335 = por %p333, %p334
      %p337 = scmp.ne.s32.totalorder %s320, %s336
      %p338 = scmp.eq.s32.totalorder %s29, 0
      %p339 = por %p337, %p338
      %p340 = scmp.le.s32.totalorder 1, %s23
      %p341 = scmp.lt.s32.totalorder %s23, 3
      %p342 = pnand %p340, %p341
      %p343 = pneg %p342
      // Predicated region
      $region9: #{cnn2_forward.1} parent=5 // pred_check
        _
      $region10: #{cnn2_forward.1} parent=5 // pred_check_branch
        %345 = sbr.rel (%p342) target = $region12
      $region11: #{cnn2_forward.1} parent=5 // pred_region
        %s346 = ssub.s32 %s23, 1
        // Predicated region
        $region13: #{cnn2_forward.1} parent=11 // pred_check
          %p347 = pneg %p96
        $region14: #{cnn2_forward.1} parent=11 // pred_check_branch
          %349 = sbr.rel (%p347) target = $region16
        $region15: #{cnn2_forward.1} parent=11 // pred_region
          _
        $region16: #{cnn2_forward.1} parent=11 // pred_fallthru
          _
        // Predicated region
        $region17: #{cnn2_forward.1} parent=11 // pred_check
          %p350 = pneg %p117
        $region18: #{cnn2_forward.1} parent=11 // pred_check_branch
          %352 = sbr.rel (%p350) target = $region20
        $region19: #{cnn2_forward.1} parent=11 // pred_region
          _
        $region20: #{cnn2_forward.1} parent=11 // pred_fallthru
          _
        // Predicated region
        $region21: #{cnn2_forward.1} parent=11 // pred_check
          %p353 = pneg %p138
        $region22: #{cnn2_forward.1} parent=11 // pred_check_branch
          %355 = sbr.rel (%p353) target = $region24
        $region23: #{cnn2_forward.1} parent=11 // pred_region
          _
        $region24: #{cnn2_forward.1} parent=11 // pred_fallthru
          _
        // Predicated region
        $region25: #{cnn2_forward.1} parent=11 // pred_check
          %p356 = pneg %p159
        $region26: #{cnn2_forward.1} parent=11 // pred_check_branch
          %358 = sbr.rel (%p356) target = $region28
        $region27: #{cnn2_forward.1} parent=11 // pred_region
          _
        $region28: #{cnn2_forward.1} parent=11 // pred_fallthru
          _
        // Predicated region
        $region29: #{cnn2_forward.1} parent=11 // pred_check
          %p359 = pneg %p180
        $region30: #{cnn2_forward.1} parent=11 // pred_check_branch
          %361 = sbr.rel (%p359) target = $region32
        $region31: #{cnn2_forward.1} parent=11 // pred_region
          _
        $region32: #{cnn2_forward.1} parent=11 // pred_fallthru
          _
        // Predicated region
        $region33: #{cnn2_forward.1} parent=11 // pred_check
          %p362 = pneg %p201
        $region34: #{cnn2_forward.1} parent=11 // pred_check_branch
          %364 = sbr.rel (%p362) target = $region36
        $region35: #{cnn2_forward.1} parent=11 // pred_region
          _
        $region36: #{cnn2_forward.1} parent=11 // pred_fallthru
          _
        // Predicated region
        $region37: #{cnn2_forward.1} parent=11 // pred_check
          %p365 = pneg %p222
        $region38: #{cnn2_forward.1} parent=11 // pred_check_branch
          %367 = sbr.rel (%p365) target = $region40
        $region39: #{cnn2_forward.1} parent=11 // pred_region
          %369 = vsyncadd [#allocation6], 0
          %s370 = sshll.u32 %s8, 4
          %s371 = int_to_ptr.hbm [resolvable:$true] %s370
          %s372 = sshll.u32 [#allocation5], 4
          %s373 = int_to_ptr.vmem [resolvable:$true] %s372
          %378 = dma.hbm_to_vmem [thread:$0]  %s371, 23040, %s373, [#allocation6], 128, 128, 8
        $region40: #{cnn2_forward.1} parent=11 // pred_fallthru
          _
        // Predicated region
        $region41: #{cnn2_forward.1} parent=11 // pred_check
          %p379 = pneg %p243
        $region42: #{cnn2_forward.1} parent=11 // pred_check_branch
          %381 = sbr.rel (%p379) target = $region44
        $region43: #{cnn2_forward.1} parent=11 // pred_region
          _
        $region44: #{cnn2_forward.1} parent=11 // pred_fallthru
          _
        // Predicated region
        $region45: #{cnn2_forward.1} parent=11 // pred_check
          %p382 = pneg %p264
        $region46: #{cnn2_forward.1} parent=11 // pred_check_branch
          %384 = sbr.rel (%p382) target = $region48
        $region47: #{cnn2_forward.1} parent=11 // pred_region
          _
        $region48: #{cnn2_forward.1} parent=11 // pred_fallthru
          _
        // Predicated region
        $region49: #{cnn2_forward.1} parent=11 // pred_check
          %p385 = pneg %p285
        $region50: #{cnn2_forward.1} parent=11 // pred_check_branch
          %387 = sbr.rel (%p385) target = $region52
        $region51: #{cnn2_forward.1} parent=11 // pred_region
          _
        $region52: #{cnn2_forward.1} parent=11 // pred_fallthru
          _
        // Predicated region
        $region53: #{cnn2_forward.1} parent=11 // pred_check
          %p388 = pneg %p306
        $region54: #{cnn2_forward.1} parent=11 // pred_check_branch
          %390 = sbr.rel (%p388) target = $region56
        $region55: #{cnn2_forward.1} parent=11 // pred_region
          _
        $region56: #{cnn2_forward.1} parent=11 // pred_fallthru
          _
      $region12: #{cnn2_forward.1} parent=5 // pred_fallthru
        _
      %p391 = scmp.lt.s32.totalorder %s23, 2
      // Predicated region
      $region57: #{cnn2_forward.1} parent=5 // pred_check
        %p392 = pneg %p391
      $region58: #{cnn2_forward.1} parent=5 // pred_check_branch
        %394 = sbr.rel (%p392) target = $region60
      $region59: #{cnn2_forward.1} parent=5 // pred_region
        // Predicated region
        $region61: #{cnn2_forward.1} parent=59 // pred_check
          %p395 = pneg %p43
        $region62: #{cnn2_forward.1} parent=59 // pred_check_branch
          %397 = sbr.rel (%p395) target = $region64
        $region63: #{cnn2_forward.1} parent=59 // pred_region
          %p398 = scmp.lt.s32.totalorder %s23, 1
          %s399 = scalar_select %p398, %s23, 1
          %s400 = smul.addr %s399, 2
          %s401 = scalar_lea.vmem %s0, %s400
        $region64: #{cnn2_forward.1} parent=59 // pred_fallthru
          _
        // Predicated region
        $region65: #{cnn2_forward.1} parent=59 // pred_check
          %p402 = pneg %p69
        $region66: #{cnn2_forward.1} parent=59 // pred_check_branch
          %404 = sbr.rel (%p402) target = $region68
        $region67: #{cnn2_forward.1} parent=59 // pred_region
          %p405 = scmp.lt.s32.totalorder %s23, 1
          %s406 = scalar_select %p405, %s23, 1
          %s407 = smul.addr %s406, 2
          %s408 = scalar_lea.vmem %s1, %s407
        $region68: #{cnn2_forward.1} parent=59 // pred_fallthru
          _
      $region60: #{cnn2_forward.1} parent=5 // pred_fallthru
        _
      %p409 = scmp.le.s32.totalorder 1, %s23
      %p410 = scmp.lt.s32.totalorder %s23, 3
      %p411 = pnand %p409, %p410
      %p412 = pneg %p411
      // Predicated region
      $region69: #{cnn2_forward.1} parent=5 // pred_check
        _
      $region70: #{cnn2_forward.1} parent=5 // pred_check_branch
        %414 = sbr.rel (%p411) target = $region72
      $region71: #{cnn2_forward.1} parent=5 // pred_region
        %s415 = ssub.s32 %s23, 1
        // Predicated region
        $region73: #{cnn2_forward.1} parent=71 // pred_check
          %p416 = pneg %p222
        $region74: #{cnn2_forward.1} parent=71 // pred_check_branch
          %418 = sbr.rel (%p416) target = $region76
        $region75: #{cnn2_forward.1} parent=71 // pred_region
          %420 = dma.done [#allocation6], 23040
        $region76: #{cnn2_forward.1} parent=71 // pred_fallthru
          _
        %p421 = scmp.lt.s32.totalorder %s28, 1
        %s422 = scalar_select %p421, %s28, 1
        %s423 = smul.addr %s422, 2
        %s424 = scalar_lea.vmem %s0, %s423
        %p425 = pneg %p49
        %p426 = pneg %p46
        %p427 = scmp.lt.s32.totalorder %s28, 1
        %s428 = scalar_select %p427, %s28, 1
        %s429 = smul.addr %s428, 2
        %s430 = scalar_lea.vmem %s1, %s429
        %p431 = pneg %p75
        %p432 = pneg %p72
        %p433 = pneg %p96
        %p434 = pneg %p93
        %p435 = pneg %p117
        %p436 = pneg %p114
        %p437 = pneg %p138
        %p438 = pneg %p135
        %p439 = pneg %p159
        %p440 = pneg %p156
        %p441 = pneg %p180
        %p442 = pneg %p177
        %p443 = pneg %p201
        %p444 = pneg %p198
        %p445 = pneg %p222
        %p446 = pneg %p219
        %p447 = pneg %p243
        %p448 = pneg %p240
        %p449 = pneg %p264
        %p450 = pneg %p261
        %p451 = pneg %p285
        %p452 = pneg %p282
        %p453 = pneg %p306
        %p454 = pneg %p303
        %p455 = pneg %p332
        %p456 = pneg %p329
        %s457 = sand.u32 %s319, 1
        %s458 = scalar_lea.sflag [#allocation7], %s457
        %s459 = sand.u32 %s319, 1
        %s460 = scalar_lea.vmem [#allocation8], %s459
        %p461 = scmp.lt.s32.totalorder %s28, 1
        %s462 = scalar_select %p461, %s28, 1
        %s463 = smul.addr %s462, 2
        %s464 = scalar_lea.vmem %s0, %s463
        %p465 = scmp.lt.s32.totalorder %s28, 1
        %s466 = scalar_select %p465, %s28, 1
        %s467 = smul.addr %s466, 2
        %s468 = scalar_lea.vmem %s1, %s467
        %v469 = vld [vmem:[%s2] sm:$0xff]
        %v470 = vld [vmem:[%s2 + $0x8] sm:$0xff]
        %v471 = vld [vmem:[%s464] sm:$0x3]
        %473 = vset.pattern.permute.xlu0 0
        %474 = vperm.xlu0 %473, %v469
        %v475 = vpop.permute.xlu0 %474
        %478 = vset.pattern.permute.xlu0 0
        %479 = vperm.xlu0 %478, %v470
        %v480 = vpop.permute.xlu0 %479
        %v483 = vperm.slane %v471, 0
        %v484 = vperm.slane %v471, 1
        %v487 = vmul.f32 %v475, %v483
        %v488 = vmul.f32 %v475, %v484
        %v489 = vmul.f32 %v480, %v483
        %v490 = vmul.f32 %v480, %v484
        %v491 = vadd.f32 %v487, 0.0
        %v492 = vadd.f32 %v488, 0.0
        %v493 = vadd.f32 %v489, 0.0
        %v494 = vadd.f32 %v490, 0.0
        %v495 = vld [vmem:[%s468] sm:$0x3]
        %v497 = vperm.slane %v495, 0
        %v498 = vperm.slane %v495, 1
        %v501 = vmul.f32 %v475, %v497
        %v502 = vmul.f32 %v475, %v498
        %v503 = vmul.f32 %v480, %v497
        %v504 = vmul.f32 %v480, %v498
        %v505 = vadd.f32 %v501, 0.0
        %v506 = vadd.f32 %v502, 0.0
        %v507 = vadd.f32 %v503, 0.0
        %v508 = vadd.f32 %v504, 0.0
        %s509 = scalar_lea.vmem %s2, 16
        %v510 = vld [vmem:[%s509] sm:$0xff]
        %v511 = vld [vmem:[%s509 + $0x8] sm:$0xff]
        %513 = vset.pattern.permute.xlu0 0
        %514 = vperm.xlu0 %513, %v510
        %v515 = vpop.permute.xlu0 %514
        %518 = vset.pattern.permute.xlu0 0
        %519 = vperm.xlu0 %518, %v511
        %v520 = vpop.permute.xlu0 %519
        %v522 = vmul.f32 %v515, %v497
        %v523 = vmul.f32 %v515, %v498
        %v524 = vmul.f32 %v520, %v497
        %v525 = vmul.f32 %v520, %v498
        %v526 = vadd.f32 %v491, %v522
        %v527 = vadd.f32 %v492, %v523
        %v528 = vadd.f32 %v493, %v524
        %v529 = vadd.f32 %v494, %v525
        %v530 = vmul.f32 %v515, %v483
        %v531 = vmul.f32 %v515, %v484
        %v532 = vmul.f32 %v520, %v483
        %v533 = vmul.f32 %v520, %v484
        %538 = vrot.lane.b32.xlu0 %v530, 127
        %v539 = vpop.permute.xlu0 %538
        %540 = vrot.lane.b32.xlu0 %v531, 127
        %v541 = vpop.permute.xlu0 %540
        %542 = vrot.lane.b32.xlu0 %v532, 127
        %v543 = vpop.permute.xlu0 %542
        %544 = vrot.lane.b32.xlu0 %v533, 127
        %v545 = vpop.permute.xlu0 %544
        %vm546 = vcmask 1039360
        %v547 = vsel %vm546, %v539, %v541
        %v548 = vsel %vm546, %v543, %v545
        %v553 = vadd.f32 %v505, %v547
        %v554 = vadd.f32 %v506, %v541
        %v555 = vadd.f32 %v507, %v548
        %v556 = vadd.f32 %v508, %v545
        %s557 = scalar_lea.vmem %s2, 32
        %v558 = vld [vmem:[%s557] sm:$0xff]
        %v559 = vld [vmem:[%s557 + $0x8] sm:$0xff]
        %561 = vset.pattern.permute.xlu0 0
        %562 = vperm.xlu0 %561, %v558
        %v563 = vpop.permute.xlu0 %562
        %566 = vset.pattern.permute.xlu0 0
        %567 = vperm.xlu0 %566, %v559
        %v568 = vpop.permute.xlu0 %567
        %v570 = vmul.f32 %v563, %v483
        %v571 = vmul.f32 %v563, %v484
        %v572 = vmul.f32 %v568, %v483
        %v573 = vmul.f32 %v568, %v484
        %578 = vrot.lane.b32.xlu0 %v570, 127
        %v579 = vpop.permute.xlu0 %578
        %580 = vrot.lane.b32.xlu0 %v571, 127
        %v581 = vpop.permute.xlu0 %580
        %582 = vrot.lane.b32.xlu0 %v572, 127
        %v583 = vpop.permute.xlu0 %582
        %584 = vrot.lane.b32.xlu0 %v573, 127
        %v585 = vpop.permute.xlu0 %584
        %v586 = vsel %vm546, %v579, %v581
        %v587 = vsel %vm546, %v583, %v585
        %v592 = vadd.f32 %v526, %v586
        %v593 = vadd.f32 %v527, %v581
        %v594 = vadd.f32 %v528, %v587
        %v595 = vadd.f32 %v529, %v585
        %v596 = vmul.f32 %v563, %v497
        %v597 = vmul.f32 %v563, %v498
        %v598 = vmul.f32 %v568, %v497
        %v599 = vmul.f32 %v568, %v498
        %604 = vrot.lane.b32.xlu0 %v596, 127
        %v605 = vpop.permute.xlu0 %604
        %606 = vrot.lane.b32.xlu0 %v597, 127
        %v607 = vpop.permute.xlu0 %606
        %608 = vrot.lane.b32.xlu0 %v598, 127
        %v609 = vpop.permute.xlu0 %608
        %610 = vrot.lane.b32.xlu0 %v599, 127
        %v611 = vpop.permute.xlu0 %610
        %v612 = vsel %vm546, %v605, %v607
        %v613 = vsel %vm546, %v609, %v611
        %v618 = vadd.f32 %v553, %v612
        %v619 = vadd.f32 %v554, %v607
        %v620 = vadd.f32 %v555, %v613
        %v621 = vadd.f32 %v556, %v611
        %s622 = scalar_lea.vmem %s2, 48
        %v623 = vld [vmem:[%s622] sm:$0xff]
        %v624 = vld [vmem:[%s622 + $0x8] sm:$0xff]
        %626 = vset.pattern.permute.xlu0 0
        %627 = vperm.xlu0 %626, %v623
        %v628 = vpop.permute.xlu0 %627
        %631 = vset.pattern.permute.xlu0 0
        %632 = vperm.xlu0 %631, %v624
        %v633 = vpop.permute.xlu0 %632
        %v635 = vmul.f32 %v628, %v497
        %v636 = vmul.f32 %v628, %v498
        %v637 = vmul.f32 %v633, %v497
        %v638 = vmul.f32 %v633, %v498
        %643 = vrot.lane.b32.xlu0 %v635, 121
        %v644 = vpop.permute.xlu0 %643
        %645 = vrot.lane.b32.xlu0 %v636, 121
        %v646 = vpop.permute.xlu0 %645
        %647 = vrot.lane.b32.xlu0 %v637, 121
        %v648 = vpop.permute.xlu0 %647
        %649 = vrot.lane.b32.xlu0 %v638, 121
        %v650 = vpop.permute.xlu0 %649
        %vm651 = vcmask 990208
        %v652 = vsel %vm651, %v644, %v646
        %v653 = vsel %vm651, %v648, %v650
        %v658 = vadd.f32 %v592, %v652
        %v659 = vadd.f32 %v593, %v646
        %v660 = vadd.f32 %v594, %v653
        %v661 = vadd.f32 %v595, %v650
        %v662 = vmul.f32 %v628, %v483
        %v663 = vmul.f32 %v628, %v484
        %v664 = vmul.f32 %v633, %v483
        %v665 = vmul.f32 %v633, %v484
        %670 = vrot.lane.b32.xlu0 %v662, 120
        %v671 = vpop.permute.xlu0 %670
        %672 = vrot.lane.b32.xlu0 %v663, 120
        %v673 = vpop.permute.xlu0 %672
        %674 = vrot.lane.b32.xlu0 %v664, 120
        %v675 = vpop.permute.xlu0 %674
        %676 = vrot.lane.b32.xlu0 %v665, 120
        %v677 = vpop.permute.xlu0 %676
        %vm678 = vcmask 982016
        %v679 = vsel %vm678, %v671, %v673
        %v680 = vsel %vm678, %v675, %v677
        %v685 = vadd.f32 %v618, %v679
        %v686 = vadd.f32 %v619, %v673
        %v687 = vadd.f32 %v620, %v680
        %v688 = vadd.f32 %v621, %v677
        %s689 = scalar_lea.vmem %s2, 64
        %v690 = vld [vmem:[%s689] sm:$0xff]
        %v691 = vld [vmem:[%s689 + $0x8] sm:$0xff]
        %693 = vset.pattern.permute.xlu0 0
        %694 = vperm.xlu0 %693, %v690
        %v695 = vpop.permute.xlu0 %694
        %698 = vset.pattern.permute.xlu0 0
        %699 = vperm.xlu0 %698, %v691
        %v700 = vpop.permute.xlu0 %699
        %v702 = vmul.f32 %v695, %v483
        %v703 = vmul.f32 %v695, %v484
        %v704 = vmul.f32 %v700, %v483
        %v705 = vmul.f32 %v700, %v484
        %710 = vrot.lane.b32.xlu0 %v702, 120
        %v711 = vpop.permute.xlu0 %710
        %712 = vrot.lane.b32.xlu0 %v703, 120
        %v713 = vpop.permute.xlu0 %712
        %714 = vrot.lane.b32.xlu0 %v704, 120
        %v715 = vpop.permute.xlu0 %714
        %716 = vrot.lane.b32.xlu0 %v705, 120
        %v717 = vpop.permute.xlu0 %716
        %v718 = vsel %vm678, %v711, %v713
        %v719 = vsel %vm678, %v715, %v717
        %v724 = vadd.f32 %v658, %v718
        %v725 = vadd.f32 %v659, %v713
        %v726 = vadd.f32 %v660, %v719
        %v727 = vadd.f32 %v661, %v717
        %v728 = vmul.f32 %v695, %v497
        %v729 = vmul.f32 %v695, %v498
        %v730 = vmul.f32 %v700, %v497
        %v731 = vmul.f32 %v700, %v498
        %736 = vrot.lane.b32.xlu0 %v728, 120
        %v737 = vpop.permute.xlu0 %736
        %738 = vrot.lane.b32.xlu0 %v729, 120
        %v739 = vpop.permute.xlu0 %738
        %740 = vrot.lane.b32.xlu0 %v730, 120
        %v741 = vpop.permute.xlu0 %740
        %742 = vrot.lane.b32.xlu0 %v731, 120
        %v743 = vpop.permute.xlu0 %742
        %v744 = vsel %vm678, %v737, %v739
        %v745 = vsel %vm678, %v741, %v743
        %v750 = vadd.f32 %v685, %v744
        %v751 = vadd.f32 %v686, %v739
        %v752 = vadd.f32 %v687, %v745
        %v753 = vadd.f32 %v688, %v743
        %s754 = scalar_lea.vmem %s2, 80
        %v755 = vld [vmem:[%s754] sm:$0xff]
        %v756 = vld [vmem:[%s754 + $0x8] sm:$0xff]
        %758 = vset.pattern.permute.xlu0 0
        %759 = vperm.xlu0 %758, %v755
        %v760 = vpop.permute.xlu0 %759
        %763 = vset.pattern.permute.xlu0 0
        %764 = vperm.xlu0 %763, %v756
        %v765 = vpop.permute.xlu0 %764
        %v767 = vmul.f32 %v760, %v497
        %v768 = vmul.f32 %v760, %v498
        %v769 = vmul.f32 %v765, %v497
        %v770 = vmul.f32 %v765, %v498
        %775 = vrot.lane.b32.xlu0 %v767, 120
        %v776 = vpop.permute.xlu0 %775
        %777 = vrot.lane.b32.xlu0 %v768, 120
        %v778 = vpop.permute.xlu0 %777
        %779 = vrot.lane.b32.xlu0 %v769, 120
        %v780 = vpop.permute.xlu0 %779
        %781 = vrot.lane.b32.xlu0 %v770, 120
        %v782 = vpop.permute.xlu0 %781
        %v783 = vsel %vm678, %v776, %v778
        %v784 = vsel %vm678, %v780, %v782
        %v789 = vadd.f32 %v724, %v783
        %v790 = vadd.f32 %v725, %v778
        %v791 = vadd.f32 %v726, %v784
        %v792 = vadd.f32 %v727, %v782
        %v793 = vmul.f32 %v760, %v483
        %v794 = vmul.f32 %v760, %v484
        %v795 = vmul.f32 %v765, %v483
        %v796 = vmul.f32 %v765, %v484
        %801 = vrot.lane.b32.xlu0 %v793, 119
        %v802 = vpop.permute.xlu0 %801
        %803 = vrot.lane.b32.xlu0 %v794, 119
        %v804 = vpop.permute.xlu0 %803
        %805 = vrot.lane.b32.xlu0 %v795, 119
        %v806 = vpop.permute.xlu0 %805
        %807 = vrot.lane.b32.xlu0 %v796, 119
        %v808 = vpop.permute.xlu0 %807
        %vm809 = vcmask 973824
        %v810 = vsel %vm809, %v802, %v804
        %v811 = vsel %vm809, %v806, %v808
        %v816 = vadd.f32 %v750, %v810
        %v817 = vadd.f32 %v751, %v804
        %v818 = vadd.f32 %v752, %v811
        %v819 = vadd.f32 %v753, %v808
        %s820 = scalar_lea.vmem %s2, 96
        %v821 = vld [vmem:[%s820] sm:$0xff]
        %v822 = vld [vmem:[%s820 + $0x8] sm:$0xff]
        %824 = vset.pattern.permute.xlu0 0
        %825 = vperm.xlu0 %824, %v821
        %v826 = vpop.permute.xlu0 %825
        %829 = vset.pattern.permute.xlu0 0
        %830 = vperm.xlu0 %829, %v822
        %v831 = vpop.permute.xlu0 %830
        %v833 = vmul.f32 %v826, %v483
        %v834 = vmul.f32 %v826, %v484
        %v835 = vmul.f32 %v831, %v483
        %v836 = vmul.f32 %v831, %v484
        %841 = vrot.lane.b32.xlu0 %v833, 113
        %v842 = vpop.permute.xlu0 %841
        %843 = vrot.lane.b32.xlu0 %v834, 113
        %v844 = vpop.permute.xlu0 %843
        %845 = vrot.lane.b32.xlu0 %v835, 113
        %v846 = vpop.permute.xlu0 %845
        %847 = vrot.lane.b32.xlu0 %v836, 113
        %v848 = vpop.permute.xlu0 %847
        %vm849 = vcmask 924672
        %v850 = vsel %vm849, %v842, %v844
        %v851 = vsel %vm849, %v846, %v848
        %v856 = vadd.f32 %v789, %v850
        %v857 = vadd.f32 %v790, %v844
        %v858 = vadd.f32 %v791, %v851
        %v859 = vadd.f32 %v792, %v848
        %v860 = vmul.f32 %v826, %v497
        %v861 = vmul.f32 %v826, %v498
        %v862 = vmul.f32 %v831, %v497
        %v863 = vmul.f32 %v831, %v498
        %868 = vrot.lane.b32.xlu0 %v860, 113
        %v869 = vpop.permute.xlu0 %868
        %870 = vrot.lane.b32.xlu0 %v861, 113
        %v871 = vpop.permute.xlu0 %870
        %872 = vrot.lane.b32.xlu0 %v862, 113
        %v873 = vpop.permute.xlu0 %872
        %874 = vrot.lane.b32.xlu0 %v863, 113
        %v875 = vpop.permute.xlu0 %874
        %v876 = vsel %vm849, %v869, %v871
        %v877 = vsel %vm849, %v873, %v875
        %v882 = vadd.f32 %v816, %v876
        %v883 = vadd.f32 %v817, %v871
        %v884 = vadd.f32 %v818, %v877
        %v885 = vadd.f32 %v819, %v875
        %s886 = scalar_lea.vmem %s2, 112
        %v887 = vld [vmem:[%s886] sm:$0xff]
        %v888 = vld [vmem:[%s886 + $0x8] sm:$0xff]
        %890 = vset.pattern.permute.xlu0 0
        %891 = vperm.xlu0 %890, %v887
        %v892 = vpop.permute.xlu0 %891
        %895 = vset.pattern.permute.xlu0 0
        %896 = vperm.xlu0 %895, %v888
        %v897 = vpop.permute.xlu0 %896
        %v899 = vmul.f32 %v892, %v497
        %v900 = vmul.f32 %v892, %v498
        %v901 = vmul.f32 %v897, %v497
        %v902 = vmul.f32 %v897, %v498
        %907 = vrot.lane.b32.xlu0 %v899, 113
        %v908 = vpop.permute.xlu0 %907
        %909 = vrot.lane.b32.xlu0 %v900, 113
        %v910 = vpop.permute.xlu0 %909
        %911 = vrot.lane.b32.xlu0 %v901, 113
        %v912 = vpop.permute.xlu0 %911
        %913 = vrot.lane.b32.xlu0 %v902, 113
        %v914 = vpop.permute.xlu0 %913
        %v915 = vsel %vm849, %v908, %v910
        %v916 = vsel %vm849, %v912, %v914
        %v921 = vadd.f32 %v856, %v915
        %v922 = vadd.f32 %v857, %v910
        %v923 = vadd.f32 %v858, %v916
        %v924 = vadd.f32 %v859, %v914
        %v925 = vmul.f32 %v892, %v483
        %v926 = vmul.f32 %v892, %v484
        %v927 = vmul.f32 %v897, %v483
        %v928 = vmul.f32 %v897, %v484
        %933 = vrot.lane.b32.xlu0 %v925, 112
        %v934 = vpop.permute.xlu0 %933
        %935 = vrot.lane.b32.xlu0 %v926, 112
        %v936 = vpop.permute.xlu0 %935
        %937 = vrot.lane.b32.xlu0 %v927, 112
        %v938 = vpop.permute.xlu0 %937
        %939 = vrot.lane.b32.xlu0 %v928, 112
        %v940 = vpop.permute.xlu0 %939
        %vm941 = vcmask 916480
        %v942 = vsel %vm941, %v934, %v936
        %v943 = vsel %vm941, %v938, %v940
        %v948 = vadd.f32 %v882, %v942
        %v949 = vadd.f32 %v883, %v936
        %v950 = vadd.f32 %v884, %v943
        %v951 = vadd.f32 %v885, %v940
        %s952 = scalar_lea.vmem %s2, 128
        %v953 = vld [vmem:[%s952] sm:$0xff]
        %v954 = vld [vmem:[%s952 + $0x8] sm:$0xff]
        %956 = vset.pattern.permute.xlu0 0
        %957 = vperm.xlu0 %956, %v953
        %v958 = vpop.permute.xlu0 %957
        %961 = vset.pattern.permute.xlu0 0
        %962 = vperm.xlu0 %961, %v954
        %v963 = vpop.permute.xlu0 %962
        %v965 = vmul.f32 %v958, %v483
        %v966 = vmul.f32 %v958, %v484
        %v967 = vmul.f32 %v963, %v483
        %v968 = vmul.f32 %v963, %v484
        %973 = vrot.lane.b32.xlu0 %v965, 112
        %v974 = vpop.permute.xlu0 %973
        %975 = vrot.lane.b32.xlu0 %v966, 112
        %v976 = vpop.permute.xlu0 %975
        %977 = vrot.lane.b32.xlu0 %v967, 112
        %v978 = vpop.permute.xlu0 %977
        %979 = vrot.lane.b32.xlu0 %v968, 112
        %v980 = vpop.permute.xlu0 %979
        %v981 = vsel %vm941, %v974, %v976
        %v982 = vsel %vm941, %v978, %v980
        %v987 = vadd.f32 %v921, %v981
        %v988 = vadd.f32 %v922, %v976
        %v989 = vadd.f32 %v923, %v982
        %v990 = vadd.f32 %v924, %v980
        %v991 = vmul.f32 %v958, %v497
        %v992 = vmul.f32 %v958, %v498
        %v993 = vmul.f32 %v963, %v497
        %v994 = vmul.f32 %v963, %v498
        %999 = vrot.lane.b32.xlu0 %v991, 112
        %v1000 = vpop.permute.xlu0 %999
        %1001 = vrot.lane.b32.xlu0 %v992, 112
        %v1002 = vpop.permute.xlu0 %1001
        %1003 = vrot.lane.b32.xlu0 %v993, 112
        %v1004 = vpop.permute.xlu0 %1003
        %1005 = vrot.lane.b32.xlu0 %v994, 112
        %v1006 = vpop.permute.xlu0 %1005
        %v1007 = vsel %vm941, %v1000, %v1002
        %v1008 = vsel %vm941, %v1004, %v1006
        %v1013 = vadd.f32 %v948, %v1007
        %v1014 = vadd.f32 %v949, %v1002
        %v1015 = vadd.f32 %v950, %v1008
        %v1016 = vadd.f32 %v951, %v1006
        %v1017 = vld [vmem:[%s3] sm:$0xff]
        %v1018 = vld [vmem:[%s3 + $0x8] sm:$0xff]
        %1020 = vset.pattern.permute.xlu0 0
        %1021 = vperm.xlu0 %1020, %v1017
        %v1022 = vpop.permute.xlu0 %1021
        %1025 = vset.pattern.permute.xlu0 0
        %1026 = vperm.xlu0 %1025, %v1018
        %v1027 = vpop.permute.xlu0 %1026
        %v1029 = vadd.f32 %v987, %v1022
        %v1030 = vadd.f32 %v988, %v1022
        %v1031 = vadd.f32 %v989, %v1027
        %v1032 = vadd.f32 %v990, %v1027
        %v1033 = vmax.f32 %v1029, 0.0
        %v1034 = vmax.f32 %v1030, 0.0
        %v1035 = vmax.f32 %v1031, 0.0
        %v1036 = vmax.f32 %v1032, 0.0
        %1037 = vst [vmem:[#allocation2] sm:$0xff] %v1033
        %vm1038 = vcmask 261120
        %1039 = vst.msk [vmem:[#allocation2 + $0x8] sm:$0xff] %vm1038, %v1034
        %1040 = vst [vmem:[#allocation2 + $0x10] sm:$0xff] %v1035
        %1041 = vst.msk [vmem:[#allocation2 + $0x18] sm:$0xff] %vm1038, %v1036
        %v1042 = vld [vmem:[%s3] sm:$0xff]
        %v1043 = vld [vmem:[%s3 + $0x8] sm:$0xff]
        %1045 = vset.pattern.permute.xlu0 0
        %1046 = vperm.xlu0 %1045, %v1042
        %v1047 = vpop.permute.xlu0 %1046
        %1050 = vset.pattern.permute.xlu0 0
        %1051 = vperm.xlu0 %1050, %v1043
        %v1052 = vpop.permute.xlu0 %1051
        %v1054 = vadd.f32 %v1013, %v1047
        %v1055 = vadd.f32 %v1014, %v1047
        %v1056 = vadd.f32 %v1015, %v1052
        %v1057 = vadd.f32 %v1016, %v1052
        %v1058 = vmax.f32 %v1054, 0.0
        %v1059 = vmax.f32 %v1055, 0.0
        %v1060 = vmax.f32 %v1056, 0.0
        %v1061 = vmax.f32 %v1057, 0.0
        %1062 = vst [vmem:[#allocation3] sm:$0xff] %v1058
        %1063 = vst.msk [vmem:[#allocation3 + $0x8] sm:$0xff] %vm1038, %v1059
        %1064 = vst [vmem:[#allocation3 + $0x10] sm:$0xff] %v1060
        %1065 = vst.msk [vmem:[#allocation3 + $0x18] sm:$0xff] %vm1038, %v1061
        %v1066 = vld [vmem:[%s4] sm:$0xff]
        %v1067 = vld [vmem:[%s4 + $0x8] sm:$0xff]
        %v1068 = vld [vmem:[#allocation2] sm:$0xff]
        %v1069 = vld [vmem:[#allocation2 + $0x8] sm:$0xff]
        %v1070 = vld [vmem:[#allocation2 + $0x10] sm:$0xff]
        %v1071 = vld [vmem:[#allocation2 + $0x18] sm:$0xff]
        %s1072 = scalar_lea.vmem %s4, 16
        %v1073 = vld [vmem:[%s1072] sm:$0xff]
        %v1074 = vld [vmem:[%s1072 + $0x8] sm:$0xff]
        %v1075 = vld [vmem:[#allocation3] sm:$0xff]
        %v1076 = vld [vmem:[#allocation3 + $0x8] sm:$0xff]
        %v1077 = vld [vmem:[#allocation3 + $0x10] sm:$0xff]
        %v1078 = vld [vmem:[#allocation3 + $0x18] sm:$0xff]
        %vm1079 = vcmask 130048
        %v1081 = vsel %vm1079, %v1073, 0
        %v1084 = vsel %vm1079, %v1074, 0
        %1086 = vmatpush.msra.mxu0 0.0
        %1087 = vmatpush.msra.mxu0 0.0
        %1088 = vmatpush.msra.mxu0 0.0
        %1089 = vmatpush.msra.mxu0 0.0
        %1090 = vmatpush.msra.mxu0 0.0
        %1091 = vmatpush.msra.mxu0 0.0
        %1092 = vmatpush.msra.mxu0 0.0
        %1093 = vmatpush.msra.mxu0 0.0
        %1094 = vmatpush.msra.mxu0 0.0
        %1095 = vmatpush.msra.mxu0 0.0
        %1096 = vmatpush.msra.mxu0 0.0
        %1097 = vmatpush.msra.mxu0 0.0
        %1098 = vmatpush.msra.mxu0 0.0
        %1099 = vmatpush.msra.mxu0 0.0
        %1100 = vmatpush.msra.mxu0 %v1077
        %1101 = vmatpush.msra.mxu0 %v1075
        %1102 = vmatmul.f32.gmra.mxu0 %v1081
        %v1103 = vpop.f32.mrf.mxu0
        %v1104 = vadd.f32 0.0, %v1103
        %1105 = vmatmul.f32.gmra.mxu0 %v1084
        %v1106 = vpop.f32.mrf.mxu0
        %v1107 = vadd.f32 0.0, %v1106
        %1108 = vdwg.mxu0
        %1109 = vmatpush.msra.mxu0 0.0
        %1110 = vmatpush.msra.mxu0 0.0
        %1111 = vmatpush.msra.mxu0 0.0
        %1112 = vmatpush.msra.mxu0 0.0
        %1113 = vmatpush.msra.mxu0 0.0
        %1114 = vmatpush.msra.mxu0 0.0
        %1115 = vmatpush.msra.mxu0 0.0
        %1116 = vmatpush.msra.mxu0 0.0
        %1117 = vmatpush.msra.mxu0 0.0
        %1118 = vmatpush.msra.mxu0 0.0
        %1119 = vmatpush.msra.mxu0 0.0
        %1120 = vmatpush.msra.mxu0 0.0
        %1121 = vmatpush.msra.mxu0 0.0
        %1122 = vmatpush.msra.mxu0 0.0
        %1123 = vmatpush.msra.mxu0 %v1078
        %1124 = vmatpush.msra.mxu0 %v1076
        %1125 = vmatmul.f32.gmra.mxu0 %v1081
        %v1126 = vpop.f32.mrf.mxu0
        %v1127 = vadd.f32 0.0, %v1126
        %1128 = vmatmul.f32.gmra.mxu0 %v1084
        %v1129 = vpop.f32.mrf.mxu0
        %v1130 = vadd.f32 0.0, %v1129
        %1131 = vdwg.mxu0
        %v1133 = vsel %vm1079, %v1066, 0
        %v1136 = vsel %vm1079, %v1067, 0
        %1138 = vmatpush.msra.mxu0 0.0
        %1139 = vmatpush.msra.mxu0 0.0
        %1140 = vmatpush.msra.mxu0 0.0
        %1141 = vmatpush.msra.mxu0 0.0
        %1142 = vmatpush.msra.mxu0 0.0
        %1143 = vmatpush.msra.mxu0 0.0
        %1144 = vmatpush.msra.mxu0 0.0
        %1145 = vmatpush.msra.mxu0 0.0
        %1146 = vmatpush.msra.mxu0 0.0
        %1147 = vmatpush.msra.mxu0 0.0
        %1148 = vmatpush.msra.mxu0 0.0
        %1149 = vmatpush.msra.mxu0 0.0
        %1150 = vmatpush.msra.mxu0 0.0
        %1151 = vmatpush.msra.mxu0 0.0
        %1152 = vmatpush.msra.mxu0 %v1070
        %1153 = vmatpush.msra.mxu0 %v1068
        %1154 = vmatmul.f32.gmra.mxu0 %v1133
        %v1155 = vpop.f32.mrf.mxu0
        %v1156 = vadd.f32 %v1104, %v1155
        %1157 = vmatmul.f32.gmra.mxu0 %v1136
        %v1158 = vpop.f32.mrf.mxu0
        %v1159 = vadd.f32 %v1107, %v1158
        %1160 = vdwg.mxu0
        %1161 = vmatpush.msra.mxu0 0.0
        %1162 = vmatpush.msra.mxu0 0.0
        %1163 = vmatpush.msra.mxu0 0.0
        %1164 = vmatpush.msra.mxu0 0.0
        %1165 = vmatpush.msra.mxu0 0.0
        %1166 = vmatpush.msra.mxu0 0.0
        %1167 = vmatpush.msra.mxu0 0.0
        %1168 = vmatpush.msra.mxu0 0.0
        %1169 = vmatpush.msra.mxu0 0.0
        %1170 = vmatpush.msra.mxu0 0.0
        %1171 = vmatpush.msra.mxu0 0.0
        %1172 = vmatpush.msra.mxu0 0.0
        %1173 = vmatpush.msra.mxu0 0.0
        %1174 = vmatpush.msra.mxu0 0.0
        %1175 = vmatpush.msra.mxu0 %v1071
        %1176 = vmatpush.msra.mxu0 %v1069
        %1177 = vmatmul.f32.gmra.mxu0 %v1133
        %v1178 = vpop.f32.mrf.mxu0
        %v1179 = vadd.f32 %v1127, %v1178
        %1180 = vmatmul.f32.gmra.mxu0 %v1136
        %v1181 = vpop.f32.mrf.mxu0
        %v1182 = vadd.f32 %v1130, %v1181
        %1183 = vdwg.mxu0
        %s1184 = scalar_lea.vmem %s4, 32
        %v1185 = vld [vmem:[%s1184] sm:$0xff]
        %v1186 = vld [vmem:[%s1184 + $0x8] sm:$0xff]
        %1191 = vrot.lane.b32.xlu0 %v1068, 127
        %v1192 = vpop.permute.xlu0 %1191
        %1193 = vrot.lane.b32.xlu0 %v1069, 127
        %v1194 = vpop.permute.xlu0 %1193
        %1195 = vrot.lane.b32.xlu0 %v1070, 127
        %v1196 = vpop.permute.xlu0 %1195
        %1197 = vrot.lane.b32.xlu0 %v1071, 127
        %v1198 = vpop.permute.xlu0 %1197
        %v1199 = vsel %vm546, %v1192, %v1194
        %v1200 = vsel %vm546, %v1196, %v1198
        %v1206 = vsel %vm1079, %v1185, 0
        %v1209 = vsel %vm1079, %v1186, 0
        %1211 = vmatpush.msra.mxu0 0.0
        %1212 = vmatpush.msra.mxu0 0.0
        %1213 = vmatpush.msra.mxu0 0.0
        %1214 = vmatpush.msra.mxu0 0.0
        %1215 = vmatpush.msra.mxu0 0.0
        %1216 = vmatpush.msra.mxu0 0.0
        %1217 = vmatpush.msra.mxu0 0.0
        %1218 = vmatpush.msra.mxu0 0.0
        %1219 = vmatpush.msra.mxu0 0.0
        %1220 = vmatpush.msra.mxu0 0.0
        %1221 = vmatpush.msra.mxu0 0.0
        %1222 = vmatpush.msra.mxu0 0.0
        %1223 = vmatpush.msra.mxu0 0.0
        %1224 = vmatpush.msra.mxu0 0.0
        %1225 = vmatpush.msra.mxu0 %v1200
        %1226 = vmatpush.msra.mxu0 %v1199
        %1227 = vmatmul.f32.gmra.mxu0 %v1206
        %v1228 = vpop.f32.mrf.mxu0
        %v1229 = vadd.f32 0.0, %v1228
        %1230 = vmatmul.f32.gmra.mxu0 %v1209
        %v1231 = vpop.f32.mrf.mxu0
        %v1232 = vadd.f32 0.0, %v1231
        %1233 = vdwg.mxu0
        %1234 = vmatpush.msra.mxu0 0.0
        %1235 = vmatpush.msra.mxu0 0.0
        %1236 = vmatpush.msra.mxu0 0.0
        %1237 = vmatpush.msra.mxu0 0.0
        %1238 = vmatpush.msra.mxu0 0.0
        %1239 = vmatpush.msra.mxu0 0.0
        %1240 = vmatpush.msra.mxu0 0.0
        %1241 = vmatpush.msra.mxu0 0.0
        %1242 = vmatpush.msra.mxu0 0.0
        %1243 = vmatpush.msra.mxu0 0.0
        %1244 = vmatpush.msra.mxu0 0.0
        %1245 = vmatpush.msra.mxu0 0.0
        %1246 = vmatpush.msra.mxu0 0.0
        %1247 = vmatpush.msra.mxu0 0.0
        %1248 = vmatpush.msra.mxu0 %v1198
        %1249 = vmatpush.msra.mxu0 %v1194
        %1250 = vmatmul.f32.gmra.mxu0 %v1206
        %v1251 = vpop.f32.mrf.mxu0
        %v1252 = vadd.f32 0.0, %v1251
        %1253 = vmatmul.f32.gmra.mxu0 %v1209
        %v1254 = vpop.f32.mrf.mxu0
        %v1255 = vadd.f32 0.0, %v1254
        %1256 = vdwg.mxu0
        %v1257 = vadd.f32 %v1156, %v1229
        %v1258 = vadd.f32 %v1179, %v1252
        %v1259 = vadd.f32 %v1159, %v1232
        %v1260 = vadd.f32 %v1182, %v1255
        %s1261 = scalar_lea.vmem %s4, 48
        %v1262 = vld [vmem:[%s1261] sm:$0xff]
        %v1263 = vld [vmem:[%s1261 + $0x8] sm:$0xff]
        %1268 = vrot.lane.b32.xlu0 %v1075, 121
        %v1269 = vpop.permute.xlu0 %1268
        %1270 = vrot.lane.b32.xlu0 %v1076, 121
        %v1271 = vpop.permute.xlu0 %1270
        %1272 = vrot.lane.b32.xlu0 %v1077, 121
        %v1273 = vpop.permute.xlu0 %1272
        %1274 = vrot.lane.b32.xlu0 %v1078, 121
        %v1275 = vpop.permute.xlu0 %1274
        %v1276 = vsel %vm651, %v1269, %v1271
        %v1277 = vsel %vm651, %v1273, %v1275
        %v1283 = vsel %vm1079, %v1262, 0
        %v1286 = vsel %vm1079, %v1263, 0
        %1288 = vmatpush.msra.mxu0 0.0
        %1289 = vmatpush.msra.mxu0 0.0
        %1290 = vmatpush.msra.mxu0 0.0
        %1291 = vmatpush.msra.mxu0 0.0
        %1292 = vmatpush.msra.mxu0 0.0
        %1293 = vmatpush.msra.mxu0 0.0
        %1294 = vmatpush.msra.mxu0 0.0
        %1295 = vmatpush.msra.mxu0 0.0
        %1296 = vmatpush.msra.mxu0 0.0
        %1297 = vmatpush.msra.mxu0 0.0
        %1298 = vmatpush.msra.mxu0 0.0
        %1299 = vmatpush.msra.mxu0 0.0
        %1300 = vmatpush.msra.mxu0 0.0
        %1301 = vmatpush.msra.mxu0 0.0
        %1302 = vmatpush.msra.mxu0 %v1277
        %1303 = vmatpush.msra.mxu0 %v1276
        %1304 = vmatmul.f32.gmra.mxu0 %v1283
        %v1305 = vpop.f32.mrf.mxu0
        %v1306 = vadd.f32 0.0, %v1305
        %1307 = vmatmul.f32.gmra.mxu0 %v1286
        %v1308 = vpop.f32.mrf.mxu0
        %v1309 = vadd.f32 0.0, %v1308
        %1310 = vdwg.mxu0
        %1311 = vmatpush.msra.mxu0 0.0
        %1312 = vmatpush.msra.mxu0 0.0
        %1313 = vmatpush.msra.mxu0 0.0
        %1314 = vmatpush.msra.mxu0 0.0
        %1315 = vmatpush.msra.mxu0 0.0
        %1316 = vmatpush.msra.mxu0 0.0
        %1317 = vmatpush.msra.mxu0 0.0
        %1318 = vmatpush.msra.mxu0 0.0
        %1319 = vmatpush.msra.mxu0 0.0
        %1320 = vmatpush.msra.mxu0 0.0
        %1321 = vmatpush.msra.mxu0 0.0
        %1322 = vmatpush.msra.mxu0 0.0
        %1323 = vmatpush.msra.mxu0 0.0
        %1324 = vmatpush.msra.mxu0 0.0
        %1325 = vmatpush.msra.mxu0 %v1275
        %1326 = vmatpush.msra.mxu0 %v1271
        %1327 = vmatmul.f32.gmra.mxu0 %v1283
        %v1328 = vpop.f32.mrf.mxu0
        %v1329 = vadd.f32 0.0, %v1328
        %1330 = vmatmul.f32.gmra.mxu0 %v1286
        %v1331 = vpop.f32.mrf.mxu0
        %v1332 = vadd.f32 0.0, %v1331
        %1333 = vdwg.mxu0
        %v1334 = vadd.f32 %v1257, %v1306
        %v1335 = vadd.f32 %v1258, %v1329
        %v1336 = vadd.f32 %v1259, %v1309
        %v1337 = vadd.f32 %v1260, %v1332
        %s1338 = scalar_lea.vmem %s4, 64
        %v1339 = vld [vmem:[%s1338] sm:$0xff]
        %v1340 = vld [vmem:[%s1338 + $0x8] sm:$0xff]
        %1341 = vrot.lane.b32.xlu0 %v1068, 120
        %v1342 = vpop.permute.xlu0 %1341
        %1343 = vrot.lane.b32.xlu0 %v1069, 120
        %v1344 = vpop.permute.xlu0 %1343
        %1345 = vrot.lane.b32.xlu0 %v1070, 120
        %v1346 = vpop.permute.xlu0 %1345
        %1347 = vrot.lane.b32.xlu0 %v1071, 120
        %v1348 = vpop.permute.xlu0 %1347
        %v1349 = vsel %vm678, %v1342, %v1344
        %v1350 = vsel %vm678, %v1346, %v1348
        %v1356 = vsel %vm1079, %v1339, 0
        %v1359 = vsel %vm1079, %v1340, 0
        %1361 = vmatpush.msra.mxu0 0.0
        %1362 = vmatpush.msra.mxu0 0.0
        %1363 = vmatpush.msra.mxu0 0.0
        %1364 = vmatpush.msra.mxu0 0.0
        %1365 = vmatpush.msra.mxu0 0.0
        %1366 = vmatpush.msra.mxu0 0.0
        %1367 = vmatpush.msra.mxu0 0.0
        %1368 = vmatpush.msra.mxu0 0.0
        %1369 = vmatpush.msra.mxu0 0.0
        %1370 = vmatpush.msra.mxu0 0.0
        %1371 = vmatpush.msra.mxu0 0.0
        %1372 = vmatpush.msra.mxu0 0.0
        %1373 = vmatpush.msra.mxu0 0.0
        %1374 = vmatpush.msra.mxu0 0.0
        %1375 = vmatpush.msra.mxu0 %v1350
        %1376 = vmatpush.msra.mxu0 %v1349
        %1377 = vmatmul.f32.gmra.mxu0 %v1356
        %v1378 = vpop.f32.mrf.mxu0
        %v1379 = vadd.f32 0.0, %v1378
        %1380 = vmatmul.f32.gmra.mxu0 %v1359
        %v1381 = vpop.f32.mrf.mxu0
        %v1382 = vadd.f32 0.0, %v1381
        %1383 = vdwg.mxu0
        %1384 = vmatpush.msra.mxu0 0.0
        %1385 = vmatpush.msra.mxu0 0.0
        %1386 = vmatpush.msra.mxu0 0.0
        %1387 = vmatpush.msra.mxu0 0.0
        %1388 = vmatpush.msra.mxu0 0.0
        %1389 = vmatpush.msra.mxu0 0.0
        %1390 = vmatpush.msra.mxu0 0.0
        %1391 = vmatpush.msra.mxu0 0.0
        %1392 = vmatpush.msra.mxu0 0.0
        %1393 = vmatpush.msra.mxu0 0.0
        %1394 = vmatpush.msra.mxu0 0.0
        %1395 = vmatpush.msra.mxu0 0.0
        %1396 = vmatpush.msra.mxu0 0.0
        %1397 = vmatpush.msra.mxu0 0.0
        %1398 = vmatpush.msra.mxu0 %v1348
        %1399 = vmatpush.msra.mxu0 %v1344
        %1400 = vmatmul.f32.gmra.mxu0 %v1356
        %v1401 = vpop.f32.mrf.mxu0
        %v1402 = vadd.f32 0.0, %v1401
        %1403 = vmatmul.f32.gmra.mxu0 %v1359
        %v1404 = vpop.f32.mrf.mxu0
        %v1405 = vadd.f32 0.0, %v1404
        %1406 = vdwg.mxu0
        %v1407 = vadd.f32 %v1334, %v1379
        %v1408 = vadd.f32 %v1335, %v1402
        %v1409 = vadd.f32 %v1336, %v1382
        %v1410 = vadd.f32 %v1337, %v1405
        %s1411 = scalar_lea.vmem %s4, 80
        %v1412 = vld [vmem:[%s1411] sm:$0xff]
        %v1413 = vld [vmem:[%s1411 + $0x8] sm:$0xff]
        %1414 = vrot.lane.b32.xlu0 %v1075, 120
        %v1415 = vpop.permute.xlu0 %1414
        %1416 = vrot.lane.b32.xlu0 %v1076, 120
        %v1417 = vpop.permute.xlu0 %1416
        %1418 = vrot.lane.b32.xlu0 %v1077, 120
        %v1419 = vpop.permute.xlu0 %1418
        %1420 = vrot.lane.b32.xlu0 %v1078, 120
        %v1421 = vpop.permute.xlu0 %1420
        %v1422 = vsel %vm678, %v1415, %v1417
        %v1423 = vsel %vm678, %v1419, %v1421
        %v1429 = vsel %vm1079, %v1412, 0
        %v1432 = vsel %vm1079, %v1413, 0
        %1434 = vmatpush.msra.mxu0 0.0
        %1435 = vmatpush.msra.mxu0 0.0
        %1436 = vmatpush.msra.mxu0 0.0
        %1437 = vmatpush.msra.mxu0 0.0
        %1438 = vmatpush.msra.mxu0 0.0
        %1439 = vmatpush.msra.mxu0 0.0
        %1440 = vmatpush.msra.mxu0 0.0
        %1441 = vmatpush.msra.mxu0 0.0
        %1442 = vmatpush.msra.mxu0 0.0
        %1443 = vmatpush.msra.mxu0 0.0
        %1444 = vmatpush.msra.mxu0 0.0
        %1445 = vmatpush.msra.mxu0 0.0
        %1446 = vmatpush.msra.mxu0 0.0
        %1447 = vmatpush.msra.mxu0 0.0
        %1448 = vmatpush.msra.mxu0 %v1423
        %1449 = vmatpush.msra.mxu0 %v1422
        %1450 = vmatmul.f32.gmra.mxu0 %v1429
        %v1451 = vpop.f32.mrf.mxu0
        %v1452 = vadd.f32 0.0, %v1451
        %1453 = vmatmul.f32.gmra.mxu0 %v1432
        %v1454 = vpop.f32.mrf.mxu0
        %v1455 = vadd.f32 0.0, %v1454
        %1456 = vdwg.mxu0
        %1457 = vmatpush.msra.mxu0 0.0
        %1458 = vmatpush.msra.mxu0 0.0
        %1459 = vmatpush.msra.mxu0 0.0
        %1460 = vmatpush.msra.mxu0 0.0
        %1461 = vmatpush.msra.mxu0 0.0
        %1462 = vmatpush.msra.mxu0 0.0
        %1463 = vmatpush.msra.mxu0 0.0
        %1464 = vmatpush.msra.mxu0 0.0
        %1465 = vmatpush.msra.mxu0 0.0
        %1466 = vmatpush.msra.mxu0 0.0
        %1467 = vmatpush.msra.mxu0 0.0
        %1468 = vmatpush.msra.mxu0 0.0
        %1469 = vmatpush.msra.mxu0 0.0
        %1470 = vmatpush.msra.mxu0 0.0
        %1471 = vmatpush.msra.mxu0 %v1421
        %1472 = vmatpush.msra.mxu0 %v1417
        %1473 = vmatmul.f32.gmra.mxu0 %v1429
        %v1474 = vpop.f32.mrf.mxu0
        %v1475 = vadd.f32 0.0, %v1474
        %1476 = vmatmul.f32.gmra.mxu0 %v1432
        %v1477 = vpop.f32.mrf.mxu0
        %v1478 = vadd.f32 0.0, %v1477
        %1479 = vdwg.mxu0
        %v1480 = vadd.f32 %v1407, %v1452
        %v1481 = vadd.f32 %v1408, %v1475
        %v1482 = vadd.f32 %v1409, %v1455
        %v1483 = vadd.f32 %v1410, %v1478
        %s1484 = scalar_lea.vmem %s4, 96
        %v1485 = vld [vmem:[%s1484] sm:$0xff]
        %v1486 = vld [vmem:[%s1484 + $0x8] sm:$0xff]
        %1487 = vrot.lane.b32.xlu0 %v1068, 113
        %v1488 = vpop.permute.xlu0 %1487
        %1489 = vrot.lane.b32.xlu0 %v1069, 113
        %v1490 = vpop.permute.xlu0 %1489
        %1491 = vrot.lane.b32.xlu0 %v1070, 113
        %v1492 = vpop.permute.xlu0 %1491
        %1493 = vrot.lane.b32.xlu0 %v1071, 113
        %v1494 = vpop.permute.xlu0 %1493
        %v1495 = vsel %vm849, %v1488, %v1490
        %v1496 = vsel %vm849, %v1492, %v1494
        %v1502 = vsel %vm1079, %v1485, 0
        %v1505 = vsel %vm1079, %v1486, 0
        %1507 = vmatpush.msra.mxu0 0.0
        %1508 = vmatpush.msra.mxu0 0.0
        %1509 = vmatpush.msra.mxu0 0.0
        %1510 = vmatpush.msra.mxu0 0.0
        %1511 = vmatpush.msra.mxu0 0.0
        %1512 = vmatpush.msra.mxu0 0.0
        %1513 = vmatpush.msra.mxu0 0.0
        %1514 = vmatpush.msra.mxu0 0.0
        %1515 = vmatpush.msra.mxu0 0.0
        %1516 = vmatpush.msra.mxu0 0.0
        %1517 = vmatpush.msra.mxu0 0.0
        %1518 = vmatpush.msra.mxu0 0.0
        %1519 = vmatpush.msra.mxu0 0.0
        %1520 = vmatpush.msra.mxu0 0.0
        %1521 = vmatpush.msra.mxu0 %v1496
        %1522 = vmatpush.msra.mxu0 %v1495
        %1523 = vmatmul.f32.gmra.mxu0 %v1502
        %v1524 = vpop.f32.mrf.mxu0
        %v1525 = vadd.f32 0.0, %v1524
        %1526 = vmatmul.f32.gmra.mxu0 %v1505
        %v1527 = vpop.f32.mrf.mxu0
        %v1528 = vadd.f32 0.0, %v1527
        %1529 = vdwg.mxu0
        %1530 = vmatpush.msra.mxu0 0.0
        %1531 = vmatpush.msra.mxu0 0.0
        %1532 = vmatpush.msra.mxu0 0.0
        %1533 = vmatpush.msra.mxu0 0.0
        %1534 = vmatpush.msra.mxu0 0.0
        %1535 = vmatpush.msra.mxu0 0.0
        %1536 = vmatpush.msra.mxu0 0.0
        %1537 = vmatpush.msra.mxu0 0.0
        %1538 = vmatpush.msra.mxu0 0.0
        %1539 = vmatpush.msra.mxu0 0.0
        %1540 = vmatpush.msra.mxu0 0.0
        %1541 = vmatpush.msra.mxu0 0.0
        %1542 = vmatpush.msra.mxu0 0.0
        %1543 = vmatpush.msra.mxu0 0.0
        %1544 = vmatpush.msra.mxu0 %v1494
        %1545 = vmatpush.msra.mxu0 %v1490
        %1546 = vmatmul.f32.gmra.mxu0 %v1502
        %v1547 = vpop.f32.mrf.mxu0
        %v1548 = vadd.f32 0.0, %v1547
        %1549 = vmatmul.f32.gmra.mxu0 %v1505
        %v1550 = vpop.f32.mrf.mxu0
        %v1551 = vadd.f32 0.0, %v1550
        %1552 = vdwg.mxu0
        %v1553 = vadd.f32 %v1480, %v1525
        %v1554 = vadd.f32 %v1481, %v1548
        %v1555 = vadd.f32 %v1482, %v1528
        %v1556 = vadd.f32 %v1483, %v1551
        %s1557 = scalar_lea.vmem %s4, 112
        %v1558 = vld [vmem:[%s1557] sm:$0xff]
        %v1559 = vld [vmem:[%s1557 + $0x8] sm:$0xff]
        %1560 = vrot.lane.b32.xlu0 %v1075, 113
        %v1561 = vpop.permute.xlu0 %1560
        %1562 = vrot.lane.b32.xlu0 %v1076, 113
        %v1563 = vpop.permute.xlu0 %1562
        %1564 = vrot.lane.b32.xlu0 %v1077, 113
        %v1565 = vpop.permute.xlu0 %1564
        %1566 = vrot.lane.b32.xlu0 %v1078, 113
        %v1567 = vpop.permute.xlu0 %1566
        %v1568 = vsel %vm849, %v1561, %v1563
        %v1569 = vsel %vm849, %v1565, %v1567
        %v1575 = vsel %vm1079, %v1558, 0
        %v1578 = vsel %vm1079, %v1559, 0
        %1580 = vmatpush.msra.mxu0 0.0
        %1581 = vmatpush.msra.mxu0 0.0
        %1582 = vmatpush.msra.mxu0 0.0
        %1583 = vmatpush.msra.mxu0 0.0
        %1584 = vmatpush.msra.mxu0 0.0
        %1585 = vmatpush.msra.mxu0 0.0
        %1586 = vmatpush.msra.mxu0 0.0
        %1587 = vmatpush.msra.mxu0 0.0
        %1588 = vmatpush.msra.mxu0 0.0
        %1589 = vmatpush.msra.mxu0 0.0
        %1590 = vmatpush.msra.mxu0 0.0
        %1591 = vmatpush.msra.mxu0 0.0
        %1592 = vmatpush.msra.mxu0 0.0
        %1593 = vmatpush.msra.mxu0 0.0
        %1594 = vmatpush.msra.mxu0 %v1569
        %1595 = vmatpush.msra.mxu0 %v1568
        %1596 = vmatmul.f32.gmra.mxu0 %v1575
        %v1597 = vpop.f32.mrf.mxu0
        %v1598 = vadd.f32 0.0, %v1597
        %1599 = vmatmul.f32.gmra.mxu0 %v1578
        %v1600 = vpop.f32.mrf.mxu0
        %v1601 = vadd.f32 0.0, %v1600
        %1602 = vdwg.mxu0
        %1603 = vmatpush.msra.mxu0 0.0
        %1604 = vmatpush.msra.mxu0 0.0
        %1605 = vmatpush.msra.mxu0 0.0
        %1606 = vmatpush.msra.mxu0 0.0
        %1607 = vmatpush.msra.mxu0 0.0
        %1608 = vmatpush.msra.mxu0 0.0
        %1609 = vmatpush.msra.mxu0 0.0
        %1610 = vmatpush.msra.mxu0 0.0
        %1611 = vmatpush.msra.mxu0 0.0
        %1612 = vmatpush.msra.mxu0 0.0
        %1613 = vmatpush.msra.mxu0 0.0
        %1614 = vmatpush.msra.mxu0 0.0
        %1615 = vmatpush.msra.mxu0 0.0
        %1616 = vmatpush.msra.mxu0 0.0
        %1617 = vmatpush.msra.mxu0 %v1567
        %1618 = vmatpush.msra.mxu0 %v1563
        %1619 = vmatmul.f32.gmra.mxu0 %v1575
        %v1620 = vpop.f32.mrf.mxu0
        %v1621 = vadd.f32 0.0, %v1620
        %1622 = vmatmul.f32.gmra.mxu0 %v1578
        %v1623 = vpop.f32.mrf.mxu0
        %v1624 = vadd.f32 0.0, %v1623
        %1625 = vdwg.mxu0
        %v1626 = vadd.f32 %v1553, %v1598
        %v1627 = vadd.f32 %v1554, %v1621
        %v1628 = vadd.f32 %v1555, %v1601
        %v1629 = vadd.f32 %v1556, %v1624
        %s1630 = scalar_lea.vmem %s4, 128
        %v1631 = vld [vmem:[%s1630] sm:$0xff]
        %v1632 = vld [vmem:[%s1630 + $0x8] sm:$0xff]
        %1633 = vrot.lane.b32.xlu0 %v1068, 112
        %v1634 = vpop.permute.xlu0 %1633
        %1635 = vrot.lane.b32.xlu0 %v1069, 112
        %v1636 = vpop.permute.xlu0 %1635
        %1637 = vrot.lane.b32.xlu0 %v1070, 112
        %v1638 = vpop.permute.xlu0 %1637
        %1639 = vrot.lane.b32.xlu0 %v1071, 112
        %v1640 = vpop.permute.xlu0 %1639
        %v1641 = vsel %vm941, %v1634, %v1636
        %v1642 = vsel %vm941, %v1638, %v1640
        %v1648 = vsel %vm1079, %v1631, 0
        %v1651 = vsel %vm1079, %v1632, 0
        %1653 = vmatpush.msra.mxu0 0.0
        %1654 = vmatpush.msra.mxu0 0.0
        %1655 = vmatpush.msra.mxu0 0.0
        %1656 = vmatpush.msra.mxu0 0.0
        %1657 = vmatpush.msra.mxu0 0.0
        %1658 = vmatpush.msra.mxu0 0.0
        %1659 = vmatpush.msra.mxu0 0.0
        %1660 = vmatpush.msra.mxu0 0.0
        %1661 = vmatpush.msra.mxu0 0.0
        %1662 = vmatpush.msra.mxu0 0.0
        %1663 = vmatpush.msra.mxu0 0.0
        %1664 = vmatpush.msra.mxu0 0.0
        %1665 = vmatpush.msra.mxu0 0.0
        %1666 = vmatpush.msra.mxu0 0.0
        %1667 = vmatpush.msra.mxu0 %v1642
        %1668 = vmatpush.msra.mxu0 %v1641
        %1669 = vmatmul.f32.gmra.mxu0 %v1648
        %v1670 = vpop.f32.mrf.mxu0
        %v1671 = vadd.f32 0.0, %v1670
        %1672 = vmatmul.f32.gmra.mxu0 %v1651
        %v1673 = vpop.f32.mrf.mxu0
        %v1674 = vadd.f32 0.0, %v1673
        %1675 = vdwg.mxu0
        %1676 = vmatpush.msra.mxu0 0.0
        %1677 = vmatpush.msra.mxu0 0.0
        %1678 = vmatpush.msra.mxu0 0.0
        %1679 = vmatpush.msra.mxu0 0.0
        %1680 = vmatpush.msra.mxu0 0.0
        %1681 = vmatpush.msra.mxu0 0.0
        %1682 = vmatpush.msra.mxu0 0.0
        %1683 = vmatpush.msra.mxu0 0.0
        %1684 = vmatpush.msra.mxu0 0.0
        %1685 = vmatpush.msra.mxu0 0.0
        %1686 = vmatpush.msra.mxu0 0.0
        %1687 = vmatpush.msra.mxu0 0.0
        %1688 = vmatpush.msra.mxu0 0.0
        %1689 = vmatpush.msra.mxu0 0.0
        %1690 = vmatpush.msra.mxu0 %v1640
        %1691 = vmatpush.msra.mxu0 %v1636
        %1692 = vmatmul.f32.gmra.mxu0 %v1648
        %v1693 = vpop.f32.mrf.mxu0
        %v1694 = vadd.f32 0.0, %v1693
        %1695 = vmatmul.f32.gmra.mxu0 %v1651
        %v1696 = vpop.f32.mrf.mxu0
        %v1697 = vadd.f32 0.0, %v1696
        %1698 = vdwg.mxu0
        %v1699 = vadd.f32 %v1626, %v1671
        %v1700 = vadd.f32 %v1627, %v1694
        %v1701 = vadd.f32 %v1628, %v1674
        %v1702 = vadd.f32 %v1629, %v1697
        %v1703 = vld [vmem:[%s5] sm:$0xff]
        %v1704 = vld [vmem:[%s5 + $0x8] sm:$0xff]
        %1706 = vset.pattern.permute.xlu0 0
        %1707 = vperm.xlu0 %1706, %v1703
        %v1708 = vpop.permute.xlu0 %1707
        %1711 = vset.pattern.permute.xlu0 0
        %1712 = vperm.xlu0 %1711, %v1704
        %v1713 = vpop.permute.xlu0 %1712
        %v1715 = vadd.f32 %v1699, %v1708
        %v1716 = vadd.f32 %v1700, %v1708
        %v1717 = vadd.f32 %v1701, %v1713
        %v1718 = vadd.f32 %v1702, %v1713
        %v1719 = vmax.f32 %v1715, 0.0
        %v1720 = vmax.f32 %v1716, 0.0
        %v1721 = vmax.f32 %v1717, 0.0
        %v1722 = vmax.f32 %v1718, 0.0
        %v1723 = vld [vmem:[%s12] sm:$0x3]
        %v1725 = vperm.slane %v1723, 0
        %v1726 = vperm.slane %v1723, 1
        %v1729 = vmul.f32 %v1719, %v1725
        %v1730 = vmul.f32 %v1720, %v1726
        %v1731 = vmul.f32 %v1721, %v1725
        %v1732 = vmul.f32 %v1722, %v1726
        %1733 = vst [vmem:[#allocation4] sm:$0xff] 0.0
        %vm1734 = vcmask 392192
        %1735 = vst.msk [vmem:[#allocation4 + $0x8] sm:$0xff] %vm1734, 0.0
        %1736 = vst [vmem:[#allocation4 + $0x10] sm:$0xff] 0.0
        %1737 = vst.msk [vmem:[#allocation4 + $0x18] sm:$0xff] %vm1734, 0.0
        %1742 = vrot.lane.b32.xlu0 %v1729, 16
        %v1743 = vpop.permute.xlu0 %1742
        %1744 = vrot.lane.b32.xlu0 %v1730, 16
        %v1745 = vpop.permute.xlu0 %1744
        %1746 = vrot.lane.b32.xlu0 %v1731, 16
        %v1747 = vpop.permute.xlu0 %1746
        %1748 = vrot.lane.b32.xlu0 %v1732, 16
        %v1749 = vpop.permute.xlu0 %1748
        %v1750 = vsel %vm1079, %v1743, %v1745
        %v1751 = vsel %vm1079, %v1747, %v1749
        %vm1756 = vcmask 1047680
        %1757 = vst.msk [vmem:[#allocation4] sm:$0xff] %vm1756, %v1743
        %1758 = vst.msk [vmem:[#allocation4 + $0x8] sm:$0xff] %vm1038, %v1750
        %1759 = vst.msk [vmem:[#allocation4 + $0x10] sm:$0xff] %vm1756, %v1747
        %1760 = vst.msk [vmem:[#allocation4 + $0x18] sm:$0xff] %vm1038, %v1751
        %v1761 = vld [vmem:[%s6] sm:$0xff]
        %v1762 = vld [vmem:[%s6 + $0x8] sm:$0xff]
        %v1763 = vld [vmem:[#allocation4] sm:$0xff]
        %v1764 = vld [vmem:[#allocation4 + $0x8] sm:$0xff]
        %v1765 = vld [vmem:[#allocation4 + $0x10] sm:$0xff]
        %v1766 = vld [vmem:[#allocation4 + $0x18] sm:$0xff]
        %s1767 = scalar_lea.vmem %s6, 16
        %v1768 = vld [vmem:[%s1767] sm:$0xff]
        %v1769 = vld [vmem:[%s1767 + $0x8] sm:$0xff]
        %1774 = vrot.lane.b32.xlu0 %v1763, 127
        %v1775 = vpop.permute.xlu0 %1774
        %1776 = vrot.lane.b32.xlu0 %v1764, 127
        %v1777 = vpop.permute.xlu0 %1776
        %1778 = vrot.lane.b32.xlu0 %v1765, 127
        %v1779 = vpop.permute.xlu0 %1778
        %1780 = vrot.lane.b32.xlu0 %v1766, 127
        %v1781 = vpop.permute.xlu0 %1780
        %v1782 = vsel %vm546, %v1775, %v1777
        %v1783 = vsel %vm546, %v1779, %v1781
        %v1789 = vsel %vm1079, %v1768, 0
        %v1792 = vsel %vm1079, %v1769, 0
        %1794 = vmatpush.msra.mxu0 0.0
        %1795 = vmatpush.msra.mxu0 0.0
        %1796 = vmatpush.msra.mxu0 0.0
        %1797 = vmatpush.msra.mxu0 0.0
        %1798 = vmatpush.msra.mxu0 0.0
        %1799 = vmatpush.msra.mxu0 0.0
        %1800 = vmatpush.msra.mxu0 0.0
        %1801 = vmatpush.msra.mxu0 0.0
        %1802 = vmatpush.msra.mxu0 0.0
        %1803 = vmatpush.msra.mxu0 0.0
        %1804 = vmatpush.msra.mxu0 0.0
        %1805 = vmatpush.msra.mxu0 0.0
        %1806 = vmatpush.msra.mxu0 0.0
        %1807 = vmatpush.msra.mxu0 0.0
        %1808 = vmatpush.msra.mxu0 %v1783
        %1809 = vmatpush.msra.mxu0 %v1782
        %1810 = vmatmul.f32.gmra.mxu0 %v1789
        %v1811 = vpop.f32.mrf.mxu0
        %v1812 = vadd.f32 0.0, %v1811
        %1813 = vmatmul.f32.gmra.mxu0 %v1792
        %v1814 = vpop.f32.mrf.mxu0
        %v1815 = vadd.f32 0.0, %v1814
        %1816 = vdwg.mxu0
        %1817 = vmatpush.msra.mxu0 0.0
        %1818 = vmatpush.msra.mxu0 0.0
        %1819 = vmatpush.msra.mxu0 0.0
        %1820 = vmatpush.msra.mxu0 0.0
        %1821 = vmatpush.msra.mxu0 0.0
        %1822 = vmatpush.msra.mxu0 0.0
        %1823 = vmatpush.msra.mxu0 0.0
        %1824 = vmatpush.msra.mxu0 0.0
        %1825 = vmatpush.msra.mxu0 0.0
        %1826 = vmatpush.msra.mxu0 0.0
        %1827 = vmatpush.msra.mxu0 0.0
        %1828 = vmatpush.msra.mxu0 0.0
        %1829 = vmatpush.msra.mxu0 0.0
        %1830 = vmatpush.msra.mxu0 0.0
        %1831 = vmatpush.msra.mxu0 %v1781
        %1832 = vmatpush.msra.mxu0 %v1777
        %1833 = vmatmul.f32.gmra.mxu0 %v1789
        %v1834 = vpop.f32.mrf.mxu0
        %v1835 = vadd.f32 0.0, %v1834
        %1836 = vmatmul.f32.gmra.mxu0 %v1792
        %v1837 = vpop.f32.mrf.mxu0
        %v1838 = vadd.f32 0.0, %v1837
        %1839 = vdwg.mxu0
        %v1841 = vsel %vm1079, %v1761, 0
        %v1844 = vsel %vm1079, %v1762, 0
        %1846 = vmatpush.msra.mxu0 0.0
        %1847 = vmatpush.msra.mxu0 0.0
        %1848 = vmatpush.msra.mxu0 0.0
        %1849 = vmatpush.msra.mxu0 0.0
        %1850 = vmatpush.msra.mxu0 0.0
        %1851 = vmatpush.msra.mxu0 0.0
        %1852 = vmatpush.msra.mxu0 0.0
        %1853 = vmatpush.msra.mxu0 0.0
        %1854 = vmatpush.msra.mxu0 0.0
        %1855 = vmatpush.msra.mxu0 0.0
        %1856 = vmatpush.msra.mxu0 0.0
        %1857 = vmatpush.msra.mxu0 0.0
        %1858 = vmatpush.msra.mxu0 0.0
        %1859 = vmatpush.msra.mxu0 0.0
        %1860 = vmatpush.msra.mxu0 %v1765
        %1861 = vmatpush.msra.mxu0 %v1763
        %1862 = vmatmul.f32.gmra.mxu0 %v1841
        %v1863 = vpop.f32.mrf.mxu0
        %v1864 = vadd.f32 %v1812, %v1863
        %1865 = vmatmul.f32.gmra.mxu0 %v1844
        %v1866 = vpop.f32.mrf.mxu0
        %v1867 = vadd.f32 %v1815, %v1866
        %1868 = vdwg.mxu0
        %1869 = vmatpush.msra.mxu0 0.0
        %1870 = vmatpush.msra.mxu0 0.0
        %1871 = vmatpush.msra.mxu0 0.0
        %1872 = vmatpush.msra.mxu0 0.0
        %1873 = vmatpush.msra.mxu0 0.0
        %1874 = vmatpush.msra.mxu0 0.0
        %1875 = vmatpush.msra.mxu0 0.0
        %1876 = vmatpush.msra.mxu0 0.0
        %1877 = vmatpush.msra.mxu0 0.0
        %1878 = vmatpush.msra.mxu0 0.0
        %1879 = vmatpush.msra.mxu0 0.0
        %1880 = vmatpush.msra.mxu0 0.0
        %1881 = vmatpush.msra.mxu0 0.0
        %1882 = vmatpush.msra.mxu0 0.0
        %1883 = vmatpush.msra.mxu0 %v1766
        %1884 = vmatpush.msra.mxu0 %v1764
        %1885 = vmatmul.f32.gmra.mxu0 %v1841
        %v1886 = vpop.f32.mrf.mxu0
        %v1887 = vadd.f32 %v1835, %v1886
        %1888 = vmatmul.f32.gmra.mxu0 %v1844
        %v1889 = vpop.f32.mrf.mxu0
        %v1890 = vadd.f32 %v1838, %v1889
        %1891 = vdwg.mxu0
        %s1892 = scalar_lea.vmem %s6, 32
        %v1893 = vld [vmem:[%s1892] sm:$0xff]
        %v1894 = vld [vmem:[%s1892 + $0x8] sm:$0xff]
        %1895 = vrot.lane.b32.xlu0 %v1763, 126
        %v1896 = vpop.permute.xlu0 %1895
        %1897 = vrot.lane.b32.xlu0 %v1764, 126
        %v1898 = vpop.permute.xlu0 %1897
        %1899 = vrot.lane.b32.xlu0 %v1765, 126
        %v1900 = vpop.permute.xlu0 %1899
        %1901 = vrot.lane.b32.xlu0 %v1766, 126
        %v1902 = vpop.permute.xlu0 %1901
        %vm1903 = vcmask 1031168
        %v1904 = vsel %vm1903, %v1896, %v1898
        %v1905 = vsel %vm1903, %v1900, %v1902
        %v1911 = vsel %vm1079, %v1893, 0
        %v1914 = vsel %vm1079, %v1894, 0
        %1916 = vmatpush.msra.mxu0 0.0
        %1917 = vmatpush.msra.mxu0 0.0
        %1918 = vmatpush.msra.mxu0 0.0
        %1919 = vmatpush.msra.mxu0 0.0
        %1920 = vmatpush.msra.mxu0 0.0
        %1921 = vmatpush.msra.mxu0 0.0
        %1922 = vmatpush.msra.mxu0 0.0
        %1923 = vmatpush.msra.mxu0 0.0
        %1924 = vmatpush.msra.mxu0 0.0
        %1925 = vmatpush.msra.mxu0 0.0
        %1926 = vmatpush.msra.mxu0 0.0
        %1927 = vmatpush.msra.mxu0 0.0
        %1928 = vmatpush.msra.mxu0 0.0
        %1929 = vmatpush.msra.mxu0 0.0
        %1930 = vmatpush.msra.mxu0 %v1905
        %1931 = vmatpush.msra.mxu0 %v1904
        %1932 = vmatmul.f32.gmra.mxu0 %v1911
        %v1933 = vpop.f32.mrf.mxu0
        %v1934 = vadd.f32 0.0, %v1933
        %1935 = vmatmul.f32.gmra.mxu0 %v1914
        %v1936 = vpop.f32.mrf.mxu0
        %v1937 = vadd.f32 0.0, %v1936
        %1938 = vdwg.mxu0
        %1939 = vmatpush.msra.mxu0 0.0
        %1940 = vmatpush.msra.mxu0 0.0
        %1941 = vmatpush.msra.mxu0 0.0
        %1942 = vmatpush.msra.mxu0 0.0
        %1943 = vmatpush.msra.mxu0 0.0
        %1944 = vmatpush.msra.mxu0 0.0
        %1945 = vmatpush.msra.mxu0 0.0
        %1946 = vmatpush.msra.mxu0 0.0
        %1947 = vmatpush.msra.mxu0 0.0
        %1948 = vmatpush.msra.mxu0 0.0
        %1949 = vmatpush.msra.mxu0 0.0
        %1950 = vmatpush.msra.mxu0 0.0
        %1951 = vmatpush.msra.mxu0 0.0
        %1952 = vmatpush.msra.mxu0 0.0
        %1953 = vmatpush.msra.mxu0 %v1902
        %1954 = vmatpush.msra.mxu0 %v1898
        %1955 = vmatmul.f32.gmra.mxu0 %v1911
        %v1956 = vpop.f32.mrf.mxu0
        %v1957 = vadd.f32 0.0, %v1956
        %1958 = vmatmul.f32.gmra.mxu0 %v1914
        %v1959 = vpop.f32.mrf.mxu0
        %v1960 = vadd.f32 0.0, %v1959
        %1961 = vdwg.mxu0
        %v1962 = vadd.f32 %v1864, %v1934
        %v1963 = vadd.f32 %v1887, %v1957
        %v1964 = vadd.f32 %v1867, %v1937
        %v1965 = vadd.f32 %v1890, %v1960
        %s1966 = scalar_lea.vmem %s6, 48
        %v1967 = vld [vmem:[%s1966] sm:$0xff]
        %v1968 = vld [vmem:[%s1966 + $0x8] sm:$0xff]
        %1969 = vrot.lane.b32.xlu0 %v1763, 113
        %v1970 = vpop.permute.xlu0 %1969
        %1971 = vrot.lane.b32.xlu0 %v1764, 113
        %v1972 = vpop.permute.xlu0 %1971
        %1973 = vrot.lane.b32.xlu0 %v1765, 113
        %v1974 = vpop.permute.xlu0 %1973
        %1975 = vrot.lane.b32.xlu0 %v1766, 113
        %v1976 = vpop.permute.xlu0 %1975
        %v1977 = vsel %vm849, %v1970, %v1972
        %v1978 = vsel %vm849, %v1974, %v1976
        %v1984 = vsel %vm1079, %v1967, 0
        %v1987 = vsel %vm1079, %v1968, 0
        %1989 = vmatpush.msra.mxu0 0.0
        %1990 = vmatpush.msra.mxu0 0.0
        %1991 = vmatpush.msra.mxu0 0.0
        %1992 = vmatpush.msra.mxu0 0.0
        %1993 = vmatpush.msra.mxu0 0.0
        %1994 = vmatpush.msra.mxu0 0.0
        %1995 = vmatpush.msra.mxu0 0.0
        %1996 = vmatpush.msra.mxu0 0.0
        %1997 = vmatpush.msra.mxu0 0.0
        %1998 = vmatpush.msra.mxu0 0.0
        %1999 = vmatpush.msra.mxu0 0.0
        %2000 = vmatpush.msra.mxu0 0.0
        %2001 = vmatpush.msra.mxu0 0.0
        %2002 = vmatpush.msra.mxu0 0.0
        %2003 = vmatpush.msra.mxu0 %v1978
        %2004 = vmatpush.msra.mxu0 %v1977
        %2005 = vmatmul.f32.gmra.mxu0 %v1984
        %v2006 = vpop.f32.mrf.mxu0
        %v2007 = vadd.f32 0.0, %v2006
        %2008 = vmatmul.f32.gmra.mxu0 %v1987
        %v2009 = vpop.f32.mrf.mxu0
        %v2010 = vadd.f32 0.0, %v2009
        %2011 = vdwg.mxu0
        %2012 = vmatpush.msra.mxu0 0.0
        %2013 = vmatpush.msra.mxu0 0.0
        %2014 = vmatpush.msra.mxu0 0.0
        %2015 = vmatpush.msra.mxu0 0.0
        %2016 = vmatpush.msra.mxu0 0.0
        %2017 = vmatpush.msra.mxu0 0.0
        %2018 = vmatpush.msra.mxu0 0.0
        %2019 = vmatpush.msra.mxu0 0.0
        %2020 = vmatpush.msra.mxu0 0.0
        %2021 = vmatpush.msra.mxu0 0.0
        %2022 = vmatpush.msra.mxu0 0.0
        %2023 = vmatpush.msra.mxu0 0.0
        %2024 = vmatpush.msra.mxu0 0.0
        %2025 = vmatpush.msra.mxu0 0.0
        %2026 = vmatpush.msra.mxu0 %v1976
        %2027 = vmatpush.msra.mxu0 %v1972
        %2028 = vmatmul.f32.gmra.mxu0 %v1984
        %v2029 = vpop.f32.mrf.mxu0
        %v2030 = vadd.f32 0.0, %v2029
        %2031 = vmatmul.f32.gmra.mxu0 %v1987
        %v2032 = vpop.f32.mrf.mxu0
        %v2033 = vadd.f32 0.0, %v2032
        %2034 = vdwg.mxu0
        %v2035 = vadd.f32 %v1962, %v2007
        %v2036 = vadd.f32 %v1963, %v2030
        %v2037 = vadd.f32 %v1964, %v2010
        %v2038 = vadd.f32 %v1965, %v2033
        %s2039 = scalar_lea.vmem %s6, 64
        %v2040 = vld [vmem:[%s2039] sm:$0xff]
        %v2041 = vld [vmem:[%s2039 + $0x8] sm:$0xff]
        %2042 = vrot.lane.b32.xlu0 %v1763, 112
        %v2043 = vpop.permute.xlu0 %2042
        %2044 = vrot.lane.b32.xlu0 %v1764, 112
        %v2045 = vpop.permute.xlu0 %2044
        %2046 = vrot.lane.b32.xlu0 %v1765, 112
        %v2047 = vpop.permute.xlu0 %2046
        %2048 = vrot.lane.b32.xlu0 %v1766, 112
        %v2049 = vpop.permute.xlu0 %2048
        %v2050 = vsel %vm941, %v2043, %v2045
        %v2051 = vsel %vm941, %v2047, %v2049
        %v2057 = vsel %vm1079, %v2040, 0
        %v2060 = vsel %vm1079, %v2041, 0
        %2062 = vmatpush.msra.mxu0 0.0
        %2063 = vmatpush.msra.mxu0 0.0
        %2064 = vmatpush.msra.mxu0 0.0
        %2065 = vmatpush.msra.mxu0 0.0
        %2066 = vmatpush.msra.mxu0 0.0
        %2067 = vmatpush.msra.mxu0 0.0
        %2068 = vmatpush.msra.mxu0 0.0
        %2069 = vmatpush.msra.mxu0 0.0
        %2070 = vmatpush.msra.mxu0 0.0
        %2071 = vmatpush.msra.mxu0 0.0
        %2072 = vmatpush.msra.mxu0 0.0
        %2073 = vmatpush.msra.mxu0 0.0
        %2074 = vmatpush.msra.mxu0 0.0
        %2075 = vmatpush.msra.mxu0 0.0
        %2076 = vmatpush.msra.mxu0 %v2051
        %2077 = vmatpush.msra.mxu0 %v2050
        %2078 = vmatmul.f32.gmra.mxu0 %v2057
        %v2079 = vpop.f32.mrf.mxu0
        %v2080 = vadd.f32 0.0, %v2079
        %2081 = vmatmul.f32.gmra.mxu0 %v2060
        %v2082 = vpop.f32.mrf.mxu0
        %v2083 = vadd.f32 0.0, %v2082
        %2084 = vdwg.mxu0
        %2085 = vmatpush.msra.mxu0 0.0
        %2086 = vmatpush.msra.mxu0 0.0
        %2087 = vmatpush.msra.mxu0 0.0
        %2088 = vmatpush.msra.mxu0 0.0
        %2089 = vmatpush.msra.mxu0 0.0
        %2090 = vmatpush.msra.mxu0 0.0
        %2091 = vmatpush.msra.mxu0 0.0
        %2092 = vmatpush.msra.mxu0 0.0
        %2093 = vmatpush.msra.mxu0 0.0
        %2094 = vmatpush.msra.mxu0 0.0
        %2095 = vmatpush.msra.mxu0 0.0
        %2096 = vmatpush.msra.mxu0 0.0
        %2097 = vmatpush.msra.mxu0 0.0
        %2098 = vmatpush.msra.mxu0 0.0
        %2099 = vmatpush.msra.mxu0 %v2049
        %2100 = vmatpush.msra.mxu0 %v2045
        %2101 = vmatmul.f32.gmra.mxu0 %v2057
        %v2102 = vpop.f32.mrf.mxu0
        %v2103 = vadd.f32 0.0, %v2102
        %2104 = vmatmul.f32.gmra.mxu0 %v2060
        %v2105 = vpop.f32.mrf.mxu0
        %v2106 = vadd.f32 0.0, %v2105
        %2107 = vdwg.mxu0
        %v2108 = vadd.f32 %v2035, %v2080
        %v2109 = vadd.f32 %v2036, %v2103
        %v2110 = vadd.f32 %v2037, %v2083
        %v2111 = vadd.f32 %v2038, %v2106
        %s2112 = scalar_lea.vmem %s6, 80
        %v2113 = vld [vmem:[%s2112] sm:$0xff]
        %v2114 = vld [vmem:[%s2112 + $0x8] sm:$0xff]
        %2115 = vrot.lane.b32.xlu0 %v1763, 111
        %v2116 = vpop.permute.xlu0 %2115
        %2117 = vrot.lane.b32.xlu0 %v1764, 111
        %v2118 = vpop.permute.xlu0 %2117
        %2119 = vrot.lane.b32.xlu0 %v1765, 111
        %v2120 = vpop.permute.xlu0 %2119
        %2121 = vrot.lane.b32.xlu0 %v1766, 111
        %v2122 = vpop.permute.xlu0 %2121
        %vm2123 = vcmask 908288
        %v2124 = vsel %vm2123, %v2116, %v2118
        %v2125 = vsel %vm2123, %v2120, %v2122
        %v2131 = vsel %vm1079, %v2113, 0
        %v2134 = vsel %vm1079, %v2114, 0
        %2136 = vmatpush.msra.mxu0 0.0
        %2137 = vmatpush.msra.mxu0 0.0
        %2138 = vmatpush.msra.mxu0 0.0
        %2139 = vmatpush.msra.mxu0 0.0
        %2140 = vmatpush.msra.mxu0 0.0
        %2141 = vmatpush.msra.mxu0 0.0
        %2142 = vmatpush.msra.mxu0 0.0
        %2143 = vmatpush.msra.mxu0 0.0
        %2144 = vmatpush.msra.mxu0 0.0
        %2145 = vmatpush.msra.mxu0 0.0
        %2146 = vmatpush.msra.mxu0 0.0
        %2147 = vmatpush.msra.mxu0 0.0
        %2148 = vmatpush.msra.mxu0 0.0
        %2149 = vmatpush.msra.mxu0 0.0
        %2150 = vmatpush.msra.mxu0 %v2125
        %2151 = vmatpush.msra.mxu0 %v2124
        %2152 = vmatmul.f32.gmra.mxu0 %v2131
        %v2153 = vpop.f32.mrf.mxu0
        %v2154 = vadd.f32 0.0, %v2153
        %2155 = vmatmul.f32.gmra.mxu0 %v2134
        %v2156 = vpop.f32.mrf.mxu0
        %v2157 = vadd.f32 0.0, %v2156
        %2158 = vdwg.mxu0
        %2159 = vmatpush.msra.mxu0 0.0
        %2160 = vmatpush.msra.mxu0 0.0
        %2161 = vmatpush.msra.mxu0 0.0
        %2162 = vmatpush.msra.mxu0 0.0
        %2163 = vmatpush.msra.mxu0 0.0
        %2164 = vmatpush.msra.mxu0 0.0
        %2165 = vmatpush.msra.mxu0 0.0
        %2166 = vmatpush.msra.mxu0 0.0
        %2167 = vmatpush.msra.mxu0 0.0
        %2168 = vmatpush.msra.mxu0 0.0
        %2169 = vmatpush.msra.mxu0 0.0
        %2170 = vmatpush.msra.mxu0 0.0
        %2171 = vmatpush.msra.mxu0 0.0
        %2172 = vmatpush.msra.mxu0 0.0
        %2173 = vmatpush.msra.mxu0 %v2122
        %2174 = vmatpush.msra.mxu0 %v2118
        %2175 = vmatmul.f32.gmra.mxu0 %v2131
        %v2176 = vpop.f32.mrf.mxu0
        %v2177 = vadd.f32 0.0, %v2176
        %2178 = vmatmul.f32.gmra.mxu0 %v2134
        %v2179 = vpop.f32.mrf.mxu0
        %v2180 = vadd.f32 0.0, %v2179
        %2181 = vdwg.mxu0
        %v2182 = vadd.f32 %v2108, %v2154
        %v2183 = vadd.f32 %v2109, %v2177
        %v2184 = vadd.f32 %v2110, %v2157
        %v2185 = vadd.f32 %v2111, %v2180
        %s2186 = scalar_lea.vmem %s6, 96
        %v2187 = vld [vmem:[%s2186] sm:$0xff]
        %v2188 = vld [vmem:[%s2186 + $0x8] sm:$0xff]
        %2189 = vrot.lane.b32.xlu0 %v1763, 98
        %v2190 = vpop.permute.xlu0 %2189
        %2191 = vrot.lane.b32.xlu0 %v1764, 98
        %v2192 = vpop.permute.xlu0 %2191
        %2193 = vrot.lane.b32.xlu0 %v1765, 98
        %v2194 = vpop.permute.xlu0 %2193
        %2195 = vrot.lane.b32.xlu0 %v1766, 98
        %v2196 = vpop.permute.xlu0 %2195
        %vm2197 = vcmask 801792
        %v2198 = vsel %vm2197, %v2190, %v2192
        %v2199 = vsel %vm2197, %v2194, %v2196
        %v2205 = vsel %vm1079, %v2187, 0
        %v2208 = vsel %vm1079, %v2188, 0
        %2210 = vmatpush.msra.mxu0 0.0
        %2211 = vmatpush.msra.mxu0 0.0
        %2212 = vmatpush.msra.mxu0 0.0
        %2213 = vmatpush.msra.mxu0 0.0
        %2214 = vmatpush.msra.mxu0 0.0
        %2215 = vmatpush.msra.mxu0 0.0
        %2216 = vmatpush.msra.mxu0 0.0
        %2217 = vmatpush.msra.mxu0 0.0
        %2218 = vmatpush.msra.mxu0 0.0
        %2219 = vmatpush.msra.mxu0 0.0
        %2220 = vmatpush.msra.mxu0 0.0
        %2221 = vmatpush.msra.mxu0 0.0
        %2222 = vmatpush.msra.mxu0 0.0
        %2223 = vmatpush.msra.mxu0 0.0
        %2224 = vmatpush.msra.mxu0 %v2199
        %2225 = vmatpush.msra.mxu0 %v2198
        %2226 = vmatmul.f32.gmra.mxu0 %v2205
        %v2227 = vpop.f32.mrf.mxu0
        %v2228 = vadd.f32 0.0, %v2227
        %2229 = vmatmul.f32.gmra.mxu0 %v2208
        %v2230 = vpop.f32.mrf.mxu0
        %v2231 = vadd.f32 0.0, %v2230
        %2232 = vdwg.mxu0
        %2233 = vmatpush.msra.mxu0 0.0
        %2234 = vmatpush.msra.mxu0 0.0
        %2235 = vmatpush.msra.mxu0 0.0
        %2236 = vmatpush.msra.mxu0 0.0
        %2237 = vmatpush.msra.mxu0 0.0
        %2238 = vmatpush.msra.mxu0 0.0
        %2239 = vmatpush.msra.mxu0 0.0
        %2240 = vmatpush.msra.mxu0 0.0
        %2241 = vmatpush.msra.mxu0 0.0
        %2242 = vmatpush.msra.mxu0 0.0
        %2243 = vmatpush.msra.mxu0 0.0
        %2244 = vmatpush.msra.mxu0 0.0
        %2245 = vmatpush.msra.mxu0 0.0
        %2246 = vmatpush.msra.mxu0 0.0
        %2247 = vmatpush.msra.mxu0 %v2196
        %2248 = vmatpush.msra.mxu0 %v2192
        %2249 = vmatmul.f32.gmra.mxu0 %v2205
        %v2250 = vpop.f32.mrf.mxu0
        %v2251 = vadd.f32 0.0, %v2250
        %2252 = vmatmul.f32.gmra.mxu0 %v2208
        %v2253 = vpop.f32.mrf.mxu0
        %v2254 = vadd.f32 0.0, %v2253
        %2255 = vdwg.mxu0
        %v2256 = vadd.f32 %v2182, %v2228
        %v2257 = vadd.f32 %v2183, %v2251
        %v2258 = vadd.f32 %v2184, %v2231
        %v2259 = vadd.f32 %v2185, %v2254
        %s2260 = scalar_lea.vmem %s6, 112
        %v2261 = vld [vmem:[%s2260] sm:$0xff]
        %v2262 = vld [vmem:[%s2260 + $0x8] sm:$0xff]
        %2263 = vrot.lane.b32.xlu0 %v1763, 97
        %v2264 = vpop.permute.xlu0 %2263
        %2265 = vrot.lane.b32.xlu0 %v1764, 97
        %v2266 = vpop.permute.xlu0 %2265
        %2267 = vrot.lane.b32.xlu0 %v1765, 97
        %v2268 = vpop.permute.xlu0 %2267
        %2269 = vrot.lane.b32.xlu0 %v1766, 97
        %v2270 = vpop.permute.xlu0 %2269
        %vm2271 = vcmask 793600
        %v2272 = vsel %vm2271, %v2264, %v2266
        %v2273 = vsel %vm2271, %v2268, %v2270
        %v2279 = vsel %vm1079, %v2261, 0
        %v2282 = vsel %vm1079, %v2262, 0
        %2284 = vmatpush.msra.mxu0 0.0
        %2285 = vmatpush.msra.mxu0 0.0
        %2286 = vmatpush.msra.mxu0 0.0
        %2287 = vmatpush.msra.mxu0 0.0
        %2288 = vmatpush.msra.mxu0 0.0
        %2289 = vmatpush.msra.mxu0 0.0
        %2290 = vmatpush.msra.mxu0 0.0
        %2291 = vmatpush.msra.mxu0 0.0
        %2292 = vmatpush.msra.mxu0 0.0
        %2293 = vmatpush.msra.mxu0 0.0
        %2294 = vmatpush.msra.mxu0 0.0
        %2295 = vmatpush.msra.mxu0 0.0
        %2296 = vmatpush.msra.mxu0 0.0
        %2297 = vmatpush.msra.mxu0 0.0
        %2298 = vmatpush.msra.mxu0 %v2273
        %2299 = vmatpush.msra.mxu0 %v2272
        %2300 = vmatmul.f32.gmra.mxu0 %v2279
        %v2301 = vpop.f32.mrf.mxu0
        %v2302 = vadd.f32 0.0, %v2301
        %2303 = vmatmul.f32.gmra.mxu0 %v2282
        %v2304 = vpop.f32.mrf.mxu0
        %v2305 = vadd.f32 0.0, %v2304
        %2306 = vdwg.mxu0
        %2307 = vmatpush.msra.mxu0 0.0
        %2308 = vmatpush.msra.mxu0 0.0
        %2309 = vmatpush.msra.mxu0 0.0
        %2310 = vmatpush.msra.mxu0 0.0
        %2311 = vmatpush.msra.mxu0 0.0
        %2312 = vmatpush.msra.mxu0 0.0
        %2313 = vmatpush.msra.mxu0 0.0
        %2314 = vmatpush.msra.mxu0 0.0
        %2315 = vmatpush.msra.mxu0 0.0
        %2316 = vmatpush.msra.mxu0 0.0
        %2317 = vmatpush.msra.mxu0 0.0
        %2318 = vmatpush.msra.mxu0 0.0
        %2319 = vmatpush.msra.mxu0 0.0
        %2320 = vmatpush.msra.mxu0 0.0
        %2321 = vmatpush.msra.mxu0 %v2270
        %2322 = vmatpush.msra.mxu0 %v2266
        %2323 = vmatmul.f32.gmra.mxu0 %v2279
        %v2324 = vpop.f32.mrf.mxu0
        %v2325 = vadd.f32 0.0, %v2324
        %2326 = vmatmul.f32.gmra.mxu0 %v2282
        %v2327 = vpop.f32.mrf.mxu0
        %v2328 = vadd.f32 0.0, %v2327
        %2329 = vdwg.mxu0
        %v2330 = vadd.f32 %v2256, %v2302
        %v2331 = vadd.f32 %v2257, %v2325
        %v2332 = vadd.f32 %v2258, %v2305
        %v2333 = vadd.f32 %v2259, %v2328
        %s2334 = scalar_lea.vmem %s6, 128
        %v2335 = vld [vmem:[%s2334] sm:$0xff]
        %v2336 = vld [vmem:[%s2334 + $0x8] sm:$0xff]
        %2337 = vrot.lane.b32.xlu0 %v1763, 96
        %v2338 = vpop.permute.xlu0 %2337
        %2339 = vrot.lane.b32.xlu0 %v1764, 96
        %v2340 = vpop.permute.xlu0 %2339
        %2341 = vrot.lane.b32.xlu0 %v1765, 96
        %v2342 = vpop.permute.xlu0 %2341
        %2343 = vrot.lane.b32.xlu0 %v1766, 96
        %v2344 = vpop.permute.xlu0 %2343
        %vm2345 = vcmask 785408
        %v2346 = vsel %vm2345, %v2338, %v2340
        %v2347 = vsel %vm2345, %v2342, %v2344
        %v2353 = vsel %vm1079, %v2335, 0
        %v2356 = vsel %vm1079, %v2336, 0
        %2358 = vmatpush.msra.mxu0 0.0
        %2359 = vmatpush.msra.mxu0 0.0
        %2360 = vmatpush.msra.mxu0 0.0
        %2361 = vmatpush.msra.mxu0 0.0
        %2362 = vmatpush.msra.mxu0 0.0
        %2363 = vmatpush.msra.mxu0 0.0
        %2364 = vmatpush.msra.mxu0 0.0
        %2365 = vmatpush.msra.mxu0 0.0
        %2366 = vmatpush.msra.mxu0 0.0
        %2367 = vmatpush.msra.mxu0 0.0
        %2368 = vmatpush.msra.mxu0 0.0
        %2369 = vmatpush.msra.mxu0 0.0
        %2370 = vmatpush.msra.mxu0 0.0
        %2371 = vmatpush.msra.mxu0 0.0
        %2372 = vmatpush.msra.mxu0 %v2347
        %2373 = vmatpush.msra.mxu0 %v2346
        %2374 = vmatmul.f32.gmra.mxu0 %v2353
        %v2375 = vpop.f32.mrf.mxu0
        %v2376 = vadd.f32 0.0, %v2375
        %2377 = vmatmul.f32.gmra.mxu0 %v2356
        %v2378 = vpop.f32.mrf.mxu0
        %v2379 = vadd.f32 0.0, %v2378
        %2380 = vdwg.mxu0
        %2381 = vmatpush.msra.mxu0 0.0
        %2382 = vmatpush.msra.mxu0 0.0
        %2383 = vmatpush.msra.mxu0 0.0
        %2384 = vmatpush.msra.mxu0 0.0
        %2385 = vmatpush.msra.mxu0 0.0
        %2386 = vmatpush.msra.mxu0 0.0
        %2387 = vmatpush.msra.mxu0 0.0
        %2388 = vmatpush.msra.mxu0 0.0
        %2389 = vmatpush.msra.mxu0 0.0
        %2390 = vmatpush.msra.mxu0 0.0
        %2391 = vmatpush.msra.mxu0 0.0
        %2392 = vmatpush.msra.mxu0 0.0
        %2393 = vmatpush.msra.mxu0 0.0
        %2394 = vmatpush.msra.mxu0 0.0
        %2395 = vmatpush.msra.mxu0 %v2344
        %2396 = vmatpush.msra.mxu0 %v2340
        %2397 = vmatmul.f32.gmra.mxu0 %v2353
        %v2398 = vpop.f32.mrf.mxu0
        %v2399 = vadd.f32 0.0, %v2398
        %2400 = vmatmul.f32.gmra.mxu0 %v2356
        %v2401 = vpop.f32.mrf.mxu0
        %v2402 = vadd.f32 0.0, %v2401
        %2403 = vdwg.mxu0
        %v2404 = vadd.f32 %v2330, %v2376
        %v2405 = vadd.f32 %v2331, %v2399
        %v2406 = vadd.f32 %v2332, %v2379
        %v2407 = vadd.f32 %v2333, %v2402
        %v2408 = vld [vmem:[%s7] sm:$0xff]
        %v2409 = vld [vmem:[%s7 + $0x8] sm:$0xff]
        %2411 = vset.pattern.permute.xlu0 0
        %2412 = vperm.xlu0 %2411, %v2408
        %v2413 = vpop.permute.xlu0 %2412
        %2416 = vset.pattern.permute.xlu0 0
        %2417 = vperm.xlu0 %2416, %v2409
        %v2418 = vpop.permute.xlu0 %2417
        %v2420 = vadd.f32 %v2404, %v2413
        %v2421 = vadd.f32 %v2405, %v2413
        %v2422 = vadd.f32 %v2406, %v2418
        %v2423 = vadd.f32 %v2407, %v2418
        %v2424 = vmax.f32 %v2420, 0.0
        %v2425 = vmax.f32 %v2421, 0.0
        %v2426 = vmax.f32 %v2422, 0.0
        %v2427 = vmax.f32 %v2423, 0.0
        %v2428 = vld [vmem:[#allocation5] sm:$0xff]
        %v2429 = vld [vmem:[#allocation5 + $0x8] sm:$0xff]
        %v2430 = vld [vmem:[#allocation5 + $0x10] sm:$0xff]
        %v2431 = vld [vmem:[#allocation5 + $0x18] sm:$0xff]
        %v2432 = vld [vmem:[#allocation5 + $0x20] sm:$0xff]
        %v2433 = vld [vmem:[#allocation5 + $0x28] sm:$0xff]
        %v2434 = vld [vmem:[#allocation5 + $0x30] sm:$0xff]
        %v2435 = vld [vmem:[#allocation5 + $0x38] sm:$0xff]
        %v2436 = vld [vmem:[#allocation5 + $0x40] sm:$0xff]
        %v2437 = vld [vmem:[#allocation5 + $0x48] sm:$0xff]
        %v2438 = vld [vmem:[#allocation5 + $0x50] sm:$0xff]
        %v2439 = vld [vmem:[#allocation5 + $0x58] sm:$0xff]
        %v2440 = vld [vmem:[#allocation5 + $0x60] sm:$0xff]
        %v2441 = vld [vmem:[#allocation5 + $0x68] sm:$0xff]
        %v2442 = vld [vmem:[#allocation5 + $0x70] sm:$0xff]
        %v2443 = vld [vmem:[#allocation5 + $0x78] sm:$0xff]
        %v2444 = vld [vmem:[#allocation5 + $0x80] sm:$0xff]
        %v2445 = vld [vmem:[#allocation5 + $0x88] sm:$0xff]
        %s2446 = scalar_lea.vmem [#allocation5], 144
        %v2447 = vld [vmem:[%s2446] sm:$0xff]
        %v2448 = vld [vmem:[%s2446 + $0x8] sm:$0xff]
        %v2449 = vld [vmem:[%s2446 + $0x10] sm:$0xff]
        %v2450 = vld [vmem:[%s2446 + $0x18] sm:$0xff]
        %v2451 = vld [vmem:[%s2446 + $0x20] sm:$0xff]
        %v2452 = vld [vmem:[%s2446 + $0x28] sm:$0xff]
        %v2453 = vld [vmem:[%s2446 + $0x30] sm:$0xff]
        %v2454 = vld [vmem:[%s2446 + $0x38] sm:$0xff]
        %v2455 = vld [vmem:[%s2446 + $0x40] sm:$0xff]
        %v2456 = vld [vmem:[%s2446 + $0x48] sm:$0xff]
        %v2457 = vld [vmem:[%s2446 + $0x50] sm:$0xff]
        %v2458 = vld [vmem:[%s2446 + $0x58] sm:$0xff]
        %v2459 = vld [vmem:[%s2446 + $0x60] sm:$0xff]
        %v2460 = vld [vmem:[%s2446 + $0x68] sm:$0xff]
        %v2461 = vld [vmem:[%s2446 + $0x70] sm:$0xff]
        %v2462 = vld [vmem:[%s2446 + $0x78] sm:$0xff]
        %v2463 = vld [vmem:[%s2446 + $0x80] sm:$0xff]
        %v2464 = vld [vmem:[%s2446 + $0x88] sm:$0xff]
        %v2467 = vrot.slane %v2424, 1
        %v2468 = vrot.slane %v2425, 1
        %v2470 = vsel %vm1079, %v2468, 0
        %2472 = vmatpush.msra.mxu0 %v2462
        %2473 = vmatpush.msra.mxu0 %v2461
        %2474 = vmatpush.msra.mxu0 %v2460
        %2475 = vmatpush.msra.mxu0 %v2459
        %2476 = vmatpush.msra.mxu0 %v2458
        %2477 = vmatpush.msra.mxu0 %v2457
        %2478 = vmatpush.msra.mxu0 %v2456
        %2479 = vmatpush.msra.mxu0 %v2455
        %2480 = vmatpush.msra.mxu0 %v2454
        %2481 = vmatpush.msra.mxu0 %v2453
        %2482 = vmatpush.msra.mxu0 %v2452
        %2483 = vmatpush.msra.mxu0 %v2451
        %2484 = vmatpush.msra.mxu0 %v2450
        %2485 = vmatpush.msra.mxu0 %v2449
        %2486 = vmatpush.msra.mxu0 %v2448
        %2487 = vmatpush.msra.mxu0 %v2447
        %2488 = vmatmul.f32.gmra.mxu0 %v2467
        %v2489 = vpop.f32.mrf.mxu0
        %v2490 = vadd.f32 0.0, %v2489
        %2491 = vdwg.mxu0
        %2492 = vmatpush.msra.mxu0 0.0
        %2493 = vmatpush.msra.mxu0 0.0
        %2494 = vmatpush.msra.mxu0 0.0
        %2495 = vmatpush.msra.mxu0 0.0
        %2496 = vmatpush.msra.mxu0 0.0
        %2497 = vmatpush.msra.mxu0 0.0
        %2498 = vmatpush.msra.mxu0 0.0
        %2499 = vmatpush.msra.mxu0 0.0
        %2500 = vmatpush.msra.mxu0 0.0
        %2501 = vmatpush.msra.mxu0 0.0
        %2502 = vmatpush.msra.mxu0 0.0
        %2503 = vmatpush.msra.mxu0 0.0
        %2504 = vmatpush.msra.mxu0 0.0
        %2505 = vmatpush.msra.mxu0 0.0
        %2506 = vmatpush.msra.mxu0 %v2464
        %2507 = vmatpush.msra.mxu0 %v2463
        %2508 = vmatmul.f32.gmra.mxu0 %v2470
        %v2509 = vpop.f32.mrf.mxu0
        %v2510 = vadd.f32 %v2490, %v2509
        %2511 = vdwg.mxu0
        %v2512 = vsel %vm1079, %v2425, 0
        %2514 = vmatpush.msra.mxu0 %v2443
        %2515 = vmatpush.msra.mxu0 %v2442
        %2516 = vmatpush.msra.mxu0 %v2441
        %2517 = vmatpush.msra.mxu0 %v2440
        %2518 = vmatpush.msra.mxu0 %v2439
        %2519 = vmatpush.msra.mxu0 %v2438
        %2520 = vmatpush.msra.mxu0 %v2437
        %2521 = vmatpush.msra.mxu0 %v2436
        %2522 = vmatpush.msra.mxu0 %v2435
        %2523 = vmatpush.msra.mxu0 %v2434
        %2524 = vmatpush.msra.mxu0 %v2433
        %2525 = vmatpush.msra.mxu0 %v2432
        %2526 = vmatpush.msra.mxu0 %v2431
        %2527 = vmatpush.msra.mxu0 %v2430
        %2528 = vmatpush.msra.mxu0 %v2429
        %2529 = vmatpush.msra.mxu0 %v2428
        %2530 = vmatmul.f32.gmra.mxu0 %v2424
        %v2531 = vpop.f32.mrf.mxu0
        %v2532 = vadd.f32 %v2510, %v2531
        %2533 = vdwg.mxu0
        %2534 = vmatpush.msra.mxu0 0.0
        %2535 = vmatpush.msra.mxu0 0.0
        %2536 = vmatpush.msra.mxu0 0.0
        %2537 = vmatpush.msra.mxu0 0.0
        %2538 = vmatpush.msra.mxu0 0.0
        %2539 = vmatpush.msra.mxu0 0.0
        %2540 = vmatpush.msra.mxu0 0.0
        %2541 = vmatpush.msra.mxu0 0.0
        %2542 = vmatpush.msra.mxu0 0.0
        %2543 = vmatpush.msra.mxu0 0.0
        %2544 = vmatpush.msra.mxu0 0.0
        %2545 = vmatpush.msra.mxu0 0.0
        %2546 = vmatpush.msra.mxu0 0.0
        %2547 = vmatpush.msra.mxu0 0.0
        %2548 = vmatpush.msra.mxu0 %v2445
        %2549 = vmatpush.msra.mxu0 %v2444
        %2550 = vmatmul.f32.gmra.mxu0 %v2512
        %v2551 = vpop.f32.mrf.mxu0
        %v2552 = vadd.f32 %v2532, %v2551
        %2553 = vdwg.mxu0
        %s2554 = scalar_lea.vmem [#allocation5], 288
        %v2555 = vld [vmem:[%s2554] sm:$0xff]
        %v2556 = vld [vmem:[%s2554 + $0x8] sm:$0xff]
        %v2557 = vld [vmem:[%s2554 + $0x10] sm:$0xff]
        %v2558 = vld [vmem:[%s2554 + $0x18] sm:$0xff]
        %v2559 = vld [vmem:[%s2554 + $0x20] sm:$0xff]
        %v2560 = vld [vmem:[%s2554 + $0x28] sm:$0xff]
        %v2561 = vld [vmem:[%s2554 + $0x30] sm:$0xff]
        %v2562 = vld [vmem:[%s2554 + $0x38] sm:$0xff]
        %v2563 = vld [vmem:[%s2554 + $0x40] sm:$0xff]
        %v2564 = vld [vmem:[%s2554 + $0x48] sm:$0xff]
        %v2565 = vld [vmem:[%s2554 + $0x50] sm:$0xff]
        %v2566 = vld [vmem:[%s2554 + $0x58] sm:$0xff]
        %v2567 = vld [vmem:[%s2554 + $0x60] sm:$0xff]
        %v2568 = vld [vmem:[%s2554 + $0x68] sm:$0xff]
        %v2569 = vld [vmem:[%s2554 + $0x70] sm:$0xff]
        %v2570 = vld [vmem:[%s2554 + $0x78] sm:$0xff]
        %v2571 = vld [vmem:[%s2554 + $0x80] sm:$0xff]
        %v2572 = vld [vmem:[%s2554 + $0x88] sm:$0xff]
        %v2573 = vrot.slane %v2424, 2
        %v2574 = vrot.slane %v2425, 2
        %v2576 = vsel %vm1079, %v2574, 0
        %2578 = vmatpush.msra.mxu0 %v2570
        %2579 = vmatpush.msra.mxu0 %v2569
        %2580 = vmatpush.msra.mxu0 %v2568
        %2581 = vmatpush.msra.mxu0 %v2567
        %2582 = vmatpush.msra.mxu0 %v2566
        %2583 = vmatpush.msra.mxu0 %v2565
        %2584 = vmatpush.msra.mxu0 %v2564
        %2585 = vmatpush.msra.mxu0 %v2563
        %2586 = vmatpush.msra.mxu0 %v2562
        %2587 = vmatpush.msra.mxu0 %v2561
        %2588 = vmatpush.msra.mxu0 %v2560
        %2589 = vmatpush.msra.mxu0 %v2559
        %2590 = vmatpush.msra.mxu0 %v2558
        %2591 = vmatpush.msra.mxu0 %v2557
        %2592 = vmatpush.msra.mxu0 %v2556
        %2593 = vmatpush.msra.mxu0 %v2555
        %2594 = vmatmul.f32.gmra.mxu0 %v2573
        %v2595 = vpop.f32.mrf.mxu0
        %v2596 = vadd.f32 0.0, %v2595
        %2597 = vdwg.mxu0
        %2598 = vmatpush.msra.mxu0 0.0
        %2599 = vmatpush.msra.mxu0 0.0
        %2600 = vmatpush.msra.mxu0 0.0
        %2601 = vmatpush.msra.mxu0 0.0
        %2602 = vmatpush.msra.mxu0 0.0
        %2603 = vmatpush.msra.mxu0 0.0
        %2604 = vmatpush.msra.mxu0 0.0
        %2605 = vmatpush.msra.mxu0 0.0
        %2606 = vmatpush.msra.mxu0 0.0
        %2607 = vmatpush.msra.mxu0 0.0
        %2608 = vmatpush.msra.mxu0 0.0
        %2609 = vmatpush.msra.mxu0 0.0
        %2610 = vmatpush.msra.mxu0 0.0
        %2611 = vmatpush.msra.mxu0 0.0
        %2612 = vmatpush.msra.mxu0 %v2572
        %2613 = vmatpush.msra.mxu0 %v2571
        %2614 = vmatmul.f32.gmra.mxu0 %v2576
        %v2615 = vpop.f32.mrf.mxu0
        %v2616 = vadd.f32 %v2596, %v2615
        %2617 = vdwg.mxu0
        %v2618 = vadd.f32 %v2552, %v2616
        %s2619 = scalar_lea.vmem [#allocation5], 432
        %v2620 = vld [vmem:[%s2619] sm:$0xff]
        %v2621 = vld [vmem:[%s2619 + $0x8] sm:$0xff]
        %v2622 = vld [vmem:[%s2619 + $0x10] sm:$0xff]
        %v2623 = vld [vmem:[%s2619 + $0x18] sm:$0xff]
        %v2624 = vld [vmem:[%s2619 + $0x20] sm:$0xff]
        %v2625 = vld [vmem:[%s2619 + $0x28] sm:$0xff]
        %v2626 = vld [vmem:[%s2619 + $0x30] sm:$0xff]
        %v2627 = vld [vmem:[%s2619 + $0x38] sm:$0xff]
        %v2628 = vld [vmem:[%s2619 + $0x40] sm:$0xff]
        %v2629 = vld [vmem:[%s2619 + $0x48] sm:$0xff]
        %v2630 = vld [vmem:[%s2619 + $0x50] sm:$0xff]
        %v2631 = vld [vmem:[%s2619 + $0x58] sm:$0xff]
        %v2632 = vld [vmem:[%s2619 + $0x60] sm:$0xff]
        %v2633 = vld [vmem:[%s2619 + $0x68] sm:$0xff]
        %v2634 = vld [vmem:[%s2619 + $0x70] sm:$0xff]
        %v2635 = vld [vmem:[%s2619 + $0x78] sm:$0xff]
        %v2636 = vld [vmem:[%s2619 + $0x80] sm:$0xff]
        %v2637 = vld [vmem:[%s2619 + $0x88] sm:$0xff]
        %v2638 = vrot.slane %v2424, 3
        %v2639 = vrot.slane %v2425, 3
        %v2641 = vsel %vm1079, %v2639, 0
        %2643 = vmatpush.msra.mxu0 %v2635
        %2644 = vmatpush.msra.mxu0 %v2634
        %2645 = vmatpush.msra.mxu0 %v2633
        %2646 = vmatpush.msra.mxu0 %v2632
        %2647 = vmatpush.msra.mxu0 %v2631
        %2648 = vmatpush.msra.mxu0 %v2630
        %2649 = vmatpush.msra.mxu0 %v2629
        %2650 = vmatpush.msra.mxu0 %v2628
        %2651 = vmatpush.msra.mxu0 %v2627
        %2652 = vmatpush.msra.mxu0 %v2626
        %2653 = vmatpush.msra.mxu0 %v2625
        %2654 = vmatpush.msra.mxu0 %v2624
        %2655 = vmatpush.msra.mxu0 %v2623
        %2656 = vmatpush.msra.mxu0 %v2622
        %2657 = vmatpush.msra.mxu0 %v2621
        %2658 = vmatpush.msra.mxu0 %v2620
        %2659 = vmatmul.f32.gmra.mxu0 %v2638
        %v2660 = vpop.f32.mrf.mxu0
        %v2661 = vadd.f32 0.0, %v2660
        %2662 = vdwg.mxu0
        %2663 = vmatpush.msra.mxu0 0.0
        %2664 = vmatpush.msra.mxu0 0.0
        %2665 = vmatpush.msra.mxu0 0.0
        %2666 = vmatpush.msra.mxu0 0.0
        %2667 = vmatpush.msra.mxu0 0.0
        %2668 = vmatpush.msra.mxu0 0.0
        %2669 = vmatpush.msra.mxu0 0.0
        %2670 = vmatpush.msra.mxu0 0.0
        %2671 = vmatpush.msra.mxu0 0.0
        %2672 = vmatpush.msra.mxu0 0.0
        %2673 = vmatpush.msra.mxu0 0.0
        %2674 = vmatpush.msra.mxu0 0.0
        %2675 = vmatpush.msra.mxu0 0.0
        %2676 = vmatpush.msra.mxu0 0.0
        %2677 = vmatpush.msra.mxu0 %v2637
        %2678 = vmatpush.msra.mxu0 %v2636
        %2679 = vmatmul.f32.gmra.mxu0 %v2641
        %v2680 = vpop.f32.mrf.mxu0
        %v2681 = vadd.f32 %v2661, %v2680
        %2682 = vdwg.mxu0
        %v2683 = vadd.f32 %v2618, %v2681
        %s2684 = scalar_lea.vmem [#allocation5], 576
        %v2685 = vld [vmem:[%s2684] sm:$0xff]
        %v2686 = vld [vmem:[%s2684 + $0x8] sm:$0xff]
        %v2687 = vld [vmem:[%s2684 + $0x10] sm:$0xff]
        %v2688 = vld [vmem:[%s2684 + $0x18] sm:$0xff]
        %v2689 = vld [vmem:[%s2684 + $0x20] sm:$0xff]
        %v2690 = vld [vmem:[%s2684 + $0x28] sm:$0xff]
        %v2691 = vld [vmem:[%s2684 + $0x30] sm:$0xff]
        %v2692 = vld [vmem:[%s2684 + $0x38] sm:$0xff]
        %v2693 = vld [vmem:[%s2684 + $0x40] sm:$0xff]
        %v2694 = vld [vmem:[%s2684 + $0x48] sm:$0xff]
        %v2695 = vld [vmem:[%s2684 + $0x50] sm:$0xff]
        %v2696 = vld [vmem:[%s2684 + $0x58] sm:$0xff]
        %v2697 = vld [vmem:[%s2684 + $0x60] sm:$0xff]
        %v2698 = vld [vmem:[%s2684 + $0x68] sm:$0xff]
        %v2699 = vld [vmem:[%s2684 + $0x70] sm:$0xff]
        %v2700 = vld [vmem:[%s2684 + $0x78] sm:$0xff]
        %v2701 = vld [vmem:[%s2684 + $0x80] sm:$0xff]
        %v2702 = vld [vmem:[%s2684 + $0x88] sm:$0xff]
        %v2703 = vrot.slane %v2424, 4
        %v2704 = vrot.slane %v2425, 4
        %v2706 = vsel %vm1079, %v2704, 0
        %2708 = vmatpush.msra.mxu0 %v2700
        %2709 = vmatpush.msra.mxu0 %v2699
        %2710 = vmatpush.msra.mxu0 %v2698
        %2711 = vmatpush.msra.mxu0 %v2697
        %2712 = vmatpush.msra.mxu0 %v2696
        %2713 = vmatpush.msra.mxu0 %v2695
        %2714 = vmatpush.msra.mxu0 %v2694
        %2715 = vmatpush.msra.mxu0 %v2693
        %2716 = vmatpush.msra.mxu0 %v2692
        %2717 = vmatpush.msra.mxu0 %v2691
        %2718 = vmatpush.msra.mxu0 %v2690
        %2719 = vmatpush.msra.mxu0 %v2689
        %2720 = vmatpush.msra.mxu0 %v2688
        %2721 = vmatpush.msra.mxu0 %v2687
        %2722 = vmatpush.msra.mxu0 %v2686
        %2723 = vmatpush.msra.mxu0 %v2685
        %2724 = vmatmul.f32.gmra.mxu0 %v2703
        %v2725 = vpop.f32.mrf.mxu0
        %v2726 = vadd.f32 0.0, %v2725
        %2727 = vdwg.mxu0
        %2728 = vmatpush.msra.mxu0 0.0
        %2729 = vmatpush.msra.mxu0 0.0
        %2730 = vmatpush.msra.mxu0 0.0
        %2731 = vmatpush.msra.mxu0 0.0
        %2732 = vmatpush.msra.mxu0 0.0
        %2733 = vmatpush.msra.mxu0 0.0
        %2734 = vmatpush.msra.mxu0 0.0
        %2735 = vmatpush.msra.mxu0 0.0
        %2736 = vmatpush.msra.mxu0 0.0
        %2737 = vmatpush.msra.mxu0 0.0
        %2738 = vmatpush.msra.mxu0 0.0
        %2739 = vmatpush.msra.mxu0 0.0
        %2740 = vmatpush.msra.mxu0 0.0
        %2741 = vmatpush.msra.mxu0 0.0
        %2742 = vmatpush.msra.mxu0 %v2702
        %2743 = vmatpush.msra.mxu0 %v2701
        %2744 = vmatmul.f32.gmra.mxu0 %v2706
        %v2745 = vpop.f32.mrf.mxu0
        %v2746 = vadd.f32 %v2726, %v2745
        %2747 = vdwg.mxu0
        %v2748 = vadd.f32 %v2683, %v2746
        %s2749 = scalar_lea.vmem [#allocation5], 720
        %v2750 = vld [vmem:[%s2749] sm:$0xff]
        %v2751 = vld [vmem:[%s2749 + $0x8] sm:$0xff]
        %v2752 = vld [vmem:[%s2749 + $0x10] sm:$0xff]
        %v2753 = vld [vmem:[%s2749 + $0x18] sm:$0xff]
        %v2754 = vld [vmem:[%s2749 + $0x20] sm:$0xff]
        %v2755 = vld [vmem:[%s2749 + $0x28] sm:$0xff]
        %v2756 = vld [vmem:[%s2749 + $0x30] sm:$0xff]
        %v2757 = vld [vmem:[%s2749 + $0x38] sm:$0xff]
        %v2758 = vld [vmem:[%s2749 + $0x40] sm:$0xff]
        %v2759 = vld [vmem:[%s2749 + $0x48] sm:$0xff]
        %v2760 = vld [vmem:[%s2749 + $0x50] sm:$0xff]
        %v2761 = vld [vmem:[%s2749 + $0x58] sm:$0xff]
        %v2762 = vld [vmem:[%s2749 + $0x60] sm:$0xff]
        %v2763 = vld [vmem:[%s2749 + $0x68] sm:$0xff]
        %v2764 = vld [vmem:[%s2749 + $0x70] sm:$0xff]
        %v2765 = vld [vmem:[%s2749 + $0x78] sm:$0xff]
        %v2766 = vld [vmem:[%s2749 + $0x80] sm:$0xff]
        %v2767 = vld [vmem:[%s2749 + $0x88] sm:$0xff]
        %v2768 = vrot.slane %v2424, 5
        %v2769 = vrot.slane %v2425, 5
        %v2771 = vsel %vm1079, %v2769, 0
        %2773 = vmatpush.msra.mxu0 %v2765
        %2774 = vmatpush.msra.mxu0 %v2764
        %2775 = vmatpush.msra.mxu0 %v2763
        %2776 = vmatpush.msra.mxu0 %v2762
        %2777 = vmatpush.msra.mxu0 %v2761
        %2778 = vmatpush.msra.mxu0 %v2760
        %2779 = vmatpush.msra.mxu0 %v2759
        %2780 = vmatpush.msra.mxu0 %v2758
        %2781 = vmatpush.msra.mxu0 %v2757
        %2782 = vmatpush.msra.mxu0 %v2756
        %2783 = vmatpush.msra.mxu0 %v2755
        %2784 = vmatpush.msra.mxu0 %v2754
        %2785 = vmatpush.msra.mxu0 %v2753
        %2786 = vmatpush.msra.mxu0 %v2752
        %2787 = vmatpush.msra.mxu0 %v2751
        %2788 = vmatpush.msra.mxu0 %v2750
        %2789 = vmatmul.f32.gmra.mxu0 %v2768
        %v2790 = vpop.f32.mrf.mxu0
        %v2791 = vadd.f32 0.0, %v2790
        %2792 = vdwg.mxu0
        %2793 = vmatpush.msra.mxu0 0.0
        %2794 = vmatpush.msra.mxu0 0.0
        %2795 = vmatpush.msra.mxu0 0.0
        %2796 = vmatpush.msra.mxu0 0.0
        %2797 = vmatpush.msra.mxu0 0.0
        %2798 = vmatpush.msra.mxu0 0.0
        %2799 = vmatpush.msra.mxu0 0.0
        %2800 = vmatpush.msra.mxu0 0.0
        %2801 = vmatpush.msra.mxu0 0.0
        %2802 = vmatpush.msra.mxu0 0.0
        %2803 = vmatpush.msra.mxu0 0.0
        %2804 = vmatpush.msra.mxu0 0.0
        %2805 = vmatpush.msra.mxu0 0.0
        %2806 = vmatpush.msra.mxu0 0.0
        %2807 = vmatpush.msra.mxu0 %v2767
        %2808 = vmatpush.msra.mxu0 %v2766
        %2809 = vmatmul.f32.gmra.mxu0 %v2771
        %v2810 = vpop.f32.mrf.mxu0
        %v2811 = vadd.f32 %v2791, %v2810
        %2812 = vdwg.mxu0
        %v2813 = vadd.f32 %v2748, %v2811
        %s2814 = scalar_lea.vmem [#allocation5], 864
        %v2815 = vld [vmem:[%s2814] sm:$0xff]
        %v2816 = vld [vmem:[%s2814 + $0x8] sm:$0xff]
        %v2817 = vld [vmem:[%s2814 + $0x10] sm:$0xff]
        %v2818 = vld [vmem:[%s2814 + $0x18] sm:$0xff]
        %v2819 = vld [vmem:[%s2814 + $0x20] sm:$0xff]
        %v2820 = vld [vmem:[%s2814 + $0x28] sm:$0xff]
        %v2821 = vld [vmem:[%s2814 + $0x30] sm:$0xff]
        %v2822 = vld [vmem:[%s2814 + $0x38] sm:$0xff]
        %v2823 = vld [vmem:[%s2814 + $0x40] sm:$0xff]
        %v2824 = vld [vmem:[%s2814 + $0x48] sm:$0xff]
        %v2825 = vld [vmem:[%s2814 + $0x50] sm:$0xff]
        %v2826 = vld [vmem:[%s2814 + $0x58] sm:$0xff]
        %v2827 = vld [vmem:[%s2814 + $0x60] sm:$0xff]
        %v2828 = vld [vmem:[%s2814 + $0x68] sm:$0xff]
        %v2829 = vld [vmem:[%s2814 + $0x70] sm:$0xff]
        %v2830 = vld [vmem:[%s2814 + $0x78] sm:$0xff]
        %v2831 = vld [vmem:[%s2814 + $0x80] sm:$0xff]
        %v2832 = vld [vmem:[%s2814 + $0x88] sm:$0xff]
        %v2833 = vrot.slane %v2424, 6
        %v2834 = vrot.slane %v2425, 6
        %v2836 = vsel %vm1079, %v2834, 0
        %2838 = vmatpush.msra.mxu0 %v2830
        %2839 = vmatpush.msra.mxu0 %v2829
        %2840 = vmatpush.msra.mxu0 %v2828
        %2841 = vmatpush.msra.mxu0 %v2827
        %2842 = vmatpush.msra.mxu0 %v2826
        %2843 = vmatpush.msra.mxu0 %v2825
        %2844 = vmatpush.msra.mxu0 %v2824
        %2845 = vmatpush.msra.mxu0 %v2823
        %2846 = vmatpush.msra.mxu0 %v2822
        %2847 = vmatpush.msra.mxu0 %v2821
        %2848 = vmatpush.msra.mxu0 %v2820
        %2849 = vmatpush.msra.mxu0 %v2819
        %2850 = vmatpush.msra.mxu0 %v2818
        %2851 = vmatpush.msra.mxu0 %v2817
        %2852 = vmatpush.msra.mxu0 %v2816
        %2853 = vmatpush.msra.mxu0 %v2815
        %2854 = vmatmul.f32.gmra.mxu0 %v2833
        %v2855 = vpop.f32.mrf.mxu0
        %v2856 = vadd.f32 0.0, %v2855
        %2857 = vdwg.mxu0
        %2858 = vmatpush.msra.mxu0 0.0
        %2859 = vmatpush.msra.mxu0 0.0
        %2860 = vmatpush.msra.mxu0 0.0
        %2861 = vmatpush.msra.mxu0 0.0
        %2862 = vmatpush.msra.mxu0 0.0
        %2863 = vmatpush.msra.mxu0 0.0
        %2864 = vmatpush.msra.mxu0 0.0
        %2865 = vmatpush.msra.mxu0 0.0
        %2866 = vmatpush.msra.mxu0 0.0
        %2867 = vmatpush.msra.mxu0 0.0
        %2868 = vmatpush.msra.mxu0 0.0
        %2869 = vmatpush.msra.mxu0 0.0
        %2870 = vmatpush.msra.mxu0 0.0
        %2871 = vmatpush.msra.mxu0 0.0
        %2872 = vmatpush.msra.mxu0 %v2832
        %2873 = vmatpush.msra.mxu0 %v2831
        %2874 = vmatmul.f32.gmra.mxu0 %v2836
        %v2875 = vpop.f32.mrf.mxu0
        %v2876 = vadd.f32 %v2856, %v2875
        %2877 = vdwg.mxu0
        %v2878 = vadd.f32 %v2813, %v2876
        %s2879 = scalar_lea.vmem [#allocation5], 1008
        %v2880 = vld [vmem:[%s2879] sm:$0xff]
        %v2881 = vld [vmem:[%s2879 + $0x8] sm:$0xff]
        %v2882 = vld [vmem:[%s2879 + $0x10] sm:$0xff]
        %v2883 = vld [vmem:[%s2879 + $0x18] sm:$0xff]
        %v2884 = vld [vmem:[%s2879 + $0x20] sm:$0xff]
        %v2885 = vld [vmem:[%s2879 + $0x28] sm:$0xff]
        %v2886 = vld [vmem:[%s2879 + $0x30] sm:$0xff]
        %v2887 = vld [vmem:[%s2879 + $0x38] sm:$0xff]
        %v2888 = vld [vmem:[%s2879 + $0x40] sm:$0xff]
        %v2889 = vld [vmem:[%s2879 + $0x48] sm:$0xff]
        %v2890 = vld [vmem:[%s2879 + $0x50] sm:$0xff]
        %v2891 = vld [vmem:[%s2879 + $0x58] sm:$0xff]
        %v2892 = vld [vmem:[%s2879 + $0x60] sm:$0xff]
        %v2893 = vld [vmem:[%s2879 + $0x68] sm:$0xff]
        %v2894 = vld [vmem:[%s2879 + $0x70] sm:$0xff]
        %v2895 = vld [vmem:[%s2879 + $0x78] sm:$0xff]
        %v2896 = vld [vmem:[%s2879 + $0x80] sm:$0xff]
        %v2897 = vld [vmem:[%s2879 + $0x88] sm:$0xff]
        %v2898 = vrot.slane %v2424, 7
        %v2899 = vrot.slane %v2425, 7
        %v2901 = vsel %vm1079, %v2899, 0
        %2903 = vmatpush.msra.mxu0 %v2895
        %2904 = vmatpush.msra.mxu0 %v2894
        %2905 = vmatpush.msra.mxu0 %v2893
        %2906 = vmatpush.msra.mxu0 %v2892
        %2907 = vmatpush.msra.mxu0 %v2891
        %2908 = vmatpush.msra.mxu0 %v2890
        %2909 = vmatpush.msra.mxu0 %v2889
        %2910 = vmatpush.msra.mxu0 %v2888
        %2911 = vmatpush.msra.mxu0 %v2887
        %2912 = vmatpush.msra.mxu0 %v2886
        %2913 = vmatpush.msra.mxu0 %v2885
        %2914 = vmatpush.msra.mxu0 %v2884
        %2915 = vmatpush.msra.mxu0 %v2883
        %2916 = vmatpush.msra.mxu0 %v2882
        %2917 = vmatpush.msra.mxu0 %v2881
        %2918 = vmatpush.msra.mxu0 %v2880
        %2919 = vmatmul.f32.gmra.mxu0 %v2898
        %v2920 = vpop.f32.mrf.mxu0
        %v2921 = vadd.f32 0.0, %v2920
        %2922 = vdwg.mxu0
        %2923 = vmatpush.msra.mxu0 0.0
        %2924 = vmatpush.msra.mxu0 0.0
        %2925 = vmatpush.msra.mxu0 0.0
        %2926 = vmatpush.msra.mxu0 0.0
        %2927 = vmatpush.msra.mxu0 0.0
        %2928 = vmatpush.msra.mxu0 0.0
        %2929 = vmatpush.msra.mxu0 0.0
        %2930 = vmatpush.msra.mxu0 0.0
        %2931 = vmatpush.msra.mxu0 0.0
        %2932 = vmatpush.msra.mxu0 0.0
        %2933 = vmatpush.msra.mxu0 0.0
        %2934 = vmatpush.msra.mxu0 0.0
        %2935 = vmatpush.msra.mxu0 0.0
        %2936 = vmatpush.msra.mxu0 0.0
        %2937 = vmatpush.msra.mxu0 %v2897
        %2938 = vmatpush.msra.mxu0 %v2896
        %2939 = vmatmul.f32.gmra.mxu0 %v2901
        %v2940 = vpop.f32.mrf.mxu0
        %v2941 = vadd.f32 %v2921, %v2940
        %2942 = vdwg.mxu0
        %v2943 = vadd.f32 %v2878, %v2941
        %s2944 = scalar_lea.vmem [#allocation5], 1152
        %v2945 = vld [vmem:[%s2944] sm:$0xff]
        %v2946 = vld [vmem:[%s2944 + $0x8] sm:$0xff]
        %v2947 = vld [vmem:[%s2944 + $0x10] sm:$0xff]
        %v2948 = vld [vmem:[%s2944 + $0x18] sm:$0xff]
        %v2949 = vld [vmem:[%s2944 + $0x20] sm:$0xff]
        %v2950 = vld [vmem:[%s2944 + $0x28] sm:$0xff]
        %v2951 = vld [vmem:[%s2944 + $0x30] sm:$0xff]
        %v2952 = vld [vmem:[%s2944 + $0x38] sm:$0xff]
        %v2953 = vld [vmem:[%s2944 + $0x40] sm:$0xff]
        %v2954 = vld [vmem:[%s2944 + $0x48] sm:$0xff]
        %v2955 = vld [vmem:[%s2944 + $0x50] sm:$0xff]
        %v2956 = vld [vmem:[%s2944 + $0x58] sm:$0xff]
        %v2957 = vld [vmem:[%s2944 + $0x60] sm:$0xff]
        %v2958 = vld [vmem:[%s2944 + $0x68] sm:$0xff]
        %v2959 = vld [vmem:[%s2944 + $0x70] sm:$0xff]
        %v2960 = vld [vmem:[%s2944 + $0x78] sm:$0xff]
        %v2961 = vld [vmem:[%s2944 + $0x80] sm:$0xff]
        %v2962 = vld [vmem:[%s2944 + $0x88] sm:$0xff]
        %v2964 = vsel %vm1079, %v2427, 0
        %2966 = vmatpush.msra.mxu0 %v2960
        %2967 = vmatpush.msra.mxu0 %v2959
        %2968 = vmatpush.msra.mxu0 %v2958
        %2969 = vmatpush.msra.mxu0 %v2957
        %2970 = vmatpush.msra.mxu0 %v2956
        %2971 = vmatpush.msra.mxu0 %v2955
        %2972 = vmatpush.msra.mxu0 %v2954
        %2973 = vmatpush.msra.mxu0 %v2953
        %2974 = vmatpush.msra.mxu0 %v2952
        %2975 = vmatpush.msra.mxu0 %v2951
        %2976 = vmatpush.msra.mxu0 %v2950
        %2977 = vmatpush.msra.mxu0 %v2949
        %2978 = vmatpush.msra.mxu0 %v2948
        %2979 = vmatpush.msra.mxu0 %v2947
        %2980 = vmatpush.msra.mxu0 %v2946
        %2981 = vmatpush.msra.mxu0 %v2945
        %2982 = vmatmul.f32.gmra.mxu0 %v2426
        %v2983 = vpop.f32.mrf.mxu0
        %v2984 = vadd.f32 0.0, %v2983
        %2985 = vdwg.mxu0
        %2986 = vmatpush.msra.mxu0 0.0
        %2987 = vmatpush.msra.mxu0 0.0
        %2988 = vmatpush.msra.mxu0 0.0
        %2989 = vmatpush.msra.mxu0 0.0
        %2990 = vmatpush.msra.mxu0 0.0
        %2991 = vmatpush.msra.mxu0 0.0
        %2992 = vmatpush.msra.mxu0 0.0
        %2993 = vmatpush.msra.mxu0 0.0
        %2994 = vmatpush.msra.mxu0 0.0
        %2995 = vmatpush.msra.mxu0 0.0
        %2996 = vmatpush.msra.mxu0 0.0
        %2997 = vmatpush.msra.mxu0 0.0
        %2998 = vmatpush.msra.mxu0 0.0
        %2999 = vmatpush.msra.mxu0 0.0
        %3000 = vmatpush.msra.mxu0 %v2962
        %3001 = vmatpush.msra.mxu0 %v2961
        %3002 = vmatmul.f32.gmra.mxu0 %v2964
        %v3003 = vpop.f32.mrf.mxu0
        %v3004 = vadd.f32 %v2984, %v3003
        %3005 = vdwg.mxu0
        %v3006 = vadd.f32 %v2943, %v3004
        %s3007 = scalar_lea.vmem [#allocation5], 1296
        %v3008 = vld [vmem:[%s3007] sm:$0xff]
        %v3009 = vld [vmem:[%s3007 + $0x8] sm:$0xff]
        %v3010 = vld [vmem:[%s3007 + $0x10] sm:$0xff]
        %v3011 = vld [vmem:[%s3007 + $0x18] sm:$0xff]
        %v3012 = vld [vmem:[%s3007 + $0x20] sm:$0xff]
        %v3013 = vld [vmem:[%s3007 + $0x28] sm:$0xff]
        %v3014 = vld [vmem:[%s3007 + $0x30] sm:$0xff]
        %v3015 = vld [vmem:[%s3007 + $0x38] sm:$0xff]
        %v3016 = vld [vmem:[%s3007 + $0x40] sm:$0xff]
        %v3017 = vld [vmem:[%s3007 + $0x48] sm:$0xff]
        %v3018 = vld [vmem:[%s3007 + $0x50] sm:$0xff]
        %v3019 = vld [vmem:[%s3007 + $0x58] sm:$0xff]
        %v3020 = vld [vmem:[%s3007 + $0x60] sm:$0xff]
        %v3021 = vld [vmem:[%s3007 + $0x68] sm:$0xff]
        %v3022 = vld [vmem:[%s3007 + $0x70] sm:$0xff]
        %v3023 = vld [vmem:[%s3007 + $0x78] sm:$0xff]
        %v3024 = vld [vmem:[%s3007 + $0x80] sm:$0xff]
        %v3025 = vld [vmem:[%s3007 + $0x88] sm:$0xff]
        %v3027 = vrot.slane %v2426, 1
        %v3028 = vrot.slane %v2427, 1
        %v3030 = vsel %vm1079, %v3028, 0
        %3032 = vmatpush.msra.mxu0 %v3023
        %3033 = vmatpush.msra.mxu0 %v3022
        %3034 = vmatpush.msra.mxu0 %v3021
        %3035 = vmatpush.msra.mxu0 %v3020
        %3036 = vmatpush.msra.mxu0 %v3019
        %3037 = vmatpush.msra.mxu0 %v3018
        %3038 = vmatpush.msra.mxu0 %v3017
        %3039 = vmatpush.msra.mxu0 %v3016
        %3040 = vmatpush.msra.mxu0 %v3015
        %3041 = vmatpush.msra.mxu0 %v3014
        %3042 = vmatpush.msra.mxu0 %v3013
        %3043 = vmatpush.msra.mxu0 %v3012
        %3044 = vmatpush.msra.mxu0 %v3011
        %3045 = vmatpush.msra.mxu0 %v3010
        %3046 = vmatpush.msra.mxu0 %v3009
        %3047 = vmatpush.msra.mxu0 %v3008
        %3048 = vmatmul.f32.gmra.mxu0 %v3027
        %v3049 = vpop.f32.mrf.mxu0
        %v3050 = vadd.f32 0.0, %v3049
        %3051 = vdwg.mxu0
        %3052 = vmatpush.msra.mxu0 0.0
        %3053 = vmatpush.msra.mxu0 0.0
        %3054 = vmatpush.msra.mxu0 0.0
        %3055 = vmatpush.msra.mxu0 0.0
        %3056 = vmatpush.msra.mxu0 0.0
        %3057 = vmatpush.msra.mxu0 0.0
        %3058 = vmatpush.msra.mxu0 0.0
        %3059 = vmatpush.msra.mxu0 0.0
        %3060 = vmatpush.msra.mxu0 0.0
        %3061 = vmatpush.msra.mxu0 0.0
        %3062 = vmatpush.msra.mxu0 0.0
        %3063 = vmatpush.msra.mxu0 0.0
        %3064 = vmatpush.msra.mxu0 0.0
        %3065 = vmatpush.msra.mxu0 0.0
        %3066 = vmatpush.msra.mxu0 %v3025
        %3067 = vmatpush.msra.mxu0 %v3024
        %3068 = vmatmul.f32.gmra.mxu0 %v3030
        %v3069 = vpop.f32.mrf.mxu0
        %v3070 = vadd.f32 %v3050, %v3069
        %3071 = vdwg.mxu0
        %v3072 = vadd.f32 %v3006, %v3070
        %v3073 = vld [vmem:[%s9] sm:$0x1]
        %v3074 = vadd.f32 %v3072, %v3073
        %v3075 = vld [vmem:[%s10] sm:$0xff]
        %v3076 = vld [vmem:[%s10 + $0x8] sm:$0xff]
        %v3077 = vld [vmem:[%s10 + $0x10] sm:$0xff]
        %v3078 = vld [vmem:[%s10 + $0x18] sm:$0xff]
        %v3079 = vld [vmem:[%s10 + $0x20] sm:$0xff]
        %v3080 = vld [vmem:[%s10 + $0x28] sm:$0xff]
        %v3081 = vld [vmem:[%s10 + $0x30] sm:$0xff]
        %v3082 = vld [vmem:[%s10 + $0x38] sm:$0xff]
        %v3083 = vld [vmem:[%s10 + $0x40] sm:$0xff]
        %v3084 = vld [vmem:[%s10 + $0x48] sm:$0xff]
        %v3085 = vld [vmem:[%s10 + $0x50] sm:$0xff]
        %v3086 = vld [vmem:[%s10 + $0x58] sm:$0xff]
        %v3087 = vld [vmem:[%s10 + $0x60] sm:$0xff]
        %v3088 = vld [vmem:[%s10 + $0x68] sm:$0xff]
        %v3089 = vld [vmem:[%s10 + $0x70] sm:$0xff]
        %v3090 = vld [vmem:[%s10 + $0x78] sm:$0xff]
        %v3091 = vld [vmem:[%s11] sm:$0x1]
        %3092 = vmatpush.msra.mxu0 %v3090
        %3093 = vmatpush.msra.mxu0 %v3089
        %3094 = vmatpush.msra.mxu0 %v3088
        %3095 = vmatpush.msra.mxu0 %v3087
        %3096 = vmatpush.msra.mxu0 %v3086
        %3097 = vmatpush.msra.mxu0 %v3085
        %3098 = vmatpush.msra.mxu0 %v3084
        %3099 = vmatpush.msra.mxu0 %v3083
        %3100 = vmatpush.msra.mxu0 %v3082
        %3101 = vmatpush.msra.mxu0 %v3081
        %3102 = vmatpush.msra.mxu0 %v3080
        %3103 = vmatpush.msra.mxu0 %v3079
        %3104 = vmatpush.msra.mxu0 %v3078
        %3105 = vmatpush.msra.mxu0 %v3077
        %3106 = vmatpush.msra.mxu0 %v3076
        %3107 = vmatpush.msra.mxu0 %v3075
        %3108 = vmatmul.f32.gmra.mxu0 %v3074
        %v3109 = vpop.f32.mrf.mxu0
        %v3110 = vadd.f32 %v3091, %v3109
        %3111 = vdwg.mxu0
        %v3112 = vxor.u32 %v3110, 2147483648
        %v3113 = vmul.f32 %v3112, 1.442695
        %v3114 = vpow.pop %v3113
        %v3115 = vadd.f32 %v3114, 1.0
        %v3116 = vrcp.pop %v3115
        %v3117 = vmul.f32 %v3115, %v3116
        %v3118 = vsub.f32 1.0, %v3117
        %v3119 = vmul.f32 %v3116, %v3118
        %v3120 = vadd.f32 %v3116, %v3119
        %vm3121 = vweird.f32 %v3115
        %vm3122 = vweird.f32 %v3116
        %vm3123 = vmor %vm3121, %vm3122
        %v3124 = vsel %vm3123, %v3116, %v3120
        %v3125 = vand.u32 2147483647, %v3115
        %vm3126 = vcmp.eq.f32.partialorder %v3125, 8.507059e+37
        %v3127 = vand.u32 %v3115, 2147483648
        %v3128 = vor.u32 1.1754944e-38, %v3127
        %v3129 = vsel %vm3126, %v3128, %v3124
        %v3130 = vmul.f32 1.0, %v3129
        %vm3131 = vcmask 253952
        %3132 = vst.msk [vmem:[%s460] sm:$0x1] %vm3131, %v3130
        %s3133 = sand.u32 %s319, 1
        %s3134 = scalar_lea.sflag [#allocation7], %s3133
        %s3135 = sand.u32 %s319, 1
        %s3136 = scalar_lea.vmem [#allocation8], %s3135
        // Predicated region
        $region77: #{cnn2_forward.1} parent=71 // pred_check
          %p3137 = pneg %p329
        $region78: #{cnn2_forward.1} parent=71 // pred_check_branch
          %3139 = sbr.rel (%p3137) target = $region80
        $region79: #{cnn2_forward.1} parent=71 // pred_region
          %3141 = vsyncadd %s3134, 0
          %s3142 = scalar_lea.hbm %s13, %s28
          %s3144 = sshll.u32 %s3136, 4
          %s3145 = int_to_ptr.vmem [resolvable:$true] %s3144
          %s3146 = sshll.u32 %s3142, 4
          %s3147 = int_to_ptr.hbm [resolvable:$true] %s3146
          %3149 = dma.vmem_to_hbm [thread:$0]  %s3145, 16, %s3147, %s3134
        $region80: #{cnn2_forward.1} parent=71 // pred_fallthru
          _
      $region72: #{cnn2_forward.1} parent=5 // pred_fallthru
        _
      %p3150 = scmp.le.s32.totalorder 2, %s23
      // Predicated region
      $region81: #{cnn2_forward.1} parent=5 // pred_check
        %p3151 = pneg %p3150
      $region82: #{cnn2_forward.1} parent=5 // pred_check_branch
        %3153 = sbr.rel (%p3151) target = $region84
      $region83: #{cnn2_forward.1} parent=5 // pred_region
        %s3154 = ssub.s32 %s23, 2
        // Predicated region
        $region85: #{cnn2_forward.1} parent=83 // pred_check
          %p3155 = pneg %p335
        $region86: #{cnn2_forward.1} parent=83 // pred_check_branch
          %3157 = sbr.rel (%p3155) target = $region88
        $region87: #{cnn2_forward.1} parent=83 // pred_region
          %s3158 = sand.u32 %s320, 1
          %s3159 = scalar_lea.sflag [#allocation7], %s3158
          %s3160 = sand.u32 %s320, 1
          %s3161 = scalar_lea.vmem [#allocation8], %s3160
          %3163 = dma.done %s3159, 16
        $region88: #{cnn2_forward.1} parent=83 // pred_fallthru
          _
      $region84: #{cnn2_forward.1} parent=5 // pred_fallthru
        _
    $region6: #{cnn2_forward.1} parent=1 // loop_footer
      %s27 = sadd.s32 1, %s23
    $region7: #{cnn2_forward.1} parent=1 // loop_footer_branch
      %22 = sbr.rel target = $region3
    $region8: #{cnn2_forward.1} parent=1 // loop_exit
      _
    %3164 = vsyncpa [#allocation6], 1
    %s3165 = scalar_lea.sflag [#allocation6], 1
    %3166 = vsyncpa %s3165, 1
    %3167 = vsyncpa [#allocation7], 1
    %s3168 = scalar_lea.sflag [#allocation7], 1
    %3169 = vsyncpa %s3168, 1

</llo_original>
